<compile_context>
chip_gen: v7x
topology: tpu7x:2x2x1
jax: 0.10.0
libtpu: 0.0.40
codegen_flags: <defaults>
</compile_context>

<pallas_src>
import functools

import jax
import jax.numpy as jnp
from jax.experimental import pallas as pl
from jax.experimental.pallas import tpu as pltpu

DEPTH = 6
OUT_PAD = 128   # lane-pad fc2 output so the final store is a full-lane vst


# --------------------------------------------------------------------------
# Fused Pallas kernel: edge-MLP + fc1 + depth x (NNConv_old + ReLU) + fc2
# --------------------------------------------------------------------------
def gno_kernel(x_ref, s_ref, a_ref, ea_ref, p_ref, r_ref,
               kw1_ref, kb1_ref, kw2_ref, kb2_ref, kw3_ref, kb3_ref,
               fc1w_ref, fc1b_ref, root_ref, bias_ref, fc2w_ref, fc2b_ref,
               out_ref, *, width, depth):
    W = width
    n = x_ref.shape[0]

    # ---- edge MLP (fused; wmat stays in VMEM, never hits HBM) -------------
    # wmat[e, i*W + o] = W_e[i, o]   (row-major [i, o], as in the reference)
    h = jnp.dot(ea_ref[...], kw1_ref[...],
                preferred_element_type=jnp.float32) + kb1_ref[...]
    h = jnp.maximum(h, 0.0)
    h = jnp.dot(h, kw2_ref[...],
                preferred_element_type=jnp.float32) + kb2_ref[...]
    h = jnp.maximum(h, 0.0)
    wmat = jnp.dot(h, kw3_ref[...],
                   preferred_element_type=jnp.float32) + kb3_ref[...]   # [E, W*W]

    # ---- loop-invariant operands hoisted out of the depth loop ------------
    s = s_ref[...]                                    # [E, N] one-hot(src)
    a = a_ref[...]                                    # [N, E] mean-aggregation matrix
    p = p_ref[...]                                    # [W, W*W] replicate matrix
    r = r_ref[...]                                    # [W*W, W] group-sum matrix
    root = root_ref[...]                              # [W, W]
    bias_b = jnp.broadcast_to(bias_ref[...], (n, W))  # hoisted broadcast (no CSE in-loop)

    # ---- fc1 ---------------------------------------------------------------
    x = jnp.dot(x_ref[...], fc1w_ref[...],
                preferred_element_type=jnp.float32)
    x = x + jnp.broadcast_to(fc1b_ref[...], (n, W))                      # [N, W]

    # ---- depth x (NNConv_old + ReLU), all on the MXU -----------------------
    # Association order chosen to minimize MXU work for E >> N, W:
    #   gather first (E*N*W), group-sum before scatter (E*W^3), scatter last.
    def body(_, x):
        x_src = jnp.dot(s, x, preferred_element_type=jnp.float32)       # [E, W]
        rep = jnp.dot(x_src, p, preferred_element_type=jnp.float32)     # [E, W*W]
        msgs = jnp.dot(rep * wmat, r,
                       preferred_element_type=jnp.float32)              # [E, W]
        aggr = jnp.dot(a, msgs, preferred_element_type=jnp.float32)     # [N, W]
        return jnp.maximum(
            aggr + jnp.dot(x, root, preferred_element_type=jnp.float32) + bias_b,
            0.0)

    # unroll=True: short fixed trip-count -> full LLO scheduler visibility
    x = jax.lax.fori_loop(0, depth, body, x, unroll=True)

    # ---- fc2 (weights lane-padded to OUT_PAD -> unmasked full-lane store) --
    out_ref[...] = (jnp.dot(x, fc2w_ref[...],
                            preferred_element_type=jnp.float32)
                    + jnp.broadcast_to(fc2b_ref[...], out_ref.shape))


# --------------------------------------------------------------------------
# Wrapper
# --------------------------------------------------------------------------
_VMEM = pl.BlockSpec(memory_space=pltpu.MemorySpace.VMEM)


def _cost_estimate(n, e, w, ker_in, wk, depth):
    """Rough advisory FLOP / byte counts for the XLA scheduler."""
    mlp = 2 * e * (ker_in * (wk // 2) + (wk // 2) * wk + wk * w * w)
    per_depth = 2 * (e * n * w            # gather  S @ x
                     + e * w * w * w      # x_src @ P
                     + e * w * w * w      # (.) @ R
                     + n * e * w          # scatter A @ msgs
                     + n * w * w)         # root
    fc = 2 * (n * w + n * w * OUT_PAD)
    flops = mlp + depth * per_depth + fc
    bytes_accessed = 4 * (n * 1 + e * n * 2 + e * ker_in
                          + w * w * w * 2                      # P, R
                          + ker_in * (wk // 2) + (wk // 2) * wk + wk * w * w
                          + w * w + 4 * w + w * OUT_PAD + OUT_PAD
                          + n * OUT_PAD)
    return pl.CostEstimate(flops=flops, transcendentals=0,
                           bytes_accessed=bytes_accessed)


def kernel_nn3_forward(x, edge_index, edge_attr, params, *, width, depth):
    n = x.shape[0]
    e = edge_attr.shape[0]
    W = width
    src, dst = edge_index[0], edge_index[1]

    # dense gather / scatter-mean operators (glue, plain JAX)
    # TODO(synk): at large N*E replace dense one-hot S/A with index-driven
    # gather/scatter via PrefetchScalarGridSpec + per-row DMA (VMEM ceiling).
    S = jax.nn.one_hot(src, n, dtype=jnp.float32)                       # [E, N]
    deg = jnp.zeros((n,), jnp.float32).at[dst].add(1.0)                 # [N]
    A = (jax.nn.one_hot(dst, n, dtype=jnp.float32) /
         jnp.maximum(deg, 1.0)[None, :]).T                              # [N, E]

    # constant replicate / group-sum matrices for the per-edge matvec
    j = jnp.arange(W * W)
    P = (j[None, :] // W == jnp.arange(W)[:, None]).astype(jnp.float32)  # [W, W*W]
    R = (j[:, None] % W == jnp.arange(W)[None, :]).astype(jnp.float32)   # [W*W, W]

    # lane-pad fc2 so the kernel's output store is full-lane (unmasked vst)
    fc2w_pad = jnp.zeros((W, OUT_PAD), jnp.float32).at[:, :1].set(params["fc2w"])
    fc2b_pad = jnp.zeros((1, OUT_PAD), jnp.float32).at[:, :1].set(params["fc2b"])

    wk = params["kw2"].shape[1]
    ker_in = params["kw1"].shape[0]

    out_pad = pl.pallas_call(
        functools.partial(gno_kernel, width=width, depth=depth),
        out_shape=jax.ShapeDtypeStruct((n, OUT_PAD), jnp.float32),
        in_specs=[_VMEM] * 18,
        out_specs=_VMEM,
        cost_estimate=_cost_estimate(n, e, W, ker_in, wk, depth),
    )(x, S, A, edge_attr, P, R,
      params["kw1"], params["kb1"], params["kw2"], params["kb2"],
      params["kw3"], params["kb3"],
      params["fc1w"], params["fc1b"], params["root"], params["bias"],
      fc2w_pad, fc2b_pad)
    return out_pad[:, :1]


# --------------------------------------------------------------------------
# Pure-JAX reference (PyTorch-faithful: gather + scatter-mean)
# --------------------------------------------------------------------------
def reference_forward(x, edge_index, edge_attr, params, *, width, depth):
    n = x.shape[0]
    e = edge_attr.shape[0]
    src, dst = edge_index[0], edge_index[1]

    h = jnp.maximum(edge_attr @ params["kw1"] + params["kb1"], 0.0)
    h = jnp.maximum(h @ params["kw2"] + params["kb2"], 0.0)
    wmat = (h @ params["kw3"] + params["kb3"]).reshape(e, width, width)

    deg = jnp.zeros((n,), jnp.float32).at[dst].add(1.0)
    deg = jnp.maximum(deg, 1.0)

    h = x @ params["fc1w"] + params["fc1b"]
    for _ in range(depth):
        x_src = h[src]                                    # [E, W]
        msgs = jnp.einsum("ei,eio->eo", x_src, wmat)      # [E, W]
        aggr = jnp.zeros((n, width), jnp.float32).at[dst].add(msgs) / deg[:, None]
        h = jnp.maximum(aggr + h @ params["root"] + params["bias"], 0.0)
    return h @ params["fc2w"] + params["fc2b"]


# --------------------------------------------------------------------------
# Main
# --------------------------------------------------------------------------
def _init(key, shape, fan_in):
    return (jax.random.normal(key, shape, jnp.float32) / jnp.sqrt(float(fan_in)))


if __name__ == "__main__":
    # small shapes consistent with the module
    N, E = 32, 128               # nodes, edges
    in_width = 1
    width_node = 16              # W
    width_kernel = 32            # wk  (edge MLP hidden: wk//2 -> wk)
    ker_in = 4                   # edge attribute dim
    depth = DEPTH

    key = jax.random.PRNGKey(0)
    ks = jax.random.split(key, 20)

    # inputs (data.x, data.edge_index, data.edge_attr)
    x = jax.random.normal(ks[0], (N, in_width), jnp.float32)
    src = jax.random.randint(ks[1], (E,), 0, N)
    dst = jax.random.randint(ks[2], (E,), 0, N)
    edge_index = jnp.stack([src, dst], axis=0)            # [2, E]
    edge_attr = jax.random.normal(ks[3], (E, ker_in), jnp.float32)

    W = width_node
    params = {
        # fc1: Linear(in_width, W)
        "fc1w": _init(ks[4], (in_width, W), in_width),
        "fc1b": _init(ks[5], (1, W), W),
        # DenseNet([ker_in, wk//2, wk, W*W], ReLU)
        "kw1": _init(ks[6], (ker_in, width_kernel // 2), ker_in),
        "kb1": _init(ks[7], (1, width_kernel // 2), width_kernel // 2),
        "kw2": _init(ks[8], (width_kernel // 2, width_kernel), width_kernel // 2),
        "kb2": _init(ks[9], (1, width_kernel), width_kernel),
        "kw3": _init(ks[10], (width_kernel, W * W), width_kernel),
        "kb3": _init(ks[11], (1, W * W), W * W),
        # NNConv_old root weight + bias
        "root": _init(ks[12], (W, W), W),
        "bias": _init(ks[13], (1, W), W),
        # fc2: Linear(W, 1)
        "fc2w": _init(ks[14], (W, 1), W),
        "fc2b": _init(ks[15], (1, 1), 1),
    }

    out = kernel_nn3_forward(x, edge_index, edge_attr, params,
                             width=W, depth=depth)
    out = jax.block_until_ready(out)

    ref = reference_forward(x, edge_index, edge_attr, params,
                            width=W, depth=depth)

    assert out.shape == (N, 1), out.shape
    assert bool(jnp.all(jnp.isfinite(out)))
    assert bool(jnp.allclose(out, ref, rtol=5e-2, atol=5e-2)), (
        float(jnp.max(jnp.abs(out - ref))))

    print("KERNEL_OK")
</pallas_src>

<mosaic_0001>
module attributes {stable_mosaic.version = 11 : i64} {
  func.func @gno_kernel(%arg0: memref<32x1xf32, #tpu.memory_space<vmem>>, %arg1: memref<128x32xf32, #tpu.memory_space<vmem>>, %arg2: memref<32x128xf32, #tpu.memory_space<vmem>>, %arg3: memref<128x4xf32, #tpu.memory_space<vmem>>, %arg4: memref<16x256xf32, #tpu.memory_space<vmem>>, %arg5: memref<256x16xf32, #tpu.memory_space<vmem>>, %arg6: memref<4x16xf32, #tpu.memory_space<vmem>>, %arg7: memref<1x16xf32, #tpu.memory_space<vmem>>, %arg8: memref<16x32xf32, #tpu.memory_space<vmem>>, %arg9: memref<1x32xf32, #tpu.memory_space<vmem>>, %arg10: memref<32x256xf32, #tpu.memory_space<vmem>>, %arg11: memref<1x256xf32, #tpu.memory_space<vmem>>, %arg12: memref<1x16xf32, #tpu.memory_space<vmem>>, %arg13: memref<1x16xf32, #tpu.memory_space<vmem>>, %arg14: memref<16x16xf32, #tpu.memory_space<vmem>>, %arg15: memref<1x16xf32, #tpu.memory_space<vmem>>, %arg16: memref<16x128xf32, #tpu.memory_space<vmem>>, %arg17: memref<1x128xf32, #tpu.memory_space<vmem>>, %arg18: memref<32x128xf32, #tpu.memory_space<vmem>>) attributes {dimension_semantics = [], scalar_prefetch = 0 : i64, scratch_operands = 0 : i64, tpu.core_type = #tpu.core_type<tc>} {
    %c0 = arith.constant 0 : index
    %c0_0 = arith.constant 0 : index
    %0 = vector.load %arg3[%c0, %c0_0] : memref<128x4xf32, #tpu.memory_space<vmem>>, vector<128x4xf32>
    %c0_1 = arith.constant 0 : index
    %c0_2 = arith.constant 0 : index
    %1 = vector.load %arg6[%c0_1, %c0_2] : memref<4x16xf32, #tpu.memory_space<vmem>>, vector<4x16xf32>
    %cst = arith.constant dense<0.000000e+00> : vector<128x16xf32>
    %2 = tpu.matmul %0, %1, %cst {dimension_numbers = #tpu.dot_dimension_numbers<[1], [0], [0], [1], [0, 0, 1, 1], [], []>} : vector<128x4xf32>, vector<4x16xf32>, vector<128x16xf32> -> vector<128x16xf32>
    %c0_3 = arith.constant 0 : index
    %c0_4 = arith.constant 0 : index
    %3 = vector.load %arg7[%c0_3, %c0_4] : memref<1x16xf32, #tpu.memory_space<vmem>>, vector<1x16xf32>
    %4 = vector.broadcast %3 : vector<1x16xf32> to vector<128x16xf32>
    %5 = arith.addf %2, %4 : vector<128x16xf32>
    %cst_5 = arith.constant 0.000000e+00 : f32
    %6 = vector.broadcast %cst_5 : f32 to vector<128x16xf32>
    %7 = arith.maximumf %5, %6 : vector<128x16xf32>
    %c0_6 = arith.constant 0 : index
    %c0_7 = arith.constant 0 : index
    %8 = vector.load %arg8[%c0_6, %c0_7] : memref<16x32xf32, #tpu.memory_space<vmem>>, vector<16x32xf32>
    %cst_8 = arith.constant dense<0.000000e+00> : vector<128x32xf32>
    %9 = tpu.matmul %7, %8, %cst_8 {dimension_numbers = #tpu.dot_dimension_numbers<[1], [0], [0], [1], [0, 0, 1, 1], [], []>} : vector<128x16xf32>, vector<16x32xf32>, vector<128x32xf32> -> vector<128x32xf32>
    %c0_9 = arith.constant 0 : index
    %c0_10 = arith.constant 0 : index
    %10 = vector.load %arg9[%c0_9, %c0_10] : memref<1x32xf32, #tpu.memory_space<vmem>>, vector<1x32xf32>
    %11 = vector.broadcast %10 : vector<1x32xf32> to vector<128x32xf32>
    %12 = arith.addf %9, %11 : vector<128x32xf32>
    %cst_11 = arith.constant 0.000000e+00 : f32
    %13 = vector.broadcast %cst_11 : f32 to vector<128x32xf32>
    %14 = arith.maximumf %12, %13 : vector<128x32xf32>
    %c0_12 = arith.constant 0 : index
    %c0_13 = arith.constant 0 : index
    %15 = vector.load %arg10[%c0_12, %c0_13] : memref<32x256xf32, #tpu.memory_space<vmem>>, vector<32x256xf32>
    %cst_14 = arith.constant dense<0.000000e+00> : vector<128x256xf32>
    %16 = tpu.matmul %14, %15, %cst_14 {dimension_numbers = #tpu.dot_dimension_numbers<[1], [0], [0], [1], [0, 0, 1, 1], [], []>} : vector<128x32xf32>, vector<32x256xf32>, vector<128x256xf32> -> vector<128x256xf32>
    %c0_15 = arith.constant 0 : index
    %c0_16 = arith.constant 0 : index
    %17 = vector.load %arg11[%c0_15, %c0_16] : memref<1x256xf32, #tpu.memory_space<vmem>>, vector<1x256xf32>
    %18 = vector.broadcast %17 : vector<1x256xf32> to vector<128x256xf32>
    %19 = arith.addf %16, %18 : vector<128x256xf32>
    %c0_17 = arith.constant 0 : index
    %c0_18 = arith.constant 0 : index
    %20 = vector.load %arg1[%c0_17, %c0_18] : memref<128x32xf32, #tpu.memory_space<vmem>>, vector<128x32xf32>
    %c0_19 = arith.constant 0 : index
    %c0_20 = arith.constant 0 : index
    %21 = vector.load %arg2[%c0_19, %c0_20] : memref<32x128xf32, #tpu.memory_space<vmem>>, vector<32x128xf32>
    %c0_21 = arith.constant 0 : index
    %c0_22 = arith.constant 0 : index
    %22 = vector.load %arg4[%c0_21, %c0_22] : memref<16x256xf32, #tpu.memory_space<vmem>>, vector<16x256xf32>
    %c0_23 = arith.constant 0 : index
    %c0_24 = arith.constant 0 : index
    %23 = vector.load %arg5[%c0_23, %c0_24] : memref<256x16xf32, #tpu.memory_space<vmem>>, vector<256x16xf32>
    %c0_25 = arith.constant 0 : index
    %c0_26 = arith.constant 0 : index
    %24 = vector.load %arg14[%c0_25, %c0_26] : memref<16x16xf32, #tpu.memory_space<vmem>>, vector<16x16xf32>
    %c0_27 = arith.constant 0 : index
    %c0_28 = arith.constant 0 : index
    %25 = vector.load %arg15[%c0_27, %c0_28] : memref<1x16xf32, #tpu.memory_space<vmem>>, vector<1x16xf32>
    %26 = vector.shape_cast %25 : vector<1x16xf32> to vector<1x16xf32>
    %27 = vector.broadcast %26 : vector<1x16xf32> to vector<32x16xf32>
    %c0_29 = arith.constant 0 : index
    %c0_30 = arith.constant 0 : index
    %28 = vector.load %arg0[%c0_29, %c0_30] : memref<32x1xf32, #tpu.memory_space<vmem>>, vector<32x1xf32>
    %c0_31 = arith.constant 0 : index
    %c0_32 = arith.constant 0 : index
    %29 = vector.load %arg12[%c0_31, %c0_32] : memref<1x16xf32, #tpu.memory_space<vmem>>, vector<1x16xf32>
    %cst_33 = arith.constant dense<0.000000e+00> : vector<32x16xf32>
    %30 = tpu.matmul %28, %29, %cst_33 {dimension_numbers = #tpu.dot_dimension_numbers<[1], [0], [0], [1], [0, 0, 1, 1], [], []>} : vector<32x1xf32>, vector<1x16xf32>, vector<32x16xf32> -> vector<32x16xf32>
    %c0_34 = arith.constant 0 : index
    %c0_35 = arith.constant 0 : index
    %31 = vector.load %arg13[%c0_34, %c0_35] : memref<1x16xf32, #tpu.memory_space<vmem>>, vector<1x16xf32>
    %32 = vector.shape_cast %31 : vector<1x16xf32> to vector<1x16xf32>
    %33 = vector.broadcast %32 : vector<1x16xf32> to vector<32x16xf32>
    %34 = arith.addf %30, %33 : vector<32x16xf32>
    %c0_i32 = arith.constant 0 : i32
    %cst_36 = arith.constant dense<0.000000e+00> : vector<128x16xf32>
    %35 = tpu.matmul %20, %34, %cst_36 {dimension_numbers = #tpu.dot_dimension_numbers<[1], [0], [0], [1], [0, 0, 1, 1], [], []>} : vector<128x32xf32>, vector<32x16xf32>, vector<128x16xf32> -> vector<128x16xf32>
    %cst_37 = arith.constant dense<0.000000e+00> : vector<128x256xf32>
    %36 = tpu.matmul %35, %22, %cst_37 {dimension_numbers = #tpu.dot_dimension_numbers<[1], [0], [0], [1], [0, 0, 1, 1], [], []>} : vector<128x16xf32>, vector<16x256xf32>, vector<128x256xf32> -> vector<128x256xf32>
    %37 = arith.mulf %36, %19 : vector<128x256xf32>
    %cst_38 = arith.constant dense<0.000000e+00> : vector<128x16xf32>
    %38 = tpu.matmul %37, %23, %cst_38 {dimension_numbers = #tpu.dot_dimension_numbers<[1], [0], [0], [1], [0, 0, 1, 1], [], []>} : vector<128x256xf32>, vector<256x16xf32>, vector<128x16xf32> -> vector<128x16xf32>
    %cst_39 = arith.constant dense<0.000000e+00> : vector<32x16xf32>
    %39 = tpu.matmul %21, %38, %cst_39 {dimension_numbers = #tpu.dot_dimension_numbers<[1], [0], [0], [1], [0, 0, 1, 1], [], []>} : vector<32x128xf32>, vector<128x16xf32>, vector<32x16xf32> -> vector<32x16xf32>
    %cst_40 = arith.constant dense<0.000000e+00> : vector<32x16xf32>
    %40 = tpu.matmul %34, %24, %cst_40 {dimension_numbers = #tpu.dot_dimension_numbers<[1], [0], [0], [1], [0, 0, 1, 1], [], []>} : vector<32x16xf32>, vector<16x16xf32>, vector<32x16xf32> -> vector<32x16xf32>
    %41 = arith.addf %39, %40 : vector<32x16xf32>
    %42 = arith.addf %41, %27 : vector<32x16xf32>
    %cst_41 = arith.constant 0.000000e+00 : f32
    %43 = vector.broadcast %cst_41 : f32 to vector<32x16xf32>
    %44 = arith.maximumf %42, %43 : vector<32x16xf32>
    %c1_i32 = arith.constant 1 : i32
    %cst_42 = arith.constant dense<0.000000e+00> : vector<128x16xf32>
    %45 = tpu.matmul %20, %44, %cst_42 {dimension_numbers = #tpu.dot_dimension_numbers<[1], [0], [0], [1], [0, 0, 1, 1], [], []>} : vector<128x32xf32>, vector<32x16xf32>, vector<128x16xf32> -> vector<128x16xf32>
    %cst_43 = arith.constant dense<0.000000e+00> : vector<128x256xf32>
    %46 = tpu.matmul %45, %22, %cst_43 {dimension_numbers = #tpu.dot_dimension_numbers<[1], [0], [0], [1], [0, 0, 1, 1], [], []>} : vector<128x16xf32>, vector<16x256xf32>, vector<128x256xf32> -> vector<128x256xf32>
    %47 = arith.mulf %46, %19 : vector<128x256xf32>
    %cst_44 = arith.constant dense<0.000000e+00> : vector<128x16xf32>
    %48 = tpu.matmul %47, %23, %cst_44 {dimension_numbers = #tpu.dot_dimension_numbers<[1], [0], [0], [1], [0, 0, 1, 1], [], []>} : vector<128x256xf32>, vector<256x16xf32>, vector<128x16xf32> -> vector<128x16xf32>
    %cst_45 = arith.constant dense<0.000000e+00> : vector<32x16xf32>
    %49 = tpu.matmul %21, %48, %cst_45 {dimension_numbers = #tpu.dot_dimension_numbers<[1], [0], [0], [1], [0, 0, 1, 1], [], []>} : vector<32x128xf32>, vector<128x16xf32>, vector<32x16xf32> -> vector<32x16xf32>
    %cst_46 = arith.constant dense<0.000000e+00> : vector<32x16xf32>
    %50 = tpu.matmul %44, %24, %cst_46 {dimension_numbers = #tpu.dot_dimension_numbers<[1], [0], [0], [1], [0, 0, 1, 1], [], []>} : vector<32x16xf32>, vector<16x16xf32>, vector<32x16xf32> -> vector<32x16xf32>
    %51 = arith.addf %49, %50 : vector<32x16xf32>
    %52 = arith.addf %51, %27 : vector<32x16xf32>
    %cst_47 = arith.constant 0.000000e+00 : f32
    %53 = vector.broadcast %cst_47 : f32 to vector<32x16xf32>
    %54 = arith.maximumf %52, %53 : vector<32x16xf32>
    %c2_i32 = arith.constant 2 : i32
    %cst_48 = arith.constant dense<0.000000e+00> : vector<128x16xf32>
    %55 = tpu.matmul %20, %54, %cst_48 {dimension_numbers = #tpu.dot_dimension_numbers<[1], [0], [0], [1], [0, 0, 1, 1], [], []>} : vector<128x32xf32>, vector<32x16xf32>, vector<128x16xf32> -> vector<128x16xf32>
    %cst_49 = arith.constant dense<0.000000e+00> : vector<128x256xf32>
    %56 = tpu.matmul %55, %22, %cst_49 {dimension_numbers = #tpu.dot_dimension_numbers<[1], [0], [0], [1], [0, 0, 1, 1], [], []>} : vector<128x16xf32>, vector<16x256xf32>, vector<128x256xf32> -> vector<128x256xf32>
    %57 = arith.mulf %56, %19 : vector<128x256xf32>
    %cst_50 = arith.constant dense<0.000000e+00> : vector<128x16xf32>
    %58 = tpu.matmul %57, %23, %cst_50 {dimension_numbers = #tpu.dot_dimension_numbers<[1], [0], [0], [1], [0, 0, 1, 1], [], []>} : vector<128x256xf32>, vector<256x16xf32>, vector<128x16xf32> -> vector<128x16xf32>
    %cst_51 = arith.constant dense<0.000000e+00> : vector<32x16xf32>
    %59 = tpu.matmul %21, %58, %cst_51 {dimension_numbers = #tpu.dot_dimension_numbers<[1], [0], [0], [1], [0, 0, 1, 1], [], []>} : vector<32x128xf32>, vector<128x16xf32>, vector<32x16xf32> -> vector<32x16xf32>
    %cst_52 = arith.constant dense<0.000000e+00> : vector<32x16xf32>
    %60 = tpu.matmul %54, %24, %cst_52 {dimension_numbers = #tpu.dot_dimension_numbers<[1], [0], [0], [1], [0, 0, 1, 1], [], []>} : vector<32x16xf32>, vector<16x16xf32>, vector<32x16xf32> -> vector<32x16xf32>
    %61 = arith.addf %59, %60 : vector<32x16xf32>
    %62 = arith.addf %61, %27 : vector<32x16xf32>
    %cst_53 = arith.constant 0.000000e+00 : f32
    %63 = vector.broadcast %cst_53 : f32 to vector<32x16xf32>
    %64 = arith.maximumf %62, %63 : vector<32x16xf32>
    %c3_i32 = arith.constant 3 : i32
    %cst_54 = arith.constant dense<0.000000e+00> : vector<128x16xf32>
    %65 = tpu.matmul %20, %64, %cst_54 {dimension_numbers = #tpu.dot_dimension_numbers<[1], [0], [0], [1], [0, 0, 1, 1], [], []>} : vector<128x32xf32>, vector<32x16xf32>, vector<128x16xf32> -> vector<128x16xf32>
    %cst_55 = arith.constant dense<0.000000e+00> : vector<128x256xf32>
    %66 = tpu.matmul %65, %22, %cst_55 {dimension_numbers = #tpu.dot_dimension_numbers<[1], [0], [0], [1], [0, 0, 1, 1], [], []>} : vector<128x16xf32>, vector<16x256xf32>, vector<128x256xf32> -> vector<128x256xf32>
    %67 = arith.mulf %66, %19 : vector<128x256xf32>
    %cst_56 = arith.constant dense<0.000000e+00> : vector<128x16xf32>
    %68 = tpu.matmul %67, %23, %cst_56 {dimension_numbers = #tpu.dot_dimension_numbers<[1], [0], [0], [1], [0, 0, 1, 1], [], []>} : vector<128x256xf32>, vector<256x16xf32>, vector<128x16xf32> -> vector<128x16xf32>
    %cst_57 = arith.constant dense<0.000000e+00> : vector<32x16xf32>
    %69 = tpu.matmul %21, %68, %cst_57 {dimension_numbers = #tpu.dot_dimension_numbers<[1], [0], [0], [1], [0, 0, 1, 1], [], []>} : vector<32x128xf32>, vector<128x16xf32>, vector<32x16xf32> -> vector<32x16xf32>
    %cst_58 = arith.constant dense<0.000000e+00> : vector<32x16xf32>
    %70 = tpu.matmul %64, %24, %cst_58 {dimension_numbers = #tpu.dot_dimension_numbers<[1], [0], [0], [1], [0, 0, 1, 1], [], []>} : vector<32x16xf32>, vector<16x16xf32>, vector<32x16xf32> -> vector<32x16xf32>
    %71 = arith.addf %69, %70 : vector<32x16xf32>
    %72 = arith.addf %71, %27 : vector<32x16xf32>
    %cst_59 = arith.constant 0.000000e+00 : f32
    %73 = vector.broadcast %cst_59 : f32 to vector<32x16xf32>
    %74 = arith.maximumf %72, %73 : vector<32x16xf32>
    %c4_i32 = arith.constant 4 : i32
    %cst_60 = arith.constant dense<0.000000e+00> : vector<128x16xf32>
    %75 = tpu.matmul %20, %74, %cst_60 {dimension_numbers = #tpu.dot_dimension_numbers<[1], [0], [0], [1], [0, 0, 1, 1], [], []>} : vector<128x32xf32>, vector<32x16xf32>, vector<128x16xf32> -> vector<128x16xf32>
    %cst_61 = arith.constant dense<0.000000e+00> : vector<128x256xf32>
    %76 = tpu.matmul %75, %22, %cst_61 {dimension_numbers = #tpu.dot_dimension_numbers<[1], [0], [0], [1], [0, 0, 1, 1], [], []>} : vector<128x16xf32>, vector<16x256xf32>, vector<128x256xf32> -> vector<128x256xf32>
    %77 = arith.mulf %76, %19 : vector<128x256xf32>
    %cst_62 = arith.constant dense<0.000000e+00> : vector<128x16xf32>
    %78 = tpu.matmul %77, %23, %cst_62 {dimension_numbers = #tpu.dot_dimension_numbers<[1], [0], [0], [1], [0, 0, 1, 1], [], []>} : vector<128x256xf32>, vector<256x16xf32>, vector<128x16xf32> -> vector<128x16xf32>
    %cst_63 = arith.constant dense<0.000000e+00> : vector<32x16xf32>
    %79 = tpu.matmul %21, %78, %cst_63 {dimension_numbers = #tpu.dot_dimension_numbers<[1], [0], [0], [1], [0, 0, 1, 1], [], []>} : vector<32x128xf32>, vector<128x16xf32>, vector<32x16xf32> -> vector<32x16xf32>
    %cst_64 = arith.constant dense<0.000000e+00> : vector<32x16xf32>
    %80 = tpu.matmul %74, %24, %cst_64 {dimension_numbers = #tpu.dot_dimension_numbers<[1], [0], [0], [1], [0, 0, 1, 1], [], []>} : vector<32x16xf32>, vector<16x16xf32>, vector<32x16xf32> -> vector<32x16xf32>
    %81 = arith.addf %79, %80 : vector<32x16xf32>
    %82 = arith.addf %81, %27 : vector<32x16xf32>
    %cst_65 = arith.constant 0.000000e+00 : f32
    %83 = vector.broadcast %cst_65 : f32 to vector<32x16xf32>
    %84 = arith.maximumf %82, %83 : vector<32x16xf32>
    %c5_i32 = arith.constant 5 : i32
    %cst_66 = arith.constant dense<0.000000e+00> : vector<128x16xf32>
    %85 = tpu.matmul %20, %84, %cst_66 {dimension_numbers = #tpu.dot_dimension_numbers<[1], [0], [0], [1], [0, 0, 1, 1], [], []>} : vector<128x32xf32>, vector<32x16xf32>, vector<128x16xf32> -> vector<128x16xf32>
    %cst_67 = arith.constant dense<0.000000e+00> : vector<128x256xf32>
    %86 = tpu.matmul %85, %22, %cst_67 {dimension_numbers = #tpu.dot_dimension_numbers<[1], [0], [0], [1], [0, 0, 1, 1], [], []>} : vector<128x16xf32>, vector<16x256xf32>, vector<128x256xf32> -> vector<128x256xf32>
    %87 = arith.mulf %86, %19 : vector<128x256xf32>
    %cst_68 = arith.constant dense<0.000000e+00> : vector<128x16xf32>
    %88 = tpu.matmul %87, %23, %cst_68 {dimension_numbers = #tpu.dot_dimension_numbers<[1], [0], [0], [1], [0, 0, 1, 1], [], []>} : vector<128x256xf32>, vector<256x16xf32>, vector<128x16xf32> -> vector<128x16xf32>
    %cst_69 = arith.constant dense<0.000000e+00> : vector<32x16xf32>
    %89 = tpu.matmul %21, %88, %cst_69 {dimension_numbers = #tpu.dot_dimension_numbers<[1], [0], [0], [1], [0, 0, 1, 1], [], []>} : vector<32x128xf32>, vector<128x16xf32>, vector<32x16xf32> -> vector<32x16xf32>
    %cst_70 = arith.constant dense<0.000000e+00> : vector<32x16xf32>
    %90 = tpu.matmul %84, %24, %cst_70 {dimension_numbers = #tpu.dot_dimension_numbers<[1], [0], [0], [1], [0, 0, 1, 1], [], []>} : vector<32x16xf32>, vector<16x16xf32>, vector<32x16xf32> -> vector<32x16xf32>
    %91 = arith.addf %89, %90 : vector<32x16xf32>
    %92 = arith.addf %91, %27 : vector<32x16xf32>
    %cst_71 = arith.constant 0.000000e+00 : f32
    %93 = vector.broadcast %cst_71 : f32 to vector<32x16xf32>
    %94 = arith.maximumf %92, %93 : vector<32x16xf32>
    %c0_72 = arith.constant 0 : index
    %c0_73 = arith.constant 0 : index
    %95 = vector.load %arg16[%c0_72, %c0_73] : memref<16x128xf32, #tpu.memory_space<vmem>>, vector<16x128xf32>
    %cst_74 = arith.constant dense<0.000000e+00> : vector<32x128xf32>
    %96 = tpu.matmul %94, %95, %cst_74 {dimension_numbers = #tpu.dot_dimension_numbers<[1], [0], [0], [1], [0, 0, 1, 1], [], []>} : vector<32x16xf32>, vector<16x128xf32>, vector<32x128xf32> -> vector<32x128xf32>
    %c0_75 = arith.constant 0 : index
    %c0_76 = arith.constant 0 : index
    %97 = vector.load %arg17[%c0_75, %c0_76] : memref<1x128xf32, #tpu.memory_space<vmem>>, vector<1x128xf32>
    %98 = vector.shape_cast %97 : vector<1x128xf32> to vector<1x128xf32>
    %99 = vector.broadcast %98 : vector<1x128xf32> to vector<32x128xf32>
    %100 = arith.addf %96, %99 : vector<32x128xf32>
    %c0_77 = arith.constant 0 : index
    %c0_78 = arith.constant 0 : index
    %101 = vector.load %arg18[%c0_77, %c0_78] : memref<32x128xf32, #tpu.memory_space<vmem>>, vector<32x128xf32>
    tpu.vector_store %arg18[%c0_77, %c0_78], %100 {strides = array<i32>} : memref<32x128xf32, #tpu.memory_space<vmem>>, vector<32x128xf32>,
    return
  }
}

</mosaic_0001>

<llo_original>
// kernel: tpu_custom_call.1
$region0: #{tpu_custom_call.1}
  #allocation0 [shape = 'u32[]', space=smem, size = 0x4, offset = 0x4, fixed_abs, tag = 'smem constant byte address 0x4 - core index']
  #allocation1 [shape = 'u32[144,128]{1,0:T(1,128)}', space=vmem, size = 0x12000, scoped, tag = 'internal scratch']
  %s0 = inlined_call_operand.vmem [shape: f32[32,1], index: 0, kind: input, shape index: {}]
  %s1 = inlined_call_operand.vmem [shape: f32[128,32], index: 1, kind: input, shape index: {}]
  %s2 = inlined_call_operand.vmem [shape: f32[32,128], index: 2, kind: input, shape index: {}]
  %s3 = inlined_call_operand.vmem [shape: f32[128,4], index: 3, kind: input, shape index: {}]
  %s4 = inlined_call_operand.vmem [shape: f32[16,256], index: 4, kind: input, shape index: {}]
  %s5 = inlined_call_operand.vmem [shape: f32[256,16], index: 5, kind: input, shape index: {}]
  %s6 = inlined_call_operand.vmem [shape: f32[4,16], index: 6, kind: input, shape index: {}]
  %s7 = inlined_call_operand.vmem [shape: f32[1,16], index: 7, kind: input, shape index: {}]
  %s8 = inlined_call_operand.vmem [shape: f32[16,32], index: 8, kind: input, shape index: {}]
  %s9 = inlined_call_operand.vmem [shape: f32[1,32], index: 9, kind: input, shape index: {}]
  %s10 = inlined_call_operand.vmem [shape: f32[32,256], index: 10, kind: input, shape index: {}]
  %s11 = inlined_call_operand.vmem [shape: f32[1,256], index: 11, kind: input, shape index: {}]
  %s12 = inlined_call_operand.vmem [shape: f32[1,16], index: 12, kind: input, shape index: {}]
  %s13 = inlined_call_operand.vmem [shape: f32[1,16], index: 13, kind: input, shape index: {}]
  %s14 = inlined_call_operand.vmem [shape: f32[16,16], index: 14, kind: input, shape index: {}]
  %s15 = inlined_call_operand.vmem [shape: f32[1,16], index: 15, kind: input, shape index: {}]
  %s16 = inlined_call_operand.vmem [shape: f32[16,128], index: 16, kind: input, shape index: {}]
  %s17 = inlined_call_operand.vmem [shape: f32[1,128], index: 17, kind: input, shape index: {}]
  %s18 = inlined_call_operand.hbm [shape: f32[32,128], index: 18, kind: output, shape index: {}]
  %s19 = sld [smem:[#allocation0]]
  $region82: #{tpu_custom_call.1} parent=0
    _
  %s21 = ssub.s32 1, %s19
  %s22 = scalar_select 0, %s21, %s19
  $region1: #{tpu_custom_call.1} parent=0
    #allocation2 [shape = 'u8[16384]{0}', space=vmem, size = 0x4000, scoped, tag = 'output window, operand 0, single buffered']
    #allocation3 [shape = 's32[1]{0}', space=sflag, size = 0x4, scoped, tag = 'scoped memory for tpu_custom_call.1']
    %23 = vsyncpa [#allocation3], 0
    // Predicated region
    $region2: #{tpu_custom_call.1} parent=1 // pred_check
      _
    $region3: #{tpu_custom_call.1} parent=1 // pred_check_branch
      %25 = sbr.rel (0) target = $region5
    $region4: #{tpu_custom_call.1} parent=1 // pred_region
      _
    $region5: #{tpu_custom_call.1} parent=1 // pred_fallthru
      _
    // Predicated region
    $region6: #{tpu_custom_call.1} parent=1 // pred_check
      _
    $region7: #{tpu_custom_call.1} parent=1 // pred_check_branch
      %27 = sbr.rel (0) target = $region9
    $region8: #{tpu_custom_call.1} parent=1 // pred_region
      _
    $region9: #{tpu_custom_call.1} parent=1 // pred_fallthru
      _
    // Predicated region
    $region10: #{tpu_custom_call.1} parent=1 // pred_check
      _
    $region11: #{tpu_custom_call.1} parent=1 // pred_check_branch
      %29 = sbr.rel (0) target = $region13
    $region12: #{tpu_custom_call.1} parent=1 // pred_region
      _
    $region13: #{tpu_custom_call.1} parent=1 // pred_fallthru
      _
    // Predicated region
    $region14: #{tpu_custom_call.1} parent=1 // pred_check
      _
    $region15: #{tpu_custom_call.1} parent=1 // pred_check_branch
      %31 = sbr.rel (0) target = $region17
    $region16: #{tpu_custom_call.1} parent=1 // pred_region
      _
    $region17: #{tpu_custom_call.1} parent=1 // pred_fallthru
      _
    // Predicated region
    $region18: #{tpu_custom_call.1} parent=1 // pred_check
      _
    $region19: #{tpu_custom_call.1} parent=1 // pred_check_branch
      %33 = sbr.rel (0) target = $region21
    $region20: #{tpu_custom_call.1} parent=1 // pred_region
      _
    $region21: #{tpu_custom_call.1} parent=1 // pred_fallthru
      _
    // Predicated region
    $region22: #{tpu_custom_call.1} parent=1 // pred_check
      _
    $region23: #{tpu_custom_call.1} parent=1 // pred_check_branch
      %35 = sbr.rel (0) target = $region25
    $region24: #{tpu_custom_call.1} parent=1 // pred_region
      _
    $region25: #{tpu_custom_call.1} parent=1 // pred_fallthru
      _
    // Predicated region
    $region26: #{tpu_custom_call.1} parent=1 // pred_check
      _
    $region27: #{tpu_custom_call.1} parent=1 // pred_check_branch
      %37 = sbr.rel (0) target = $region29
    $region28: #{tpu_custom_call.1} parent=1 // pred_region
      _
    $region29: #{tpu_custom_call.1} parent=1 // pred_fallthru
      _
    // Predicated region
    $region30: #{tpu_custom_call.1} parent=1 // pred_check
      _
    $region31: #{tpu_custom_call.1} parent=1 // pred_check_branch
      %39 = sbr.rel (0) target = $region33
    $region32: #{tpu_custom_call.1} parent=1 // pred_region
      _
    $region33: #{tpu_custom_call.1} parent=1 // pred_fallthru
      _
    // Predicated region
    $region34: #{tpu_custom_call.1} parent=1 // pred_check
      _
    $region35: #{tpu_custom_call.1} parent=1 // pred_check_branch
      %41 = sbr.rel (0) target = $region37
    $region36: #{tpu_custom_call.1} parent=1 // pred_region
      _
    $region37: #{tpu_custom_call.1} parent=1 // pred_fallthru
      _
    // Predicated region
    $region38: #{tpu_custom_call.1} parent=1 // pred_check
      _
    $region39: #{tpu_custom_call.1} parent=1 // pred_check_branch
      %43 = sbr.rel (0) target = $region41
    $region40: #{tpu_custom_call.1} parent=1 // pred_region
      _
    $region41: #{tpu_custom_call.1} parent=1 // pred_fallthru
      _
    // Predicated region
    $region42: #{tpu_custom_call.1} parent=1 // pred_check
      _
    $region43: #{tpu_custom_call.1} parent=1 // pred_check_branch
      %45 = sbr.rel (0) target = $region45
    $region44: #{tpu_custom_call.1} parent=1 // pred_region
      _
    $region45: #{tpu_custom_call.1} parent=1 // pred_fallthru
      _
    // Predicated region
    $region46: #{tpu_custom_call.1} parent=1 // pred_check
      _
    $region47: #{tpu_custom_call.1} parent=1 // pred_check_branch
      %47 = sbr.rel (0) target = $region49
    $region48: #{tpu_custom_call.1} parent=1 // pred_region
      _
    $region49: #{tpu_custom_call.1} parent=1 // pred_fallthru
      _
    // Predicated region
    $region50: #{tpu_custom_call.1} parent=1 // pred_check
      _
    $region51: #{tpu_custom_call.1} parent=1 // pred_check_branch
      %49 = sbr.rel (0) target = $region53
    $region52: #{tpu_custom_call.1} parent=1 // pred_region
      _
    $region53: #{tpu_custom_call.1} parent=1 // pred_fallthru
      _
    // Predicated region
    $region54: #{tpu_custom_call.1} parent=1 // pred_check
      _
    $region55: #{tpu_custom_call.1} parent=1 // pred_check_branch
      %51 = sbr.rel (0) target = $region57
    $region56: #{tpu_custom_call.1} parent=1 // pred_region
      _
    $region57: #{tpu_custom_call.1} parent=1 // pred_fallthru
      _
    // Predicated region
    $region58: #{tpu_custom_call.1} parent=1 // pred_check
      _
    $region59: #{tpu_custom_call.1} parent=1 // pred_check_branch
      %53 = sbr.rel (0) target = $region61
    $region60: #{tpu_custom_call.1} parent=1 // pred_region
      _
    $region61: #{tpu_custom_call.1} parent=1 // pred_fallthru
      _
    // Predicated region
    $region62: #{tpu_custom_call.1} parent=1 // pred_check
      _
    $region63: #{tpu_custom_call.1} parent=1 // pred_check_branch
      %55 = sbr.rel (0) target = $region65
    $region64: #{tpu_custom_call.1} parent=1 // pred_region
      _
    $region65: #{tpu_custom_call.1} parent=1 // pred_fallthru
      _
    // Predicated region
    $region66: #{tpu_custom_call.1} parent=1 // pred_check
      _
    $region67: #{tpu_custom_call.1} parent=1 // pred_check_branch
      %57 = sbr.rel (0) target = $region69
    $region68: #{tpu_custom_call.1} parent=1 // pred_region
      _
    $region69: #{tpu_custom_call.1} parent=1 // pred_fallthru
      _
    // Predicated region
    $region70: #{tpu_custom_call.1} parent=1 // pred_check
      _
    $region71: #{tpu_custom_call.1} parent=1 // pred_check_branch
      %59 = sbr.rel (0) target = $region73
    $region72: #{tpu_custom_call.1} parent=1 // pred_region
      _
    $region73: #{tpu_custom_call.1} parent=1 // pred_fallthru
      _
    %v60 = vld [vmem:[%s3] sm:$0xff]
    %v61 = vld [vmem:[%s3 + $0x8] sm:$0xff]
    %v62 = vld [vmem:[%s3 + $0x10] sm:$0xff]
    %v63 = vld [vmem:[%s3 + $0x18] sm:$0xff]
    %v64 = vld [vmem:[%s3 + $0x20] sm:$0xff]
    %v65 = vld [vmem:[%s3 + $0x28] sm:$0xff]
    %v66 = vld [vmem:[%s3 + $0x30] sm:$0xff]
    %v67 = vld [vmem:[%s3 + $0x38] sm:$0xff]
    %v68 = vld [vmem:[%s3 + $0x40] sm:$0xff]
    %v69 = vld [vmem:[%s3 + $0x48] sm:$0xff]
    %v70 = vld [vmem:[%s3 + $0x50] sm:$0xff]
    %v71 = vld [vmem:[%s3 + $0x58] sm:$0xff]
    %v72 = vld [vmem:[%s3 + $0x60] sm:$0xff]
    %v73 = vld [vmem:[%s3 + $0x68] sm:$0xff]
    %v74 = vld [vmem:[%s3 + $0x70] sm:$0xff]
    %v75 = vld [vmem:[%s3 + $0x78] sm:$0xff]
    %v76 = vld [vmem:[%s6] sm:$0xf]
    %v77 = vld [vmem:[%s7] sm:$0x1]
    %v79 = vlaneseq
    %v80 = vshrl.u32 %v79, 7
    %v81 = vsub.s32 0, %v80
    %v82 = vrot.slane %v77, %v81
    %vm84 = vcmask 31744
    %v86 = vsel %vm84, %v60, 0
    %v89 = vsel %vm84, %v61, 0
    %v92 = vsel %vm84, %v62, 0
    %v95 = vsel %vm84, %v63, 0
    %v98 = vsel %vm84, %v64, 0
    %v101 = vsel %vm84, %v65, 0
    %v104 = vsel %vm84, %v66, 0
    %v107 = vsel %vm84, %v67, 0
    %v110 = vsel %vm84, %v68, 0
    %v113 = vsel %vm84, %v69, 0
    %v116 = vsel %vm84, %v70, 0
    %v119 = vsel %vm84, %v71, 0
    %v122 = vsel %vm84, %v72, 0
    %v125 = vsel %vm84, %v73, 0
    %v128 = vsel %vm84, %v74, 0
    %v131 = vsel %vm84, %v75, 0
    %vm133 = vcmask 1043456
    %v135 = vsel %vm133, %v76, 0
    %137 = vmatprep.subr.mxu0 0.0
    %138 = vmatpush1.msra.mxu0 %v135
    %139 = vmatprep.subr.mxu0 0.0
    %140 = vmatpush1.msra.mxu0 0.0
    %141 = vmatprep.subr.mxu0 0.0
    %142 = vmatpush1.msra.mxu0 0.0
    %143 = vmatprep.subr.mxu0 0.0
    %144 = vmatpush1.msra.mxu0 0.0
    %145 = vmatprep.subr.mxu0 0.0
    %146 = vmatpush1.msra.mxu0 0.0
    %147 = vmatprep.subr.mxu0 0.0
    %148 = vmatpush1.msra.mxu0 0.0
    %149 = vmatprep.subr.mxu0 0.0
    %150 = vmatpush1.msra.mxu0 0.0
    %151 = vmatprep.subr.mxu0 0.0
    %152 = vmatpush1.msra.mxu0 0.0
    %153 = vmatprep.subr.mxu0 0.0
    %154 = vmatpush1.msra.mxu0 0.0
    %155 = vmatprep.subr.mxu0 0.0
    %156 = vmatpush1.msra.mxu0 0.0
    %157 = vmatprep.subr.mxu0 0.0
    %158 = vmatpush1.msra.mxu0 0.0
    %159 = vmatprep.subr.mxu0 0.0
    %160 = vmatpush1.msra.mxu0 0.0
    %161 = vmatprep.subr.mxu0 0.0
    %162 = vmatpush1.msra.mxu0 0.0
    %163 = vmatprep.subr.mxu0 0.0
    %164 = vmatpush1.msra.mxu0 0.0
    %165 = vmatprep.subr.mxu0 0.0
    %166 = vmatpush1.msra.mxu0 0.0
    %167 = vmatprep.subr.mxu0 0.0
    %168 = vmatpush1.msra.mxu0 0.0
    %169 = vmatprep.subr.mxu0 0.0
    %170 = vmatpush1.msra.mxu0 0.0
    %171 = vmatprep.subr.mxu0 0.0
    %172 = vmatpush1.msra.mxu0 0.0
    %173 = vmatprep.subr.mxu0 0.0
    %174 = vmatpush1.msra.mxu0 0.0
    %175 = vmatprep.subr.mxu0 0.0
    %176 = vmatpush1.msra.mxu0 0.0
    %177 = vmatprep.subr.mxu0 0.0
    %178 = vmatpush1.msra.mxu0 0.0
    %179 = vmatprep.subr.mxu0 0.0
    %180 = vmatpush1.msra.mxu0 0.0
    %181 = vmatprep.subr.mxu0 0.0
    %182 = vmatpush1.msra.mxu0 0.0
    %183 = vmatprep.subr.mxu0 0.0
    %184 = vmatpush1.msra.mxu0 0.0
    %185 = vmatprep.subr.mxu0 0.0
    %186 = vmatpush1.msra.mxu0 0.0
    %187 = vmatprep.subr.mxu0 0.0
    %188 = vmatpush1.msra.mxu0 0.0
    %189 = vmatprep.subr.mxu0 0.0
    %190 = vmatpush1.msra.mxu0 0.0
    %191 = vmatprep.subr.mxu0 0.0
    %192 = vmatpush1.msra.mxu0 0.0
    %193 = vmatprep.subr.mxu0 0.0
    %194 = vmatpush1.msra.mxu0 0.0
    %195 = vmatprep.subr.mxu0 0.0
    %196 = vmatpush1.msra.mxu0 0.0
    %197 = vmatprep.subr.mxu0 0.0
    %198 = vmatpush1.msra.mxu0 0.0
    %199 = vmatprep.subr.mxu0 0.0
    %200 = vmatpush1.msra.mxu0 0.0
    %201 = vmatprep.mubr.f32.mxu0 0.0
    %202 = vmatmul.mubr.f32.gmra.mrb[0].mxu0 %v86
    %v203 = vpop.f32.mrb[0].mxu0
    %v204 = vadd.f32 %v82, %v203
    %v205 = vpop.f32.mrb[0].mxu0
    %206 = vmatprep.mubr.f32.mxu0 0.0
    %207 = vmatmul.mubr.f32.gmra.mrb[0].mxu0 %v89
    %v208 = vpop.f32.mrb[0].mxu0
    %v209 = vadd.f32 %v82, %v208
    %v210 = vpop.f32.mrb[0].mxu0
    %211 = vmatprep.mubr.f32.mxu0 0.0
    %212 = vmatmul.mubr.f32.gmra.mrb[0].mxu0 %v92
    %v213 = vpop.f32.mrb[0].mxu0
    %v214 = vadd.f32 %v82, %v213
    %v215 = vpop.f32.mrb[0].mxu0
    %216 = vmatprep.mubr.f32.mxu0 0.0
    %217 = vmatmul.mubr.f32.gmra.mrb[0].mxu0 %v95
    %v218 = vpop.f32.mrb[0].mxu0
    %v219 = vadd.f32 %v82, %v218
    %v220 = vpop.f32.mrb[0].mxu0
    %221 = vmatprep.mubr.f32.mxu0 0.0
    %222 = vmatmul.mubr.f32.gmra.mrb[0].mxu0 %v98
    %v223 = vpop.f32.mrb[0].mxu0
    %v224 = vadd.f32 %v82, %v223
    %v225 = vpop.f32.mrb[0].mxu0
    %226 = vmatprep.mubr.f32.mxu0 0.0
    %227 = vmatmul.mubr.f32.gmra.mrb[0].mxu0 %v101
    %v228 = vpop.f32.mrb[0].mxu0
    %v229 = vadd.f32 %v82, %v228
    %v230 = vpop.f32.mrb[0].mxu0
    %231 = vmatprep.mubr.f32.mxu0 0.0
    %232 = vmatmul.mubr.f32.gmra.mrb[0].mxu0 %v104
    %v233 = vpop.f32.mrb[0].mxu0
    %v234 = vadd.f32 %v82, %v233
    %v235 = vpop.f32.mrb[0].mxu0
    %236 = vmatprep.mubr.f32.mxu0 0.0
    %237 = vmatmul.mubr.f32.gmra.mrb[0].mxu0 %v107
    %v238 = vpop.f32.mrb[0].mxu0
    %v239 = vadd.f32 %v82, %v238
    %v240 = vpop.f32.mrb[0].mxu0
    %241 = vmatprep.mubr.f32.mxu0 0.0
    %242 = vmatmul.mubr.f32.gmra.mrb[0].mxu0 %v110
    %v243 = vpop.f32.mrb[0].mxu0
    %v244 = vadd.f32 %v82, %v243
    %v245 = vpop.f32.mrb[0].mxu0
    %246 = vmatprep.mubr.f32.mxu0 0.0
    %247 = vmatmul.mubr.f32.gmra.mrb[0].mxu0 %v113
    %v248 = vpop.f32.mrb[0].mxu0
    %v249 = vadd.f32 %v82, %v248
    %v250 = vpop.f32.mrb[0].mxu0
    %251 = vmatprep.mubr.f32.mxu0 0.0
    %252 = vmatmul.mubr.f32.gmra.mrb[0].mxu0 %v116
    %v253 = vpop.f32.mrb[0].mxu0
    %v254 = vadd.f32 %v82, %v253
    %v255 = vpop.f32.mrb[0].mxu0
    %256 = vmatprep.mubr.f32.mxu0 0.0
    %257 = vmatmul.mubr.f32.gmra.mrb[0].mxu0 %v119
    %v258 = vpop.f32.mrb[0].mxu0
    %v259 = vadd.f32 %v82, %v258
    %v260 = vpop.f32.mrb[0].mxu0
    %261 = vmatprep.mubr.f32.mxu0 0.0
    %262 = vmatmul.mubr.f32.gmra.mrb[0].mxu0 %v122
    %v263 = vpop.f32.mrb[0].mxu0
    %v264 = vadd.f32 %v82, %v263
    %v265 = vpop.f32.mrb[0].mxu0
    %266 = vmatprep.mubr.f32.mxu0 0.0
    %267 = vmatmul.mubr.f32.gmra.mrb[0].mxu0 %v125
    %v268 = vpop.f32.mrb[0].mxu0
    %v269 = vadd.f32 %v82, %v268
    %v270 = vpop.f32.mrb[0].mxu0
    %271 = vmatprep.mubr.f32.mxu0 0.0
    %272 = vmatmul.mubr.f32.gmra.mrb[0].mxu0 %v128
    %v273 = vpop.f32.mrb[0].mxu0
    %v274 = vadd.f32 %v82, %v273
    %v275 = vpop.f32.mrb[0].mxu0
    %276 = vmatprep.mubr.f32.mxu0 0.0
    %277 = vmatmul.mubr.f32.gmra.mrb[0].mxu0 %v131
    %v278 = vpop.f32.mrb[0].mxu0
    %v279 = vadd.f32 %v82, %v278
    %v280 = vpop.f32.mrb[0].mxu0
    %281 = vdwg.mxu0
    %v282 = vmax.f32 %v204, 0.0
    %v283 = vmax.f32 %v209, 0.0
    %v284 = vmax.f32 %v214, 0.0
    %v285 = vmax.f32 %v219, 0.0
    %v286 = vmax.f32 %v224, 0.0
    %v287 = vmax.f32 %v229, 0.0
    %v288 = vmax.f32 %v234, 0.0
    %v289 = vmax.f32 %v239, 0.0
    %v290 = vmax.f32 %v244, 0.0
    %v291 = vmax.f32 %v249, 0.0
    %v292 = vmax.f32 %v254, 0.0
    %v293 = vmax.f32 %v259, 0.0
    %v294 = vmax.f32 %v264, 0.0
    %v295 = vmax.f32 %v269, 0.0
    %v296 = vmax.f32 %v274, 0.0
    %v297 = vmax.f32 %v279, 0.0
    %v298 = vld [vmem:[%s8] sm:$0xff]
    %v299 = vld [vmem:[%s8 + $0x8] sm:$0xff]
    %v300 = vld [vmem:[%s9] sm:$0x1]
    %v302 = vlaneseq
    %v303 = vshrl.u32 %v302, 7
    %v304 = vsub.s32 0, %v303
    %v305 = vrot.slane %v300, %v304
    %vm307 = vcmask 130048
    %v309 = vsel %vm307, %v282, 0
    %v312 = vsel %vm307, %v283, 0
    %v315 = vsel %vm307, %v284, 0
    %v318 = vsel %vm307, %v285, 0
    %v321 = vsel %vm307, %v286, 0
    %v324 = vsel %vm307, %v287, 0
    %v327 = vsel %vm307, %v288, 0
    %v330 = vsel %vm307, %v289, 0
    %v333 = vsel %vm307, %v290, 0
    %v336 = vsel %vm307, %v291, 0
    %v339 = vsel %vm307, %v292, 0
    %v342 = vsel %vm307, %v293, 0
    %v345 = vsel %vm307, %v294, 0
    %v348 = vsel %vm307, %v295, 0
    %v351 = vsel %vm307, %v296, 0
    %v354 = vsel %vm307, %v297, 0
    %356 = vmatprep.subr.mxu0 0.0
    %357 = vmatpush1.msra.mxu0 %v298
    %358 = vmatprep.subr.mxu0 0.0
    %359 = vmatpush1.msra.mxu0 %v299
    %360 = vmatprep.subr.mxu0 0.0
    %361 = vmatpush1.msra.mxu0 0.0
    %362 = vmatprep.subr.mxu0 0.0
    %363 = vmatpush1.msra.mxu0 0.0
    %364 = vmatprep.subr.mxu0 0.0
    %365 = vmatpush1.msra.mxu0 0.0
    %366 = vmatprep.subr.mxu0 0.0
    %367 = vmatpush1.msra.mxu0 0.0
    %368 = vmatprep.subr.mxu0 0.0
    %369 = vmatpush1.msra.mxu0 0.0
    %370 = vmatprep.subr.mxu0 0.0
    %371 = vmatpush1.msra.mxu0 0.0
    %372 = vmatprep.subr.mxu0 0.0
    %373 = vmatpush1.msra.mxu0 0.0
    %374 = vmatprep.subr.mxu0 0.0
    %375 = vmatpush1.msra.mxu0 0.0
    %376 = vmatprep.subr.mxu0 0.0
    %377 = vmatpush1.msra.mxu0 0.0
    %378 = vmatprep.subr.mxu0 0.0
    %379 = vmatpush1.msra.mxu0 0.0
    %380 = vmatprep.subr.mxu0 0.0
    %381 = vmatpush1.msra.mxu0 0.0
    %382 = vmatprep.subr.mxu0 0.0
    %383 = vmatpush1.msra.mxu0 0.0
    %384 = vmatprep.subr.mxu0 0.0
    %385 = vmatpush1.msra.mxu0 0.0
    %386 = vmatprep.subr.mxu0 0.0
    %387 = vmatpush1.msra.mxu0 0.0
    %388 = vmatprep.subr.mxu0 0.0
    %389 = vmatpush1.msra.mxu0 0.0
    %390 = vmatprep.subr.mxu0 0.0
    %391 = vmatpush1.msra.mxu0 0.0
    %392 = vmatprep.subr.mxu0 0.0
    %393 = vmatpush1.msra.mxu0 0.0
    %394 = vmatprep.subr.mxu0 0.0
    %395 = vmatpush1.msra.mxu0 0.0
    %396 = vmatprep.subr.mxu0 0.0
    %397 = vmatpush1.msra.mxu0 0.0
    %398 = vmatprep.subr.mxu0 0.0
    %399 = vmatpush1.msra.mxu0 0.0
    %400 = vmatprep.subr.mxu0 0.0
    %401 = vmatpush1.msra.mxu0 0.0
    %402 = vmatprep.subr.mxu0 0.0
    %403 = vmatpush1.msra.mxu0 0.0
    %404 = vmatprep.subr.mxu0 0.0
    %405 = vmatpush1.msra.mxu0 0.0
    %406 = vmatprep.subr.mxu0 0.0
    %407 = vmatpush1.msra.mxu0 0.0
    %408 = vmatprep.subr.mxu0 0.0
    %409 = vmatpush1.msra.mxu0 0.0
    %410 = vmatprep.subr.mxu0 0.0
    %411 = vmatpush1.msra.mxu0 0.0
    %412 = vmatprep.subr.mxu0 0.0
    %413 = vmatpush1.msra.mxu0 0.0
    %414 = vmatprep.subr.mxu0 0.0
    %415 = vmatpush1.msra.mxu0 0.0
    %416 = vmatprep.subr.mxu0 0.0
    %417 = vmatpush1.msra.mxu0 0.0
    %418 = vmatprep.subr.mxu0 0.0
    %419 = vmatpush1.msra.mxu0 0.0
    %420 = vmatprep.mubr.f32.mxu0 0.0
    %421 = vmatmul.mubr.f32.gmra.mrb[0].mxu0 %v309
    %v422 = vpop.f32.mrb[0].mxu0
    %v423 = vadd.f32 %v305, %v422
    %v424 = vpop.f32.mrb[0].mxu0
    %425 = vmatprep.mubr.f32.mxu0 0.0
    %426 = vmatmul.mubr.f32.gmra.mrb[0].mxu0 %v312
    %v427 = vpop.f32.mrb[0].mxu0
    %v428 = vadd.f32 %v305, %v427
    %v429 = vpop.f32.mrb[0].mxu0
    %430 = vmatprep.mubr.f32.mxu0 0.0
    %431 = vmatmul.mubr.f32.gmra.mrb[0].mxu0 %v315
    %v432 = vpop.f32.mrb[0].mxu0
    %v433 = vadd.f32 %v305, %v432
    %v434 = vpop.f32.mrb[0].mxu0
    %435 = vmatprep.mubr.f32.mxu0 0.0
    %436 = vmatmul.mubr.f32.gmra.mrb[0].mxu0 %v318
    %v437 = vpop.f32.mrb[0].mxu0
    %v438 = vadd.f32 %v305, %v437
    %v439 = vpop.f32.mrb[0].mxu0
    %440 = vmatprep.mubr.f32.mxu0 0.0
    %441 = vmatmul.mubr.f32.gmra.mrb[0].mxu0 %v321
    %v442 = vpop.f32.mrb[0].mxu0
    %v443 = vadd.f32 %v305, %v442
    %v444 = vpop.f32.mrb[0].mxu0
    %445 = vmatprep.mubr.f32.mxu0 0.0
    %446 = vmatmul.mubr.f32.gmra.mrb[0].mxu0 %v324
    %v447 = vpop.f32.mrb[0].mxu0
    %v448 = vadd.f32 %v305, %v447
    %v449 = vpop.f32.mrb[0].mxu0
    %450 = vmatprep.mubr.f32.mxu0 0.0
    %451 = vmatmul.mubr.f32.gmra.mrb[0].mxu0 %v327
    %v452 = vpop.f32.mrb[0].mxu0
    %v453 = vadd.f32 %v305, %v452
    %v454 = vpop.f32.mrb[0].mxu0
    %455 = vmatprep.mubr.f32.mxu0 0.0
    %456 = vmatmul.mubr.f32.gmra.mrb[0].mxu0 %v330
    %v457 = vpop.f32.mrb[0].mxu0
    %v458 = vadd.f32 %v305, %v457
    %v459 = vpop.f32.mrb[0].mxu0
    %460 = vmatprep.mubr.f32.mxu0 0.0
    %461 = vmatmul.mubr.f32.gmra.mrb[0].mxu0 %v333
    %v462 = vpop.f32.mrb[0].mxu0
    %v463 = vadd.f32 %v305, %v462
    %v464 = vpop.f32.mrb[0].mxu0
    %465 = vmatprep.mubr.f32.mxu0 0.0
    %466 = vmatmul.mubr.f32.gmra.mrb[0].mxu0 %v336
    %v467 = vpop.f32.mrb[0].mxu0
    %v468 = vadd.f32 %v305, %v467
    %v469 = vpop.f32.mrb[0].mxu0
    %470 = vmatprep.mubr.f32.mxu0 0.0
    %471 = vmatmul.mubr.f32.gmra.mrb[0].mxu0 %v339
    %v472 = vpop.f32.mrb[0].mxu0
    %v473 = vadd.f32 %v305, %v472
    %v474 = vpop.f32.mrb[0].mxu0
    %475 = vmatprep.mubr.f32.mxu0 0.0
    %476 = vmatmul.mubr.f32.gmra.mrb[0].mxu0 %v342
    %v477 = vpop.f32.mrb[0].mxu0
    %v478 = vadd.f32 %v305, %v477
    %v479 = vpop.f32.mrb[0].mxu0
    %480 = vmatprep.mubr.f32.mxu0 0.0
    %481 = vmatmul.mubr.f32.gmra.mrb[0].mxu0 %v345
    %v482 = vpop.f32.mrb[0].mxu0
    %v483 = vadd.f32 %v305, %v482
    %v484 = vpop.f32.mrb[0].mxu0
    %485 = vmatprep.mubr.f32.mxu0 0.0
    %486 = vmatmul.mubr.f32.gmra.mrb[0].mxu0 %v348
    %v487 = vpop.f32.mrb[0].mxu0
    %v488 = vadd.f32 %v305, %v487
    %v489 = vpop.f32.mrb[0].mxu0
    %490 = vmatprep.mubr.f32.mxu0 0.0
    %491 = vmatmul.mubr.f32.gmra.mrb[0].mxu0 %v351
    %v492 = vpop.f32.mrb[0].mxu0
    %v493 = vadd.f32 %v305, %v492
    %v494 = vpop.f32.mrb[0].mxu0
    %495 = vmatprep.mubr.f32.mxu0 0.0
    %496 = vmatmul.mubr.f32.gmra.mrb[0].mxu0 %v354
    %v497 = vpop.f32.mrb[0].mxu0
    %v498 = vadd.f32 %v305, %v497
    %v499 = vpop.f32.mrb[0].mxu0
    %500 = vdwg.mxu0
    %v501 = vmax.f32 %v423, 0.0
    %v502 = vmax.f32 %v428, 0.0
    %v503 = vmax.f32 %v433, 0.0
    %v504 = vmax.f32 %v438, 0.0
    %v505 = vmax.f32 %v443, 0.0
    %v506 = vmax.f32 %v448, 0.0
    %v507 = vmax.f32 %v453, 0.0
    %v508 = vmax.f32 %v458, 0.0
    %v509 = vmax.f32 %v463, 0.0
    %v510 = vmax.f32 %v468, 0.0
    %v511 = vmax.f32 %v473, 0.0
    %v512 = vmax.f32 %v478, 0.0
    %v513 = vmax.f32 %v483, 0.0
    %v514 = vmax.f32 %v488, 0.0
    %v515 = vmax.f32 %v493, 0.0
    %v516 = vmax.f32 %v498, 0.0
    %v517 = vld [vmem:[%s10] sm:$0xff]
    %v518 = vld [vmem:[%s10 + $0x8] sm:$0xff]
    %v519 = vld [vmem:[%s10 + $0x10] sm:$0xff]
    %v520 = vld [vmem:[%s10 + $0x18] sm:$0xff]
    %v521 = vld [vmem:[%s10 + $0x20] sm:$0xff]
    %v522 = vld [vmem:[%s10 + $0x28] sm:$0xff]
    %v523 = vld [vmem:[%s10 + $0x30] sm:$0xff]
    %v524 = vld [vmem:[%s10 + $0x38] sm:$0xff]
    %v525 = vld [vmem:[%s11] sm:$0x3]
    %v527 = vlaneseq
    %v528 = vshrl.u32 %v527, 7
    %v529 = vsub.s32 0, %v528
    %v530 = vrot.slane %v525, %v529
    %v531 = vlaneseq
    %v532 = vshrl.u32 %v531, 7
    %v533 = vsub.s32 1, %v532
    %v534 = vrot.slane %v525, %v533
    %vm537 = vcmask 261120
    %v539 = vsel %vm537, %v501, 0
    %v542 = vsel %vm537, %v502, 0
    %v545 = vsel %vm537, %v503, 0
    %v548 = vsel %vm537, %v504, 0
    %v551 = vsel %vm537, %v505, 0
    %v554 = vsel %vm537, %v506, 0
    %v557 = vsel %vm537, %v507, 0
    %v560 = vsel %vm537, %v508, 0
    %v563 = vsel %vm537, %v509, 0
    %v566 = vsel %vm537, %v510, 0
    %v569 = vsel %vm537, %v511, 0
    %v572 = vsel %vm537, %v512, 0
    %v575 = vsel %vm537, %v513, 0
    %v578 = vsel %vm537, %v514, 0
    %v581 = vsel %vm537, %v515, 0
    %v584 = vsel %vm537, %v516, 0
    %586 = vmatprep.subr.mxu0 %v518
    %587 = vmatpush1.msra.mxu0 %v517
    %588 = vmatprep.subr.mxu0 %v520
    %589 = vmatpush1.msra.mxu0 %v519
    %590 = vmatprep.subr.mxu0 %v522
    %591 = vmatpush1.msra.mxu0 %v521
    %592 = vmatprep.subr.mxu0 %v524
    %593 = vmatpush1.msra.mxu0 %v523
    %594 = vmatprep.subr.mxu0 0.0
    %595 = vmatpush1.msra.mxu0 0.0
    %596 = vmatprep.subr.mxu0 0.0
    %597 = vmatpush1.msra.mxu0 0.0
    %598 = vmatprep.subr.mxu0 0.0
    %599 = vmatpush1.msra.mxu0 0.0
    %600 = vmatprep.subr.mxu0 0.0
    %601 = vmatpush1.msra.mxu0 0.0
    %602 = vmatprep.subr.mxu0 0.0
    %603 = vmatpush1.msra.mxu0 0.0
    %604 = vmatprep.subr.mxu0 0.0
    %605 = vmatpush1.msra.mxu0 0.0
    %606 = vmatprep.subr.mxu0 0.0
    %607 = vmatpush1.msra.mxu0 0.0
    %608 = vmatprep.subr.mxu0 0.0
    %609 = vmatpush1.msra.mxu0 0.0
    %610 = vmatprep.subr.mxu0 0.0
    %611 = vmatpush1.msra.mxu0 0.0
    %612 = vmatprep.subr.mxu0 0.0
    %613 = vmatpush1.msra.mxu0 0.0
    %614 = vmatprep.subr.mxu0 0.0
    %615 = vmatpush1.msra.mxu0 0.0
    %616 = vmatprep.subr.mxu0 0.0
    %617 = vmatpush1.msra.mxu0 0.0
    %618 = vmatprep.subr.mxu0 0.0
    %619 = vmatpush1.msra.mxu0 0.0
    %620 = vmatprep.subr.mxu0 0.0
    %621 = vmatpush1.msra.mxu0 0.0
    %622 = vmatprep.subr.mxu0 0.0
    %623 = vmatpush1.msra.mxu0 0.0
    %624 = vmatprep.subr.mxu0 0.0
    %625 = vmatpush1.msra.mxu0 0.0
    %626 = vmatprep.subr.mxu0 0.0
    %627 = vmatpush1.msra.mxu0 0.0
    %628 = vmatprep.subr.mxu0 0.0
    %629 = vmatpush1.msra.mxu0 0.0
    %630 = vmatprep.subr.mxu0 0.0
    %631 = vmatpush1.msra.mxu0 0.0
    %632 = vmatprep.subr.mxu0 0.0
    %633 = vmatpush1.msra.mxu0 0.0
    %634 = vmatprep.subr.mxu0 0.0
    %635 = vmatpush1.msra.mxu0 0.0
    %636 = vmatprep.subr.mxu0 0.0
    %637 = vmatpush1.msra.mxu0 0.0
    %638 = vmatprep.subr.mxu0 0.0
    %639 = vmatpush1.msra.mxu0 0.0
    %640 = vmatprep.subr.mxu0 0.0
    %641 = vmatpush1.msra.mxu0 0.0
    %642 = vmatprep.subr.mxu0 0.0
    %643 = vmatpush1.msra.mxu0 0.0
    %644 = vmatprep.subr.mxu0 0.0
    %645 = vmatpush1.msra.mxu0 0.0
    %646 = vmatprep.subr.mxu0 0.0
    %647 = vmatpush1.msra.mxu0 0.0
    %648 = vmatprep.subr.mxu0 0.0
    %649 = vmatpush1.msra.mxu0 0.0
    %650 = vmatprep.mubr.f32.mxu0 0.0
    %651 = vmatmul.mubr.f32.gmra.mrb[0].mxu0 %v539
    %v652 = vpop.f32.mrb[0].mxu0
    %v653 = vadd.f32 %v530, %v652
    %v654 = vpop.f32.mrb[0].mxu0
    %v655 = vadd.f32 %v534, %v654
    %656 = vmatprep.mubr.f32.mxu0 0.0
    %657 = vmatmul.mubr.f32.gmra.mrb[0].mxu0 %v542
    %v658 = vpop.f32.mrb[0].mxu0
    %v659 = vadd.f32 %v530, %v658
    %v660 = vpop.f32.mrb[0].mxu0
    %v661 = vadd.f32 %v534, %v660
    %662 = vmatprep.mubr.f32.mxu0 0.0
    %663 = vmatmul.mubr.f32.gmra.mrb[0].mxu0 %v545
    %v664 = vpop.f32.mrb[0].mxu0
    %v665 = vadd.f32 %v530, %v664
    %v666 = vpop.f32.mrb[0].mxu0
    %v667 = vadd.f32 %v534, %v666
    %668 = vmatprep.mubr.f32.mxu0 0.0
    %669 = vmatmul.mubr.f32.gmra.mrb[0].mxu0 %v548
    %v670 = vpop.f32.mrb[0].mxu0
    %v671 = vadd.f32 %v530, %v670
    %v672 = vpop.f32.mrb[0].mxu0
    %v673 = vadd.f32 %v534, %v672
    %674 = vmatprep.mubr.f32.mxu0 0.0
    %675 = vmatmul.mubr.f32.gmra.mrb[0].mxu0 %v551
    %v676 = vpop.f32.mrb[0].mxu0
    %v677 = vadd.f32 %v530, %v676
    %v678 = vpop.f32.mrb[0].mxu0
    %v679 = vadd.f32 %v534, %v678
    %680 = vmatprep.mubr.f32.mxu0 0.0
    %681 = vmatmul.mubr.f32.gmra.mrb[0].mxu0 %v554
    %v682 = vpop.f32.mrb[0].mxu0
    %v683 = vadd.f32 %v530, %v682
    %v684 = vpop.f32.mrb[0].mxu0
    %v685 = vadd.f32 %v534, %v684
    %686 = vmatprep.mubr.f32.mxu0 0.0
    %687 = vmatmul.mubr.f32.gmra.mrb[0].mxu0 %v557
    %v688 = vpop.f32.mrb[0].mxu0
    %v689 = vadd.f32 %v530, %v688
    %v690 = vpop.f32.mrb[0].mxu0
    %v691 = vadd.f32 %v534, %v690
    %692 = vmatprep.mubr.f32.mxu0 0.0
    %693 = vmatmul.mubr.f32.gmra.mrb[0].mxu0 %v560
    %v694 = vpop.f32.mrb[0].mxu0
    %v695 = vadd.f32 %v530, %v694
    %v696 = vpop.f32.mrb[0].mxu0
    %v697 = vadd.f32 %v534, %v696
    %698 = vmatprep.mubr.f32.mxu0 0.0
    %699 = vmatmul.mubr.f32.gmra.mrb[0].mxu0 %v563
    %v700 = vpop.f32.mrb[0].mxu0
    %v701 = vadd.f32 %v530, %v700
    %v702 = vpop.f32.mrb[0].mxu0
    %v703 = vadd.f32 %v534, %v702
    %704 = vmatprep.mubr.f32.mxu0 0.0
    %705 = vmatmul.mubr.f32.gmra.mrb[0].mxu0 %v566
    %v706 = vpop.f32.mrb[0].mxu0
    %v707 = vadd.f32 %v530, %v706
    %v708 = vpop.f32.mrb[0].mxu0
    %v709 = vadd.f32 %v534, %v708
    %710 = vmatprep.mubr.f32.mxu0 0.0
    %711 = vmatmul.mubr.f32.gmra.mrb[0].mxu0 %v569
    %v712 = vpop.f32.mrb[0].mxu0
    %v713 = vadd.f32 %v530, %v712
    %v714 = vpop.f32.mrb[0].mxu0
    %v715 = vadd.f32 %v534, %v714
    %716 = vmatprep.mubr.f32.mxu0 0.0
    %717 = vmatmul.mubr.f32.gmra.mrb[0].mxu0 %v572
    %v718 = vpop.f32.mrb[0].mxu0
    %v719 = vadd.f32 %v530, %v718
    %v720 = vpop.f32.mrb[0].mxu0
    %v721 = vadd.f32 %v534, %v720
    %722 = vmatprep.mubr.f32.mxu0 0.0
    %723 = vmatmul.mubr.f32.gmra.mrb[0].mxu0 %v575
    %v724 = vpop.f32.mrb[0].mxu0
    %v725 = vadd.f32 %v530, %v724
    %v726 = vpop.f32.mrb[0].mxu0
    %v727 = vadd.f32 %v534, %v726
    %728 = vmatprep.mubr.f32.mxu0 0.0
    %729 = vmatmul.mubr.f32.gmra.mrb[0].mxu0 %v578
    %v730 = vpop.f32.mrb[0].mxu0
    %v731 = vadd.f32 %v530, %v730
    %v732 = vpop.f32.mrb[0].mxu0
    %v733 = vadd.f32 %v534, %v732
    %734 = vmatprep.mubr.f32.mxu0 0.0
    %735 = vmatmul.mubr.f32.gmra.mrb[0].mxu0 %v581
    %v736 = vpop.f32.mrb[0].mxu0
    %v737 = vadd.f32 %v530, %v736
    %v738 = vpop.f32.mrb[0].mxu0
    %v739 = vadd.f32 %v534, %v738
    %740 = vmatprep.mubr.f32.mxu0 0.0
    %741 = vmatmul.mubr.f32.gmra.mrb[0].mxu0 %v584
    %v742 = vpop.f32.mrb[0].mxu0
    %v743 = vadd.f32 %v530, %v742
    %v744 = vpop.f32.mrb[0].mxu0
    %v745 = vadd.f32 %v534, %v744
    %746 = vdwg.mxu0
    %v747 = vld [vmem:[%s1] sm:$0xff]
    %v748 = vld [vmem:[%s1 + $0x8] sm:$0xff]
    %v749 = vld [vmem:[%s1 + $0x10] sm:$0xff]
    %v750 = vld [vmem:[%s1 + $0x18] sm:$0xff]
    %v751 = vld [vmem:[%s1 + $0x20] sm:$0xff]
    %v752 = vld [vmem:[%s1 + $0x28] sm:$0xff]
    %v753 = vld [vmem:[%s1 + $0x30] sm:$0xff]
    %v754 = vld [vmem:[%s1 + $0x38] sm:$0xff]
    %v755 = vld [vmem:[%s1 + $0x40] sm:$0xff]
    %v756 = vld [vmem:[%s1 + $0x48] sm:$0xff]
    %v757 = vld [vmem:[%s1 + $0x50] sm:$0xff]
    %v758 = vld [vmem:[%s1 + $0x58] sm:$0xff]
    %v759 = vld [vmem:[%s1 + $0x60] sm:$0xff]
    %v760 = vld [vmem:[%s1 + $0x68] sm:$0xff]
    %v761 = vld [vmem:[%s1 + $0x70] sm:$0xff]
    %v762 = vld [vmem:[%s1 + $0x78] sm:$0xff]
    %v763 = vld [vmem:[%s2] sm:$0xff]
    %v764 = vld [vmem:[%s2 + $0x8] sm:$0xff]
    %v765 = vld [vmem:[%s2 + $0x10] sm:$0xff]
    %v766 = vld [vmem:[%s2 + $0x18] sm:$0xff]
    %v767 = vld [vmem:[%s4] sm:$0xff]
    %v768 = vld [vmem:[%s4 + $0x8] sm:$0xff]
    %v769 = vld [vmem:[%s4 + $0x10] sm:$0xff]
    %v770 = vld [vmem:[%s4 + $0x18] sm:$0xff]
    %v771 = vld [vmem:[%s5] sm:$0xff]
    %v772 = vld [vmem:[%s5 + $0x8] sm:$0xff]
    %v773 = vld [vmem:[%s5 + $0x10] sm:$0xff]
    %v774 = vld [vmem:[%s5 + $0x18] sm:$0xff]
    %v775 = vld [vmem:[%s5 + $0x20] sm:$0xff]
    %v776 = vld [vmem:[%s5 + $0x28] sm:$0xff]
    %v777 = vld [vmem:[%s5 + $0x30] sm:$0xff]
    %v778 = vld [vmem:[%s5 + $0x38] sm:$0xff]
    %v779 = vld [vmem:[%s5 + $0x40] sm:$0xff]
    %v780 = vld [vmem:[%s5 + $0x48] sm:$0xff]
    %v781 = vld [vmem:[%s5 + $0x50] sm:$0xff]
    %v782 = vld [vmem:[%s5 + $0x58] sm:$0xff]
    %v783 = vld [vmem:[%s5 + $0x60] sm:$0xff]
    %v784 = vld [vmem:[%s5 + $0x68] sm:$0xff]
    %v785 = vld [vmem:[%s5 + $0x70] sm:$0xff]
    %v786 = vld [vmem:[%s5 + $0x78] sm:$0xff]
    %v787 = vld [vmem:[%s5 + $0x80] sm:$0xff]
    %v788 = vld [vmem:[%s5 + $0x88] sm:$0xff]
    %v789 = vld [vmem:[%s5 + $0x90] sm:$0xff]
    %v790 = vld [vmem:[%s5 + $0x98] sm:$0xff]
    %v791 = vld [vmem:[%s5 + $0xa0] sm:$0xff]
    %v792 = vld [vmem:[%s5 + $0xa8] sm:$0xff]
    %v793 = vld [vmem:[%s5 + $0xb0] sm:$0xff]
    %v794 = vld [vmem:[%s5 + $0xb8] sm:$0xff]
    %v795 = vld [vmem:[%s5 + $0xc0] sm:$0xff]
    %v796 = vld [vmem:[%s5 + $0xc8] sm:$0xff]
    %v797 = vld [vmem:[%s5 + $0xd0] sm:$0xff]
    %v798 = vld [vmem:[%s5 + $0xd8] sm:$0xff]
    %v799 = vld [vmem:[%s5 + $0xe0] sm:$0xff]
    %v800 = vld [vmem:[%s5 + $0xe8] sm:$0xff]
    %v801 = vld [vmem:[%s5 + $0xf0] sm:$0xff]
    %v802 = vld [vmem:[%s5 + $0xf8] sm:$0xff]
    %v803 = vld [vmem:[%s14] sm:$0xff]
    %v804 = vld [vmem:[%s14 + $0x8] sm:$0xff]
    %v805 = vld [vmem:[%s15] sm:$0x1]
    %v807 = vlaneseq
    %v808 = vshrl.u32 %v807, 7
    %v809 = vsub.s32 0, %v808
    %v810 = vrot.slane %v805, %v809
    %v812 = vld [vmem:[%s0] sm:$0xff]
    %v813 = vld [vmem:[%s0 + $0x8] sm:$0xff]
    %v814 = vld [vmem:[%s0 + $0x10] sm:$0xff]
    %v815 = vld [vmem:[%s0 + $0x18] sm:$0xff]
    %v816 = vld [vmem:[%s12] sm:$0x1]
    %v817 = vld [vmem:[%s13] sm:$0x1]
    %v819 = vlaneseq
    %v820 = vshrl.u32 %v819, 7
    %v821 = vsub.s32 0, %v820
    %v822 = vrot.slane %v817, %v821
    %vm824 = vcmask 7168
    %v826 = vsel %vm824, %v812, 0
    %v829 = vsel %vm824, %v813, 0
    %v832 = vsel %vm824, %v814, 0
    %v835 = vsel %vm824, %v815, 0
    %vm837 = vcmask 1040384
    %v839 = vsel %vm837, %v816, 0
    %841 = vmatprep.subr.mxu0 0.0
    %842 = vmatpush1.msra.mxu0 %v839
    %843 = vmatprep.subr.mxu0 0.0
    %844 = vmatpush1.msra.mxu0 0.0
    %845 = vmatprep.subr.mxu0 0.0
    %846 = vmatpush1.msra.mxu0 0.0
    %847 = vmatprep.subr.mxu0 0.0
    %848 = vmatpush1.msra.mxu0 0.0
    %849 = vmatprep.subr.mxu0 0.0
    %850 = vmatpush1.msra.mxu0 0.0
    %851 = vmatprep.subr.mxu0 0.0
    %852 = vmatpush1.msra.mxu0 0.0
    %853 = vmatprep.subr.mxu0 0.0
    %854 = vmatpush1.msra.mxu0 0.0
    %855 = vmatprep.subr.mxu0 0.0
    %856 = vmatpush1.msra.mxu0 0.0
    %857 = vmatprep.subr.mxu0 0.0
    %858 = vmatpush1.msra.mxu0 0.0
    %859 = vmatprep.subr.mxu0 0.0
    %860 = vmatpush1.msra.mxu0 0.0
    %861 = vmatprep.subr.mxu0 0.0
    %862 = vmatpush1.msra.mxu0 0.0
    %863 = vmatprep.subr.mxu0 0.0
    %864 = vmatpush1.msra.mxu0 0.0
    %865 = vmatprep.subr.mxu0 0.0
    %866 = vmatpush1.msra.mxu0 0.0
    %867 = vmatprep.subr.mxu0 0.0
    %868 = vmatpush1.msra.mxu0 0.0
    %869 = vmatprep.subr.mxu0 0.0
    %870 = vmatpush1.msra.mxu0 0.0
    %871 = vmatprep.subr.mxu0 0.0
    %872 = vmatpush1.msra.mxu0 0.0
    %873 = vmatprep.subr.mxu0 0.0
    %874 = vmatpush1.msra.mxu0 0.0
    %875 = vmatprep.subr.mxu0 0.0
    %876 = vmatpush1.msra.mxu0 0.0
    %877 = vmatprep.subr.mxu0 0.0
    %878 = vmatpush1.msra.mxu0 0.0
    %879 = vmatprep.subr.mxu0 0.0
    %880 = vmatpush1.msra.mxu0 0.0
    %881 = vmatprep.subr.mxu0 0.0
    %882 = vmatpush1.msra.mxu0 0.0
    %883 = vmatprep.subr.mxu0 0.0
    %884 = vmatpush1.msra.mxu0 0.0
    %885 = vmatprep.subr.mxu0 0.0
    %886 = vmatpush1.msra.mxu0 0.0
    %887 = vmatprep.subr.mxu0 0.0
    %888 = vmatpush1.msra.mxu0 0.0
    %889 = vmatprep.subr.mxu0 0.0
    %890 = vmatpush1.msra.mxu0 0.0
    %891 = vmatprep.subr.mxu0 0.0
    %892 = vmatpush1.msra.mxu0 0.0
    %893 = vmatprep.subr.mxu0 0.0
    %894 = vmatpush1.msra.mxu0 0.0
    %895 = vmatprep.subr.mxu0 0.0
    %896 = vmatpush1.msra.mxu0 0.0
    %897 = vmatprep.subr.mxu0 0.0
    %898 = vmatpush1.msra.mxu0 0.0
    %899 = vmatprep.subr.mxu0 0.0
    %900 = vmatpush1.msra.mxu0 0.0
    %901 = vmatprep.subr.mxu0 0.0
    %902 = vmatpush1.msra.mxu0 0.0
    %903 = vmatprep.subr.mxu0 0.0
    %904 = vmatpush1.msra.mxu0 0.0
    %905 = vmatprep.mubr.f32.mxu0 0.0
    %906 = vmatmul.mubr.f32.gmra.mrb[0].mxu0 %v826
    %v907 = vpop.f32.mrb[0].mxu0
    %v908 = vadd.f32 %v822, %v907
    %v909 = vpop.f32.mrb[0].mxu0
    %910 = vmatprep.mubr.f32.mxu0 0.0
    %911 = vmatmul.mubr.f32.gmra.mrb[0].mxu0 %v829
    %v912 = vpop.f32.mrb[0].mxu0
    %v913 = vadd.f32 %v822, %v912
    %v914 = vpop.f32.mrb[0].mxu0
    %915 = vmatprep.mubr.f32.mxu0 0.0
    %916 = vmatmul.mubr.f32.gmra.mrb[0].mxu0 %v832
    %v917 = vpop.f32.mrb[0].mxu0
    %v918 = vadd.f32 %v822, %v917
    %v919 = vpop.f32.mrb[0].mxu0
    %920 = vmatprep.mubr.f32.mxu0 0.0
    %921 = vmatmul.mubr.f32.gmra.mrb[0].mxu0 %v835
    %v922 = vpop.f32.mrb[0].mxu0
    %v923 = vadd.f32 %v822, %v922
    %v924 = vpop.f32.mrb[0].mxu0
    %925 = vdwg.mxu0
    %v927 = vsel %vm537, %v747, 0
    %v930 = vsel %vm537, %v748, 0
    %v933 = vsel %vm537, %v749, 0
    %v936 = vsel %vm537, %v750, 0
    %v939 = vsel %vm537, %v751, 0
    %v942 = vsel %vm537, %v752, 0
    %v945 = vsel %vm537, %v753, 0
    %v948 = vsel %vm537, %v754, 0
    %v951 = vsel %vm537, %v755, 0
    %v954 = vsel %vm537, %v756, 0
    %v957 = vsel %vm537, %v757, 0
    %v960 = vsel %vm537, %v758, 0
    %v963 = vsel %vm537, %v759, 0
    %v966 = vsel %vm537, %v760, 0
    %v969 = vsel %vm537, %v761, 0
    %v972 = vsel %vm537, %v762, 0
    %974 = vmatprep.subr.mxu0 0.0
    %975 = vmatpush1.msra.mxu0 %v908
    %976 = vmatprep.subr.mxu0 0.0
    %977 = vmatpush1.msra.mxu0 %v913
    %978 = vmatprep.subr.mxu0 0.0
    %979 = vmatpush1.msra.mxu0 %v918
    %980 = vmatprep.subr.mxu0 0.0
    %981 = vmatpush1.msra.mxu0 %v923
    %982 = vmatprep.subr.mxu0 0.0
    %983 = vmatpush1.msra.mxu0 0.0
    %984 = vmatprep.subr.mxu0 0.0
    %985 = vmatpush1.msra.mxu0 0.0
    %986 = vmatprep.subr.mxu0 0.0
    %987 = vmatpush1.msra.mxu0 0.0
    %988 = vmatprep.subr.mxu0 0.0
    %989 = vmatpush1.msra.mxu0 0.0
    %990 = vmatprep.subr.mxu0 0.0
    %991 = vmatpush1.msra.mxu0 0.0
    %992 = vmatprep.subr.mxu0 0.0
    %993 = vmatpush1.msra.mxu0 0.0
    %994 = vmatprep.subr.mxu0 0.0
    %995 = vmatpush1.msra.mxu0 0.0
    %996 = vmatprep.subr.mxu0 0.0
    %997 = vmatpush1.msra.mxu0 0.0
    %998 = vmatprep.subr.mxu0 0.0
    %999 = vmatpush1.msra.mxu0 0.0
    %1000 = vmatprep.subr.mxu0 0.0
    %1001 = vmatpush1.msra.mxu0 0.0
    %1002 = vmatprep.subr.mxu0 0.0
    %1003 = vmatpush1.msra.mxu0 0.0
    %1004 = vmatprep.subr.mxu0 0.0
    %1005 = vmatpush1.msra.mxu0 0.0
    %1006 = vmatprep.subr.mxu0 0.0
    %1007 = vmatpush1.msra.mxu0 0.0
    %1008 = vmatprep.subr.mxu0 0.0
    %1009 = vmatpush1.msra.mxu0 0.0
    %1010 = vmatprep.subr.mxu0 0.0
    %1011 = vmatpush1.msra.mxu0 0.0
    %1012 = vmatprep.subr.mxu0 0.0
    %1013 = vmatpush1.msra.mxu0 0.0
    %1014 = vmatprep.subr.mxu0 0.0
    %1015 = vmatpush1.msra.mxu0 0.0
    %1016 = vmatprep.subr.mxu0 0.0
    %1017 = vmatpush1.msra.mxu0 0.0
    %1018 = vmatprep.subr.mxu0 0.0
    %1019 = vmatpush1.msra.mxu0 0.0
    %1020 = vmatprep.subr.mxu0 0.0
    %1021 = vmatpush1.msra.mxu0 0.0
    %1022 = vmatprep.subr.mxu0 0.0
    %1023 = vmatpush1.msra.mxu0 0.0
    %1024 = vmatprep.subr.mxu0 0.0
    %1025 = vmatpush1.msra.mxu0 0.0
    %1026 = vmatprep.subr.mxu0 0.0
    %1027 = vmatpush1.msra.mxu0 0.0
    %1028 = vmatprep.subr.mxu0 0.0
    %1029 = vmatpush1.msra.mxu0 0.0
    %1030 = vmatprep.subr.mxu0 0.0
    %1031 = vmatpush1.msra.mxu0 0.0
    %1032 = vmatprep.subr.mxu0 0.0
    %1033 = vmatpush1.msra.mxu0 0.0
    %1034 = vmatprep.subr.mxu0 0.0
    %1035 = vmatpush1.msra.mxu0 0.0
    %1036 = vmatprep.subr.mxu0 0.0
    %1037 = vmatpush1.msra.mxu0 0.0
    %1038 = vmatprep.mubr.f32.mxu0 0.0
    %1039 = vmatmul.mubr.f32.gmra.mrb[0].mxu0 %v927
    %v1040 = vpop.f32.mrb[0].mxu0
    %v1041 = vadd.f32 0.0, %v1040
    %v1042 = vpop.f32.mrb[0].mxu0
    %1043 = vmatprep.mubr.f32.mxu0 0.0
    %1044 = vmatmul.mubr.f32.gmra.mrb[0].mxu0 %v930
    %v1045 = vpop.f32.mrb[0].mxu0
    %v1046 = vadd.f32 0.0, %v1045
    %v1047 = vpop.f32.mrb[0].mxu0
    %1048 = vmatprep.mubr.f32.mxu0 0.0
    %1049 = vmatmul.mubr.f32.gmra.mrb[0].mxu0 %v933
    %v1050 = vpop.f32.mrb[0].mxu0
    %v1051 = vadd.f32 0.0, %v1050
    %v1052 = vpop.f32.mrb[0].mxu0
    %1053 = vmatprep.mubr.f32.mxu0 0.0
    %1054 = vmatmul.mubr.f32.gmra.mrb[0].mxu0 %v936
    %v1055 = vpop.f32.mrb[0].mxu0
    %v1056 = vadd.f32 0.0, %v1055
    %v1057 = vpop.f32.mrb[0].mxu0
    %1058 = vmatprep.mubr.f32.mxu0 0.0
    %1059 = vmatmul.mubr.f32.gmra.mrb[0].mxu0 %v939
    %v1060 = vpop.f32.mrb[0].mxu0
    %v1061 = vadd.f32 0.0, %v1060
    %v1062 = vpop.f32.mrb[0].mxu0
    %1063 = vmatprep.mubr.f32.mxu0 0.0
    %1064 = vmatmul.mubr.f32.gmra.mrb[0].mxu0 %v942
    %v1065 = vpop.f32.mrb[0].mxu0
    %v1066 = vadd.f32 0.0, %v1065
    %v1067 = vpop.f32.mrb[0].mxu0
    %1068 = vmatprep.mubr.f32.mxu0 0.0
    %1069 = vmatmul.mubr.f32.gmra.mrb[0].mxu0 %v945
    %v1070 = vpop.f32.mrb[0].mxu0
    %v1071 = vadd.f32 0.0, %v1070
    %v1072 = vpop.f32.mrb[0].mxu0
    %1073 = vmatprep.mubr.f32.mxu0 0.0
    %1074 = vmatmul.mubr.f32.gmra.mrb[0].mxu0 %v948
    %v1075 = vpop.f32.mrb[0].mxu0
    %v1076 = vadd.f32 0.0, %v1075
    %v1077 = vpop.f32.mrb[0].mxu0
    %1078 = vmatprep.mubr.f32.mxu0 0.0
    %1079 = vmatmul.mubr.f32.gmra.mrb[0].mxu0 %v951
    %v1080 = vpop.f32.mrb[0].mxu0
    %v1081 = vadd.f32 0.0, %v1080
    %v1082 = vpop.f32.mrb[0].mxu0
    %1083 = vmatprep.mubr.f32.mxu0 0.0
    %1084 = vmatmul.mubr.f32.gmra.mrb[0].mxu0 %v954
    %v1085 = vpop.f32.mrb[0].mxu0
    %v1086 = vadd.f32 0.0, %v1085
    %v1087 = vpop.f32.mrb[0].mxu0
    %1088 = vmatprep.mubr.f32.mxu0 0.0
    %1089 = vmatmul.mubr.f32.gmra.mrb[0].mxu0 %v957
    %v1090 = vpop.f32.mrb[0].mxu0
    %v1091 = vadd.f32 0.0, %v1090
    %v1092 = vpop.f32.mrb[0].mxu0
    %1093 = vmatprep.mubr.f32.mxu0 0.0
    %1094 = vmatmul.mubr.f32.gmra.mrb[0].mxu0 %v960
    %v1095 = vpop.f32.mrb[0].mxu0
    %v1096 = vadd.f32 0.0, %v1095
    %v1097 = vpop.f32.mrb[0].mxu0
    %1098 = vmatprep.mubr.f32.mxu0 0.0
    %1099 = vmatmul.mubr.f32.gmra.mrb[0].mxu0 %v963
    %v1100 = vpop.f32.mrb[0].mxu0
    %v1101 = vadd.f32 0.0, %v1100
    %v1102 = vpop.f32.mrb[0].mxu0
    %1103 = vmatprep.mubr.f32.mxu0 0.0
    %1104 = vmatmul.mubr.f32.gmra.mrb[0].mxu0 %v966
    %v1105 = vpop.f32.mrb[0].mxu0
    %v1106 = vadd.f32 0.0, %v1105
    %v1107 = vpop.f32.mrb[0].mxu0
    %1108 = vmatprep.mubr.f32.mxu0 0.0
    %1109 = vmatmul.mubr.f32.gmra.mrb[0].mxu0 %v969
    %v1110 = vpop.f32.mrb[0].mxu0
    %v1111 = vadd.f32 0.0, %v1110
    %v1112 = vpop.f32.mrb[0].mxu0
    %1113 = vmatprep.mubr.f32.mxu0 0.0
    %1114 = vmatmul.mubr.f32.gmra.mrb[0].mxu0 %v972
    %v1115 = vpop.f32.mrb[0].mxu0
    %v1116 = vadd.f32 0.0, %v1115
    %v1117 = vpop.f32.mrb[0].mxu0
    %1118 = vdwg.mxu0
    %v1120 = vsel %vm307, %v1041, 0
    %v1123 = vsel %vm307, %v1046, 0
    %v1126 = vsel %vm307, %v1051, 0
    %v1129 = vsel %vm307, %v1056, 0
    %v1132 = vsel %vm307, %v1061, 0
    %v1135 = vsel %vm307, %v1066, 0
    %v1138 = vsel %vm307, %v1071, 0
    %v1141 = vsel %vm307, %v1076, 0
    %v1144 = vsel %vm307, %v1081, 0
    %v1147 = vsel %vm307, %v1086, 0
    %v1150 = vsel %vm307, %v1091, 0
    %v1153 = vsel %vm307, %v1096, 0
    %v1156 = vsel %vm307, %v1101, 0
    %v1159 = vsel %vm307, %v1106, 0
    %v1162 = vsel %vm307, %v1111, 0
    %v1165 = vsel %vm307, %v1116, 0
    %1167 = vmatprep.subr.mxu0 %v768
    %1168 = vmatpush1.msra.mxu0 %v767
    %1169 = vmatprep.subr.mxu0 %v770
    %1170 = vmatpush1.msra.mxu0 %v769
    %1171 = vmatprep.subr.mxu0 0.0
    %1172 = vmatpush1.msra.mxu0 0.0
    %1173 = vmatprep.subr.mxu0 0.0
    %1174 = vmatpush1.msra.mxu0 0.0
    %1175 = vmatprep.subr.mxu0 0.0
    %1176 = vmatpush1.msra.mxu0 0.0
    %1177 = vmatprep.subr.mxu0 0.0
    %1178 = vmatpush1.msra.mxu0 0.0
    %1179 = vmatprep.subr.mxu0 0.0
    %1180 = vmatpush1.msra.mxu0 0.0
    %1181 = vmatprep.subr.mxu0 0.0
    %1182 = vmatpush1.msra.mxu0 0.0
    %1183 = vmatprep.subr.mxu0 0.0
    %1184 = vmatpush1.msra.mxu0 0.0
    %1185 = vmatprep.subr.mxu0 0.0
    %1186 = vmatpush1.msra.mxu0 0.0
    %1187 = vmatprep.subr.mxu0 0.0
    %1188 = vmatpush1.msra.mxu0 0.0
    %1189 = vmatprep.subr.mxu0 0.0
    %1190 = vmatpush1.msra.mxu0 0.0
    %1191 = vmatprep.subr.mxu0 0.0
    %1192 = vmatpush1.msra.mxu0 0.0
    %1193 = vmatprep.subr.mxu0 0.0
    %1194 = vmatpush1.msra.mxu0 0.0
    %1195 = vmatprep.subr.mxu0 0.0
    %1196 = vmatpush1.msra.mxu0 0.0
    %1197 = vmatprep.subr.mxu0 0.0
    %1198 = vmatpush1.msra.mxu0 0.0
    %1199 = vmatprep.subr.mxu0 0.0
    %1200 = vmatpush1.msra.mxu0 0.0
    %1201 = vmatprep.subr.mxu0 0.0
    %1202 = vmatpush1.msra.mxu0 0.0
    %1203 = vmatprep.subr.mxu0 0.0
    %1204 = vmatpush1.msra.mxu0 0.0
    %1205 = vmatprep.subr.mxu0 0.0
    %1206 = vmatpush1.msra.mxu0 0.0
    %1207 = vmatprep.subr.mxu0 0.0
    %1208 = vmatpush1.msra.mxu0 0.0
    %1209 = vmatprep.subr.mxu0 0.0
    %1210 = vmatpush1.msra.mxu0 0.0
    %1211 = vmatprep.subr.mxu0 0.0
    %1212 = vmatpush1.msra.mxu0 0.0
    %1213 = vmatprep.subr.mxu0 0.0
    %1214 = vmatpush1.msra.mxu0 0.0
    %1215 = vmatprep.subr.mxu0 0.0
    %1216 = vmatpush1.msra.mxu0 0.0
    %1217 = vmatprep.subr.mxu0 0.0
    %1218 = vmatpush1.msra.mxu0 0.0
    %1219 = vmatprep.subr.mxu0 0.0
    %1220 = vmatpush1.msra.mxu0 0.0
    %1221 = vmatprep.subr.mxu0 0.0
    %1222 = vmatpush1.msra.mxu0 0.0
    %1223 = vmatprep.subr.mxu0 0.0
    %1224 = vmatpush1.msra.mxu0 0.0
    %1225 = vmatprep.subr.mxu0 0.0
    %1226 = vmatpush1.msra.mxu0 0.0
    %1227 = vmatprep.subr.mxu0 0.0
    %1228 = vmatpush1.msra.mxu0 0.0
    %1229 = vmatprep.subr.mxu0 0.0
    %1230 = vmatpush1.msra.mxu0 0.0
    %1231 = vmatprep.mubr.f32.mxu0 0.0
    %1232 = vmatmul.mubr.f32.gmra.mrb[0].mxu0 %v1120
    %v1233 = vpop.f32.mrb[0].mxu0
    %v1234 = vadd.f32 0.0, %v1233
    %v1235 = vpop.f32.mrb[0].mxu0
    %v1236 = vadd.f32 0.0, %v1235
    %1237 = vmatprep.mubr.f32.mxu0 0.0
    %1238 = vmatmul.mubr.f32.gmra.mrb[0].mxu0 %v1123
    %v1239 = vpop.f32.mrb[0].mxu0
    %v1240 = vadd.f32 0.0, %v1239
    %v1241 = vpop.f32.mrb[0].mxu0
    %v1242 = vadd.f32 0.0, %v1241
    %1243 = vmatprep.mubr.f32.mxu0 0.0
    %1244 = vmatmul.mubr.f32.gmra.mrb[0].mxu0 %v1126
    %v1245 = vpop.f32.mrb[0].mxu0
    %v1246 = vadd.f32 0.0, %v1245
    %v1247 = vpop.f32.mrb[0].mxu0
    %v1248 = vadd.f32 0.0, %v1247
    %1249 = vmatprep.mubr.f32.mxu0 0.0
    %1250 = vmatmul.mubr.f32.gmra.mrb[0].mxu0 %v1129
    %v1251 = vpop.f32.mrb[0].mxu0
    %v1252 = vadd.f32 0.0, %v1251
    %v1253 = vpop.f32.mrb[0].mxu0
    %v1254 = vadd.f32 0.0, %v1253
    %1255 = vmatprep.mubr.f32.mxu0 0.0
    %1256 = vmatmul.mubr.f32.gmra.mrb[0].mxu0 %v1132
    %v1257 = vpop.f32.mrb[0].mxu0
    %v1258 = vadd.f32 0.0, %v1257
    %v1259 = vpop.f32.mrb[0].mxu0
    %v1260 = vadd.f32 0.0, %v1259
    %1261 = vmatprep.mubr.f32.mxu0 0.0
    %1262 = vmatmul.mubr.f32.gmra.mrb[0].mxu0 %v1135
    %v1263 = vpop.f32.mrb[0].mxu0
    %v1264 = vadd.f32 0.0, %v1263
    %v1265 = vpop.f32.mrb[0].mxu0
    %v1266 = vadd.f32 0.0, %v1265
    %1267 = vmatprep.mubr.f32.mxu0 0.0
    %1268 = vmatmul.mubr.f32.gmra.mrb[0].mxu0 %v1138
    %v1269 = vpop.f32.mrb[0].mxu0
    %v1270 = vadd.f32 0.0, %v1269
    %v1271 = vpop.f32.mrb[0].mxu0
    %v1272 = vadd.f32 0.0, %v1271
    %1273 = vmatprep.mubr.f32.mxu0 0.0
    %1274 = vmatmul.mubr.f32.gmra.mrb[0].mxu0 %v1141
    %v1275 = vpop.f32.mrb[0].mxu0
    %v1276 = vadd.f32 0.0, %v1275
    %v1277 = vpop.f32.mrb[0].mxu0
    %v1278 = vadd.f32 0.0, %v1277
    %1279 = vmatprep.mubr.f32.mxu0 0.0
    %1280 = vmatmul.mubr.f32.gmra.mrb[0].mxu0 %v1144
    %v1281 = vpop.f32.mrb[0].mxu0
    %v1282 = vadd.f32 0.0, %v1281
    %v1283 = vpop.f32.mrb[0].mxu0
    %v1284 = vadd.f32 0.0, %v1283
    %1285 = vmatprep.mubr.f32.mxu0 0.0
    %1286 = vmatmul.mubr.f32.gmra.mrb[0].mxu0 %v1147
    %v1287 = vpop.f32.mrb[0].mxu0
    %v1288 = vadd.f32 0.0, %v1287
    %v1289 = vpop.f32.mrb[0].mxu0
    %v1290 = vadd.f32 0.0, %v1289
    %1291 = vmatprep.mubr.f32.mxu0 0.0
    %1292 = vmatmul.mubr.f32.gmra.mrb[0].mxu0 %v1150
    %v1293 = vpop.f32.mrb[0].mxu0
    %v1294 = vadd.f32 0.0, %v1293
    %v1295 = vpop.f32.mrb[0].mxu0
    %v1296 = vadd.f32 0.0, %v1295
    %1297 = vmatprep.mubr.f32.mxu0 0.0
    %1298 = vmatmul.mubr.f32.gmra.mrb[0].mxu0 %v1153
    %v1299 = vpop.f32.mrb[0].mxu0
    %v1300 = vadd.f32 0.0, %v1299
    %v1301 = vpop.f32.mrb[0].mxu0
    %v1302 = vadd.f32 0.0, %v1301
    %1303 = vmatprep.mubr.f32.mxu0 0.0
    %1304 = vmatmul.mubr.f32.gmra.mrb[0].mxu0 %v1156
    %v1305 = vpop.f32.mrb[0].mxu0
    %v1306 = vadd.f32 0.0, %v1305
    %v1307 = vpop.f32.mrb[0].mxu0
    %v1308 = vadd.f32 0.0, %v1307
    %1309 = vmatprep.mubr.f32.mxu0 0.0
    %1310 = vmatmul.mubr.f32.gmra.mrb[0].mxu0 %v1159
    %v1311 = vpop.f32.mrb[0].mxu0
    %v1312 = vadd.f32 0.0, %v1311
    %v1313 = vpop.f32.mrb[0].mxu0
    %v1314 = vadd.f32 0.0, %v1313
    %1315 = vmatprep.mubr.f32.mxu0 0.0
    %1316 = vmatmul.mubr.f32.gmra.mrb[0].mxu0 %v1162
    %v1317 = vpop.f32.mrb[0].mxu0
    %v1318 = vadd.f32 0.0, %v1317
    %v1319 = vpop.f32.mrb[0].mxu0
    %v1320 = vadd.f32 0.0, %v1319
    %1321 = vmatprep.mubr.f32.mxu0 0.0
    %1322 = vmatmul.mubr.f32.gmra.mrb[0].mxu0 %v1165
    %v1323 = vpop.f32.mrb[0].mxu0
    %v1324 = vadd.f32 0.0, %v1323
    %v1325 = vpop.f32.mrb[0].mxu0
    %v1326 = vadd.f32 0.0, %v1325
    %1327 = vdwg.mxu0
    %v1328 = vmul.f32 %v1234, %v653
    %v1329 = vmul.f32 %v1236, %v655
    %v1330 = vmul.f32 %v1240, %v659
    %v1331 = vmul.f32 %v1242, %v661
    %v1332 = vmul.f32 %v1246, %v665
    %v1333 = vmul.f32 %v1248, %v667
    %v1334 = vmul.f32 %v1252, %v671
    %v1335 = vmul.f32 %v1254, %v673
    %v1336 = vmul.f32 %v1258, %v677
    %v1337 = vmul.f32 %v1260, %v679
    %v1338 = vmul.f32 %v1264, %v683
    %v1339 = vmul.f32 %v1266, %v685
    %v1340 = vmul.f32 %v1270, %v689
    %v1341 = vmul.f32 %v1272, %v691
    %v1342 = vmul.f32 %v1276, %v695
    %v1343 = vmul.f32 %v1278, %v697
    %v1344 = vmul.f32 %v1282, %v701
    %v1345 = vmul.f32 %v1284, %v703
    %v1346 = vmul.f32 %v1288, %v707
    %v1347 = vmul.f32 %v1290, %v709
    %v1348 = vmul.f32 %v1294, %v713
    %v1349 = vmul.f32 %v1296, %v715
    %v1350 = vmul.f32 %v1300, %v719
    %v1351 = vmul.f32 %v1302, %v721
    %v1352 = vmul.f32 %v1306, %v725
    %v1353 = vmul.f32 %v1308, %v727
    %v1354 = vmul.f32 %v1312, %v731
    %v1355 = vmul.f32 %v1314, %v733
    %v1356 = vmul.f32 %v1318, %v737
    %v1357 = vmul.f32 %v1320, %v739
    %v1358 = vmul.f32 %v1324, %v743
    %v1359 = vmul.f32 %v1326, %v745
    %1360 = vmatprep.subr.mxu0 0.0
    %1361 = vmatpush1.msra.mxu0 %v771
    %1362 = vmatprep.subr.mxu0 0.0
    %1363 = vmatpush1.msra.mxu0 %v772
    %1364 = vmatprep.subr.mxu0 0.0
    %1365 = vmatpush1.msra.mxu0 %v773
    %1366 = vmatprep.subr.mxu0 0.0
    %1367 = vmatpush1.msra.mxu0 %v774
    %1368 = vmatprep.subr.mxu0 0.0
    %1369 = vmatpush1.msra.mxu0 %v775
    %1370 = vmatprep.subr.mxu0 0.0
    %1371 = vmatpush1.msra.mxu0 %v776
    %1372 = vmatprep.subr.mxu0 0.0
    %1373 = vmatpush1.msra.mxu0 %v777
    %1374 = vmatprep.subr.mxu0 0.0
    %1375 = vmatpush1.msra.mxu0 %v778
    %1376 = vmatprep.subr.mxu0 0.0
    %1377 = vmatpush1.msra.mxu0 %v779
    %1378 = vmatprep.subr.mxu0 0.0
    %1379 = vmatpush1.msra.mxu0 %v780
    %1380 = vmatprep.subr.mxu0 0.0
    %1381 = vmatpush1.msra.mxu0 %v781
    %1382 = vmatprep.subr.mxu0 0.0
    %1383 = vmatpush1.msra.mxu0 %v782
    %1384 = vmatprep.subr.mxu0 0.0
    %1385 = vmatpush1.msra.mxu0 %v783
    %1386 = vmatprep.subr.mxu0 0.0
    %1387 = vmatpush1.msra.mxu0 %v784
    %1388 = vmatprep.subr.mxu0 0.0
    %1389 = vmatpush1.msra.mxu0 %v785
    %1390 = vmatprep.subr.mxu0 0.0
    %1391 = vmatpush1.msra.mxu0 %v786
    %1392 = vmatprep.subr.mxu0 0.0
    %1393 = vmatpush1.msra.mxu0 %v787
    %1394 = vmatprep.subr.mxu0 0.0
    %1395 = vmatpush1.msra.mxu0 %v788
    %1396 = vmatprep.subr.mxu0 0.0
    %1397 = vmatpush1.msra.mxu0 %v789
    %1398 = vmatprep.subr.mxu0 0.0
    %1399 = vmatpush1.msra.mxu0 %v790
    %1400 = vmatprep.subr.mxu0 0.0
    %1401 = vmatpush1.msra.mxu0 %v791
    %1402 = vmatprep.subr.mxu0 0.0
    %1403 = vmatpush1.msra.mxu0 %v792
    %1404 = vmatprep.subr.mxu0 0.0
    %1405 = vmatpush1.msra.mxu0 %v793
    %1406 = vmatprep.subr.mxu0 0.0
    %1407 = vmatpush1.msra.mxu0 %v794
    %1408 = vmatprep.subr.mxu0 0.0
    %1409 = vmatpush1.msra.mxu0 %v795
    %1410 = vmatprep.subr.mxu0 0.0
    %1411 = vmatpush1.msra.mxu0 %v796
    %1412 = vmatprep.subr.mxu0 0.0
    %1413 = vmatpush1.msra.mxu0 %v797
    %1414 = vmatprep.subr.mxu0 0.0
    %1415 = vmatpush1.msra.mxu0 %v798
    %1416 = vmatprep.subr.mxu0 0.0
    %1417 = vmatpush1.msra.mxu0 %v799
    %1418 = vmatprep.subr.mxu0 0.0
    %1419 = vmatpush1.msra.mxu0 %v800
    %1420 = vmatprep.subr.mxu0 0.0
    %1421 = vmatpush1.msra.mxu0 %v801
    %1422 = vmatprep.subr.mxu0 0.0
    %1423 = vmatpush1.msra.mxu0 %v802
    %1424 = vmatprep.mubr.f32.mxu0 %v1329
    %1425 = vmatmul.mubr.f32.gmra.mrb[0].mxu0 %v1328
    %v1426 = vpop.f32.mrb[0].mxu0
    %v1427 = vadd.f32 0.0, %v1426
    %v1428 = vpop.f32.mrb[0].mxu0
    %1429 = vmatprep.mubr.f32.mxu0 %v1331
    %1430 = vmatmul.mubr.f32.gmra.mrb[0].mxu0 %v1330
    %v1431 = vpop.f32.mrb[0].mxu0
    %v1432 = vadd.f32 0.0, %v1431
    %v1433 = vpop.f32.mrb[0].mxu0
    %1434 = vmatprep.mubr.f32.mxu0 %v1333
    %1435 = vmatmul.mubr.f32.gmra.mrb[0].mxu0 %v1332
    %v1436 = vpop.f32.mrb[0].mxu0
    %v1437 = vadd.f32 0.0, %v1436
    %v1438 = vpop.f32.mrb[0].mxu0
    %1439 = vmatprep.mubr.f32.mxu0 %v1335
    %1440 = vmatmul.mubr.f32.gmra.mrb[0].mxu0 %v1334
    %v1441 = vpop.f32.mrb[0].mxu0
    %v1442 = vadd.f32 0.0, %v1441
    %v1443 = vpop.f32.mrb[0].mxu0
    %1444 = vmatprep.mubr.f32.mxu0 %v1337
    %1445 = vmatmul.mubr.f32.gmra.mrb[0].mxu0 %v1336
    %v1446 = vpop.f32.mrb[0].mxu0
    %v1447 = vadd.f32 0.0, %v1446
    %v1448 = vpop.f32.mrb[0].mxu0
    %1449 = vmatprep.mubr.f32.mxu0 %v1339
    %1450 = vmatmul.mubr.f32.gmra.mrb[0].mxu0 %v1338
    %v1451 = vpop.f32.mrb[0].mxu0
    %v1452 = vadd.f32 0.0, %v1451
    %v1453 = vpop.f32.mrb[0].mxu0
    %1454 = vmatprep.mubr.f32.mxu0 %v1341
    %1455 = vmatmul.mubr.f32.gmra.mrb[0].mxu0 %v1340
    %v1456 = vpop.f32.mrb[0].mxu0
    %v1457 = vadd.f32 0.0, %v1456
    %v1458 = vpop.f32.mrb[0].mxu0
    %1459 = vmatprep.mubr.f32.mxu0 %v1343
    %1460 = vmatmul.mubr.f32.gmra.mrb[0].mxu0 %v1342
    %v1461 = vpop.f32.mrb[0].mxu0
    %v1462 = vadd.f32 0.0, %v1461
    %v1463 = vpop.f32.mrb[0].mxu0
    %1464 = vmatprep.mubr.f32.mxu0 %v1345
    %1465 = vmatmul.mubr.f32.gmra.mrb[0].mxu0 %v1344
    %v1466 = vpop.f32.mrb[0].mxu0
    %v1467 = vadd.f32 0.0, %v1466
    %v1468 = vpop.f32.mrb[0].mxu0
    %1469 = vmatprep.mubr.f32.mxu0 %v1347
    %1470 = vmatmul.mubr.f32.gmra.mrb[0].mxu0 %v1346
    %v1471 = vpop.f32.mrb[0].mxu0
    %v1472 = vadd.f32 0.0, %v1471
    %v1473 = vpop.f32.mrb[0].mxu0
    %1474 = vmatprep.mubr.f32.mxu0 %v1349
    %1475 = vmatmul.mubr.f32.gmra.mrb[0].mxu0 %v1348
    %v1476 = vpop.f32.mrb[0].mxu0
    %v1477 = vadd.f32 0.0, %v1476
    %v1478 = vpop.f32.mrb[0].mxu0
    %1479 = vmatprep.mubr.f32.mxu0 %v1351
    %1480 = vmatmul.mubr.f32.gmra.mrb[0].mxu0 %v1350
    %v1481 = vpop.f32.mrb[0].mxu0
    %v1482 = vadd.f32 0.0, %v1481
    %v1483 = vpop.f32.mrb[0].mxu0
    %1484 = vmatprep.mubr.f32.mxu0 %v1353
    %1485 = vmatmul.mubr.f32.gmra.mrb[0].mxu0 %v1352
    %v1486 = vpop.f32.mrb[0].mxu0
    %v1487 = vadd.f32 0.0, %v1486
    %v1488 = vpop.f32.mrb[0].mxu0
    %1489 = vmatprep.mubr.f32.mxu0 %v1355
    %1490 = vmatmul.mubr.f32.gmra.mrb[0].mxu0 %v1354
    %v1491 = vpop.f32.mrb[0].mxu0
    %v1492 = vadd.f32 0.0, %v1491
    %v1493 = vpop.f32.mrb[0].mxu0
    %1494 = vmatprep.mubr.f32.mxu0 %v1357
    %1495 = vmatmul.mubr.f32.gmra.mrb[0].mxu0 %v1356
    %v1496 = vpop.f32.mrb[0].mxu0
    %v1497 = vadd.f32 0.0, %v1496
    %v1498 = vpop.f32.mrb[0].mxu0
    %1499 = vmatprep.mubr.f32.mxu0 %v1359
    %1500 = vmatmul.mubr.f32.gmra.mrb[0].mxu0 %v1358
    %v1501 = vpop.f32.mrb[0].mxu0
    %v1502 = vadd.f32 0.0, %v1501
    %v1503 = vpop.f32.mrb[0].mxu0
    %1504 = vdwg.mxu0
    %v1506 = vsel %vm307, %v908, 0
    %v1509 = vsel %vm307, %v913, 0
    %v1512 = vsel %vm307, %v918, 0
    %v1515 = vsel %vm307, %v923, 0
    %1517 = vmatprep.subr.mxu0 0.0
    %1518 = vmatpush1.msra.mxu0 %v803
    %1519 = vmatprep.subr.mxu0 0.0
    %1520 = vmatpush1.msra.mxu0 %v804
    %1521 = vmatprep.subr.mxu0 0.0
    %1522 = vmatpush1.msra.mxu0 0.0
    %1523 = vmatprep.subr.mxu0 0.0
    %1524 = vmatpush1.msra.mxu0 0.0
    %1525 = vmatprep.subr.mxu0 0.0
    %1526 = vmatpush1.msra.mxu0 0.0
    %1527 = vmatprep.subr.mxu0 0.0
    %1528 = vmatpush1.msra.mxu0 0.0
    %1529 = vmatprep.subr.mxu0 0.0
    %1530 = vmatpush1.msra.mxu0 0.0
    %1531 = vmatprep.subr.mxu0 0.0
    %1532 = vmatpush1.msra.mxu0 0.0
    %1533 = vmatprep.subr.mxu0 0.0
    %1534 = vmatpush1.msra.mxu0 0.0
    %1535 = vmatprep.subr.mxu0 0.0
    %1536 = vmatpush1.msra.mxu0 0.0
    %1537 = vmatprep.subr.mxu0 0.0
    %1538 = vmatpush1.msra.mxu0 0.0
    %1539 = vmatprep.subr.mxu0 0.0
    %1540 = vmatpush1.msra.mxu0 0.0
    %1541 = vmatprep.subr.mxu0 0.0
    %1542 = vmatpush1.msra.mxu0 0.0
    %1543 = vmatprep.subr.mxu0 0.0
    %1544 = vmatpush1.msra.mxu0 0.0
    %1545 = vmatprep.subr.mxu0 0.0
    %1546 = vmatpush1.msra.mxu0 0.0
    %1547 = vmatprep.subr.mxu0 0.0
    %1548 = vmatpush1.msra.mxu0 0.0
    %1549 = vmatprep.subr.mxu0 0.0
    %1550 = vmatpush1.msra.mxu0 0.0
    %1551 = vmatprep.subr.mxu0 0.0
    %1552 = vmatpush1.msra.mxu0 0.0
    %1553 = vmatprep.subr.mxu0 0.0
    %1554 = vmatpush1.msra.mxu0 0.0
    %1555 = vmatprep.subr.mxu0 0.0
    %1556 = vmatpush1.msra.mxu0 0.0
    %1557 = vmatprep.subr.mxu0 0.0
    %1558 = vmatpush1.msra.mxu0 0.0
    %1559 = vmatprep.subr.mxu0 0.0
    %1560 = vmatpush1.msra.mxu0 0.0
    %1561 = vmatprep.subr.mxu0 0.0
    %1562 = vmatpush1.msra.mxu0 0.0
    %1563 = vmatprep.subr.mxu0 0.0
    %1564 = vmatpush1.msra.mxu0 0.0
    %1565 = vmatprep.subr.mxu0 0.0
    %1566 = vmatpush1.msra.mxu0 0.0
    %1567 = vmatprep.subr.mxu0 0.0
    %1568 = vmatpush1.msra.mxu0 0.0
    %1569 = vmatprep.subr.mxu0 0.0
    %1570 = vmatpush1.msra.mxu0 0.0
    %1571 = vmatprep.subr.mxu0 0.0
    %1572 = vmatpush1.msra.mxu0 0.0
    %1573 = vmatprep.subr.mxu0 0.0
    %1574 = vmatpush1.msra.mxu0 0.0
    %1575 = vmatprep.subr.mxu0 0.0
    %1576 = vmatpush1.msra.mxu0 0.0
    %1577 = vmatprep.subr.mxu0 0.0
    %1578 = vmatpush1.msra.mxu0 0.0
    %1579 = vmatprep.subr.mxu0 0.0
    %1580 = vmatpush1.msra.mxu0 0.0
    %1581 = vmatprep.mubr.f32.mxu0 0.0
    %1582 = vmatmul.mubr.f32.gmra.mrb[0].mxu0 %v1506
    %v1583 = vpop.f32.mrb[0].mxu0
    %v1584 = vadd.f32 0.0, %v1583
    %v1585 = vpop.f32.mrb[0].mxu0
    %1586 = vmatprep.mubr.f32.mxu0 0.0
    %1587 = vmatmul.mubr.f32.gmra.mrb[0].mxu0 %v1509
    %v1588 = vpop.f32.mrb[0].mxu0
    %v1589 = vadd.f32 0.0, %v1588
    %v1590 = vpop.f32.mrb[0].mxu0
    %1591 = vmatprep.mubr.f32.mxu0 0.0
    %1592 = vmatmul.mubr.f32.gmra.mrb[0].mxu0 %v1512
    %v1593 = vpop.f32.mrb[0].mxu0
    %v1594 = vadd.f32 0.0, %v1593
    %v1595 = vpop.f32.mrb[0].mxu0
    %1596 = vmatprep.mubr.f32.mxu0 0.0
    %1597 = vmatmul.mubr.f32.gmra.mrb[0].mxu0 %v1515
    %v1598 = vpop.f32.mrb[0].mxu0
    %v1599 = vadd.f32 0.0, %v1598
    %v1600 = vpop.f32.mrb[0].mxu0
    %1601 = vdwg.mxu0
    %1602 = vmatprep.subr.mxu0 0.0
    %1603 = vmatpush1.msra.mxu0 %v1427
    %1604 = vmatprep.subr.mxu0 0.0
    %1605 = vmatpush1.msra.mxu0 %v1432
    %1606 = vmatprep.subr.mxu0 0.0
    %1607 = vmatpush1.msra.mxu0 %v1437
    %1608 = vmatprep.subr.mxu0 0.0
    %1609 = vmatpush1.msra.mxu0 %v1442
    %1610 = vmatprep.subr.mxu0 0.0
    %1611 = vmatpush1.msra.mxu0 %v1447
    %1612 = vmatprep.subr.mxu0 0.0
    %1613 = vmatpush1.msra.mxu0 %v1452
    %1614 = vmatprep.subr.mxu0 0.0
    %1615 = vmatpush1.msra.mxu0 %v1457
    %1616 = vmatprep.subr.mxu0 0.0
    %1617 = vmatpush1.msra.mxu0 %v1462
    %1618 = vmatprep.subr.mxu0 0.0
    %1619 = vmatpush1.msra.mxu0 %v1467
    %1620 = vmatprep.subr.mxu0 0.0
    %1621 = vmatpush1.msra.mxu0 %v1472
    %1622 = vmatprep.subr.mxu0 0.0
    %1623 = vmatpush1.msra.mxu0 %v1477
    %1624 = vmatprep.subr.mxu0 0.0
    %1625 = vmatpush1.msra.mxu0 %v1482
    %1626 = vmatprep.subr.mxu0 0.0
    %1627 = vmatpush1.msra.mxu0 %v1487
    %1628 = vmatprep.subr.mxu0 0.0
    %1629 = vmatpush1.msra.mxu0 %v1492
    %1630 = vmatprep.subr.mxu0 0.0
    %1631 = vmatpush1.msra.mxu0 %v1497
    %1632 = vmatprep.subr.mxu0 0.0
    %1633 = vmatpush1.msra.mxu0 %v1502
    %1634 = vmatprep.subr.mxu0 0.0
    %1635 = vmatpush1.msra.mxu0 0.0
    %1636 = vmatprep.subr.mxu0 0.0
    %1637 = vmatpush1.msra.mxu0 0.0
    %1638 = vmatprep.subr.mxu0 0.0
    %1639 = vmatpush1.msra.mxu0 0.0
    %1640 = vmatprep.subr.mxu0 0.0
    %1641 = vmatpush1.msra.mxu0 0.0
    %1642 = vmatprep.subr.mxu0 0.0
    %1643 = vmatpush1.msra.mxu0 0.0
    %1644 = vmatprep.subr.mxu0 0.0
    %1645 = vmatpush1.msra.mxu0 0.0
    %1646 = vmatprep.subr.mxu0 0.0
    %1647 = vmatpush1.msra.mxu0 0.0
    %1648 = vmatprep.subr.mxu0 0.0
    %1649 = vmatpush1.msra.mxu0 0.0
    %1650 = vmatprep.subr.mxu0 0.0
    %1651 = vmatpush1.msra.mxu0 0.0
    %1652 = vmatprep.subr.mxu0 0.0
    %1653 = vmatpush1.msra.mxu0 0.0
    %1654 = vmatprep.subr.mxu0 0.0
    %1655 = vmatpush1.msra.mxu0 0.0
    %1656 = vmatprep.subr.mxu0 0.0
    %1657 = vmatpush1.msra.mxu0 0.0
    %1658 = vmatprep.subr.mxu0 0.0
    %1659 = vmatpush1.msra.mxu0 0.0
    %1660 = vmatprep.subr.mxu0 0.0
    %1661 = vmatpush1.msra.mxu0 0.0
    %1662 = vmatprep.subr.mxu0 0.0
    %1663 = vmatpush1.msra.mxu0 0.0
    %1664 = vmatprep.subr.mxu0 0.0
    %1665 = vmatpush1.msra.mxu0 0.0
    %1666 = vmatprep.mubr.f32.mxu0 0.0
    %1667 = vmatmul.mubr.f32.gmra.mrb[0].mxu0 %v763
    %v1668 = vpop.f32.mrb[0].mxu0
    %v1669 = vadd.f32 %v1584, %v1668
    %v1670 = vpop.f32.mrb[0].mxu0
    %1671 = vmatprep.mubr.f32.mxu0 0.0
    %1672 = vmatmul.mubr.f32.gmra.mrb[0].mxu0 %v764
    %v1673 = vpop.f32.mrb[0].mxu0
    %v1674 = vadd.f32 %v1589, %v1673
    %v1675 = vpop.f32.mrb[0].mxu0
    %1676 = vmatprep.mubr.f32.mxu0 0.0
    %1677 = vmatmul.mubr.f32.gmra.mrb[0].mxu0 %v765
    %v1678 = vpop.f32.mrb[0].mxu0
    %v1679 = vadd.f32 %v1594, %v1678
    %v1680 = vpop.f32.mrb[0].mxu0
    %1681 = vmatprep.mubr.f32.mxu0 0.0
    %1682 = vmatmul.mubr.f32.gmra.mrb[0].mxu0 %v766
    %v1683 = vpop.f32.mrb[0].mxu0
    %v1684 = vadd.f32 %v1599, %v1683
    %v1685 = vpop.f32.mrb[0].mxu0
    %1686 = vdwg.mxu0
    %v1687 = vadd.f32 %v1669, %v810
    %v1688 = vadd.f32 %v1674, %v810
    %v1689 = vadd.f32 %v1679, %v810
    %v1690 = vadd.f32 %v1684, %v810
    %v1691 = vmax.f32 %v1687, 0.0
    %v1692 = vmax.f32 %v1688, 0.0
    %v1693 = vmax.f32 %v1689, 0.0
    %v1694 = vmax.f32 %v1690, 0.0
    %1695 = vmatprep.subr.mxu0 0.0
    %1696 = vmatpush1.msra.mxu0 %v1691
    %1697 = vmatprep.subr.mxu0 0.0
    %1698 = vmatpush1.msra.mxu0 %v1692
    %1699 = vmatprep.subr.mxu0 0.0
    %1700 = vmatpush1.msra.mxu0 %v1693
    %1701 = vmatprep.subr.mxu0 0.0
    %1702 = vmatpush1.msra.mxu0 %v1694
    %1703 = vmatprep.subr.mxu0 0.0
    %1704 = vmatpush1.msra.mxu0 0.0
    %1705 = vmatprep.subr.mxu0 0.0
    %1706 = vmatpush1.msra.mxu0 0.0
    %1707 = vmatprep.subr.mxu0 0.0
    %1708 = vmatpush1.msra.mxu0 0.0
    %1709 = vmatprep.subr.mxu0 0.0
    %1710 = vmatpush1.msra.mxu0 0.0
    %1711 = vmatprep.subr.mxu0 0.0
    %1712 = vmatpush1.msra.mxu0 0.0
    %1713 = vmatprep.subr.mxu0 0.0
    %1714 = vmatpush1.msra.mxu0 0.0
    %1715 = vmatprep.subr.mxu0 0.0
    %1716 = vmatpush1.msra.mxu0 0.0
    %1717 = vmatprep.subr.mxu0 0.0
    %1718 = vmatpush1.msra.mxu0 0.0
    %1719 = vmatprep.subr.mxu0 0.0
    %1720 = vmatpush1.msra.mxu0 0.0
    %1721 = vmatprep.subr.mxu0 0.0
    %1722 = vmatpush1.msra.mxu0 0.0
    %1723 = vmatprep.subr.mxu0 0.0
    %1724 = vmatpush1.msra.mxu0 0.0
    %1725 = vmatprep.subr.mxu0 0.0
    %1726 = vmatpush1.msra.mxu0 0.0
    %1727 = vmatprep.subr.mxu0 0.0
    %1728 = vmatpush1.msra.mxu0 0.0
    %1729 = vmatprep.subr.mxu0 0.0
    %1730 = vmatpush1.msra.mxu0 0.0
    %1731 = vmatprep.subr.mxu0 0.0
    %1732 = vmatpush1.msra.mxu0 0.0
    %1733 = vmatprep.subr.mxu0 0.0
    %1734 = vmatpush1.msra.mxu0 0.0
    %1735 = vmatprep.subr.mxu0 0.0
    %1736 = vmatpush1.msra.mxu0 0.0
    %1737 = vmatprep.subr.mxu0 0.0
    %1738 = vmatpush1.msra.mxu0 0.0
    %1739 = vmatprep.subr.mxu0 0.0
    %1740 = vmatpush1.msra.mxu0 0.0
    %1741 = vmatprep.subr.mxu0 0.0
    %1742 = vmatpush1.msra.mxu0 0.0
    %1743 = vmatprep.subr.mxu0 0.0
    %1744 = vmatpush1.msra.mxu0 0.0
    %1745 = vmatprep.subr.mxu0 0.0
    %1746 = vmatpush1.msra.mxu0 0.0
    %1747 = vmatprep.subr.mxu0 0.0
    %1748 = vmatpush1.msra.mxu0 0.0
    %1749 = vmatprep.subr.mxu0 0.0
    %1750 = vmatpush1.msra.mxu0 0.0
    %1751 = vmatprep.subr.mxu0 0.0
    %1752 = vmatpush1.msra.mxu0 0.0
    %1753 = vmatprep.subr.mxu0 0.0
    %1754 = vmatpush1.msra.mxu0 0.0
    %1755 = vmatprep.subr.mxu0 0.0
    %1756 = vmatpush1.msra.mxu0 0.0
    %1757 = vmatprep.subr.mxu0 0.0
    %1758 = vmatpush1.msra.mxu0 0.0
    %1759 = vmatprep.mubr.f32.mxu0 0.0
    %1760 = vmatmul.mubr.f32.gmra.mrb[0].mxu0 %v927
    %v1761 = vpop.f32.mrb[0].mxu0
    %v1762 = vadd.f32 0.0, %v1761
    %v1763 = vpop.f32.mrb[0].mxu0
    %1764 = vmatprep.mubr.f32.mxu0 0.0
    %1765 = vmatmul.mubr.f32.gmra.mrb[0].mxu0 %v930
    %v1766 = vpop.f32.mrb[0].mxu0
    %v1767 = vadd.f32 0.0, %v1766
    %v1768 = vpop.f32.mrb[0].mxu0
    %1769 = vmatprep.mubr.f32.mxu0 0.0
    %1770 = vmatmul.mubr.f32.gmra.mrb[0].mxu0 %v933
    %v1771 = vpop.f32.mrb[0].mxu0
    %v1772 = vadd.f32 0.0, %v1771
    %v1773 = vpop.f32.mrb[0].mxu0
    %1774 = vmatprep.mubr.f32.mxu0 0.0
    %1775 = vmatmul.mubr.f32.gmra.mrb[0].mxu0 %v936
    %v1776 = vpop.f32.mrb[0].mxu0
    %v1777 = vadd.f32 0.0, %v1776
    %v1778 = vpop.f32.mrb[0].mxu0
    %1779 = vmatprep.mubr.f32.mxu0 0.0
    %1780 = vmatmul.mubr.f32.gmra.mrb[0].mxu0 %v939
    %v1781 = vpop.f32.mrb[0].mxu0
    %v1782 = vadd.f32 0.0, %v1781
    %v1783 = vpop.f32.mrb[0].mxu0
    %1784 = vmatprep.mubr.f32.mxu0 0.0
    %1785 = vmatmul.mubr.f32.gmra.mrb[0].mxu0 %v942
    %v1786 = vpop.f32.mrb[0].mxu0
    %v1787 = vadd.f32 0.0, %v1786
    %v1788 = vpop.f32.mrb[0].mxu0
    %1789 = vmatprep.mubr.f32.mxu0 0.0
    %1790 = vmatmul.mubr.f32.gmra.mrb[0].mxu0 %v945
    %v1791 = vpop.f32.mrb[0].mxu0
    %v1792 = vadd.f32 0.0, %v1791
    %v1793 = vpop.f32.mrb[0].mxu0
    %1794 = vmatprep.mubr.f32.mxu0 0.0
    %1795 = vmatmul.mubr.f32.gmra.mrb[0].mxu0 %v948
    %v1796 = vpop.f32.mrb[0].mxu0
    %v1797 = vadd.f32 0.0, %v1796
    %v1798 = vpop.f32.mrb[0].mxu0
    %1799 = vmatprep.mubr.f32.mxu0 0.0
    %1800 = vmatmul.mubr.f32.gmra.mrb[0].mxu0 %v951
    %v1801 = vpop.f32.mrb[0].mxu0
    %v1802 = vadd.f32 0.0, %v1801
    %v1803 = vpop.f32.mrb[0].mxu0
    %1804 = vmatprep.mubr.f32.mxu0 0.0
    %1805 = vmatmul.mubr.f32.gmra.mrb[0].mxu0 %v954
    %v1806 = vpop.f32.mrb[0].mxu0
    %v1807 = vadd.f32 0.0, %v1806
    %v1808 = vpop.f32.mrb[0].mxu0
    %1809 = vmatprep.mubr.f32.mxu0 0.0
    %1810 = vmatmul.mubr.f32.gmra.mrb[0].mxu0 %v957
    %v1811 = vpop.f32.mrb[0].mxu0
    %v1812 = vadd.f32 0.0, %v1811
    %v1813 = vpop.f32.mrb[0].mxu0
    %1814 = vmatprep.mubr.f32.mxu0 0.0
    %1815 = vmatmul.mubr.f32.gmra.mrb[0].mxu0 %v960
    %v1816 = vpop.f32.mrb[0].mxu0
    %v1817 = vadd.f32 0.0, %v1816
    %v1818 = vpop.f32.mrb[0].mxu0
    %1819 = vmatprep.mubr.f32.mxu0 0.0
    %1820 = vmatmul.mubr.f32.gmra.mrb[0].mxu0 %v963
    %v1821 = vpop.f32.mrb[0].mxu0
    %v1822 = vadd.f32 0.0, %v1821
    %v1823 = vpop.f32.mrb[0].mxu0
    %1824 = vmatprep.mubr.f32.mxu0 0.0
    %1825 = vmatmul.mubr.f32.gmra.mrb[0].mxu0 %v966
    %v1826 = vpop.f32.mrb[0].mxu0
    %v1827 = vadd.f32 0.0, %v1826
    %v1828 = vpop.f32.mrb[0].mxu0
    %1829 = vmatprep.mubr.f32.mxu0 0.0
    %1830 = vmatmul.mubr.f32.gmra.mrb[0].mxu0 %v969
    %v1831 = vpop.f32.mrb[0].mxu0
    %v1832 = vadd.f32 0.0, %v1831
    %v1833 = vpop.f32.mrb[0].mxu0
    %1834 = vmatprep.mubr.f32.mxu0 0.0
    %1835 = vmatmul.mubr.f32.gmra.mrb[0].mxu0 %v972
    %v1836 = vpop.f32.mrb[0].mxu0
    %v1837 = vadd.f32 0.0, %v1836
    %v1838 = vpop.f32.mrb[0].mxu0
    %1839 = vdwg.mxu0
    %v1841 = vsel %vm307, %v1762, 0
    %v1844 = vsel %vm307, %v1767, 0
    %v1847 = vsel %vm307, %v1772, 0
    %v1850 = vsel %vm307, %v1777, 0
    %v1853 = vsel %vm307, %v1782, 0
    %v1856 = vsel %vm307, %v1787, 0
    %v1859 = vsel %vm307, %v1792, 0
    %v1862 = vsel %vm307, %v1797, 0
    %v1865 = vsel %vm307, %v1802, 0
    %v1868 = vsel %vm307, %v1807, 0
    %v1871 = vsel %vm307, %v1812, 0
    %v1874 = vsel %vm307, %v1817, 0
    %v1877 = vsel %vm307, %v1822, 0
    %v1880 = vsel %vm307, %v1827, 0
    %v1883 = vsel %vm307, %v1832, 0
    %v1886 = vsel %vm307, %v1837, 0
    %1888 = vmatprep.subr.mxu0 %v768
    %1889 = vmatpush1.msra.mxu0 %v767
    %1890 = vmatprep.subr.mxu0 %v770
    %1891 = vmatpush1.msra.mxu0 %v769
    %1892 = vmatprep.subr.mxu0 0.0
    %1893 = vmatpush1.msra.mxu0 0.0
    %1894 = vmatprep.subr.mxu0 0.0
    %1895 = vmatpush1.msra.mxu0 0.0
    %1896 = vmatprep.subr.mxu0 0.0
    %1897 = vmatpush1.msra.mxu0 0.0
    %1898 = vmatprep.subr.mxu0 0.0
    %1899 = vmatpush1.msra.mxu0 0.0
    %1900 = vmatprep.subr.mxu0 0.0
    %1901 = vmatpush1.msra.mxu0 0.0
    %1902 = vmatprep.subr.mxu0 0.0
    %1903 = vmatpush1.msra.mxu0 0.0
    %1904 = vmatprep.subr.mxu0 0.0
    %1905 = vmatpush1.msra.mxu0 0.0
    %1906 = vmatprep.subr.mxu0 0.0
    %1907 = vmatpush1.msra.mxu0 0.0
    %1908 = vmatprep.subr.mxu0 0.0
    %1909 = vmatpush1.msra.mxu0 0.0
    %1910 = vmatprep.subr.mxu0 0.0
    %1911 = vmatpush1.msra.mxu0 0.0
    %1912 = vmatprep.subr.mxu0 0.0
    %1913 = vmatpush1.msra.mxu0 0.0
    %1914 = vmatprep.subr.mxu0 0.0
    %1915 = vmatpush1.msra.mxu0 0.0
    %1916 = vmatprep.subr.mxu0 0.0
    %1917 = vmatpush1.msra.mxu0 0.0
    %1918 = vmatprep.subr.mxu0 0.0
    %1919 = vmatpush1.msra.mxu0 0.0
    %1920 = vmatprep.subr.mxu0 0.0
    %1921 = vmatpush1.msra.mxu0 0.0
    %1922 = vmatprep.subr.mxu0 0.0
    %1923 = vmatpush1.msra.mxu0 0.0
    %1924 = vmatprep.subr.mxu0 0.0
    %1925 = vmatpush1.msra.mxu0 0.0
    %1926 = vmatprep.subr.mxu0 0.0
    %1927 = vmatpush1.msra.mxu0 0.0
    %1928 = vmatprep.subr.mxu0 0.0
    %1929 = vmatpush1.msra.mxu0 0.0
    %1930 = vmatprep.subr.mxu0 0.0
    %1931 = vmatpush1.msra.mxu0 0.0
    %1932 = vmatprep.subr.mxu0 0.0
    %1933 = vmatpush1.msra.mxu0 0.0
    %1934 = vmatprep.subr.mxu0 0.0
    %1935 = vmatpush1.msra.mxu0 0.0
    %1936 = vmatprep.subr.mxu0 0.0
    %1937 = vmatpush1.msra.mxu0 0.0
    %1938 = vmatprep.subr.mxu0 0.0
    %1939 = vmatpush1.msra.mxu0 0.0
    %1940 = vmatprep.subr.mxu0 0.0
    %1941 = vmatpush1.msra.mxu0 0.0
    %1942 = vmatprep.subr.mxu0 0.0
    %1943 = vmatpush1.msra.mxu0 0.0
    %1944 = vmatprep.subr.mxu0 0.0
    %1945 = vmatpush1.msra.mxu0 0.0
    %1946 = vmatprep.subr.mxu0 0.0
    %1947 = vmatpush1.msra.mxu0 0.0
    %1948 = vmatprep.subr.mxu0 0.0
    %1949 = vmatpush1.msra.mxu0 0.0
    %1950 = vmatprep.subr.mxu0 0.0
    %1951 = vmatpush1.msra.mxu0 0.0
    %1952 = vmatprep.mubr.f32.mxu0 0.0
    %1953 = vmatmul.mubr.f32.gmra.mrb[0].mxu0 %v1841
    %v1954 = vpop.f32.mrb[0].mxu0
    %v1955 = vadd.f32 0.0, %v1954
    %v1956 = vpop.f32.mrb[0].mxu0
    %v1957 = vadd.f32 0.0, %v1956
    %1958 = vmatprep.mubr.f32.mxu0 0.0
    %1959 = vmatmul.mubr.f32.gmra.mrb[0].mxu0 %v1844
    %v1960 = vpop.f32.mrb[0].mxu0
    %v1961 = vadd.f32 0.0, %v1960
    %v1962 = vpop.f32.mrb[0].mxu0
    %v1963 = vadd.f32 0.0, %v1962
    %1964 = vmatprep.mubr.f32.mxu0 0.0
    %1965 = vmatmul.mubr.f32.gmra.mrb[0].mxu0 %v1847
    %v1966 = vpop.f32.mrb[0].mxu0
    %v1967 = vadd.f32 0.0, %v1966
    %v1968 = vpop.f32.mrb[0].mxu0
    %v1969 = vadd.f32 0.0, %v1968
    %1970 = vmatprep.mubr.f32.mxu0 0.0
    %1971 = vmatmul.mubr.f32.gmra.mrb[0].mxu0 %v1850
    %v1972 = vpop.f32.mrb[0].mxu0
    %v1973 = vadd.f32 0.0, %v1972
    %v1974 = vpop.f32.mrb[0].mxu0
    %v1975 = vadd.f32 0.0, %v1974
    %1976 = vmatprep.mubr.f32.mxu0 0.0
    %1977 = vmatmul.mubr.f32.gmra.mrb[0].mxu0 %v1853
    %v1978 = vpop.f32.mrb[0].mxu0
    %v1979 = vadd.f32 0.0, %v1978
    %v1980 = vpop.f32.mrb[0].mxu0
    %v1981 = vadd.f32 0.0, %v1980
    %1982 = vmatprep.mubr.f32.mxu0 0.0
    %1983 = vmatmul.mubr.f32.gmra.mrb[0].mxu0 %v1856
    %v1984 = vpop.f32.mrb[0].mxu0
    %v1985 = vadd.f32 0.0, %v1984
    %v1986 = vpop.f32.mrb[0].mxu0
    %v1987 = vadd.f32 0.0, %v1986
    %1988 = vmatprep.mubr.f32.mxu0 0.0
    %1989 = vmatmul.mubr.f32.gmra.mrb[0].mxu0 %v1859
    %v1990 = vpop.f32.mrb[0].mxu0
    %v1991 = vadd.f32 0.0, %v1990
    %v1992 = vpop.f32.mrb[0].mxu0
    %v1993 = vadd.f32 0.0, %v1992
    %1994 = vmatprep.mubr.f32.mxu0 0.0
    %1995 = vmatmul.mubr.f32.gmra.mrb[0].mxu0 %v1862
    %v1996 = vpop.f32.mrb[0].mxu0
    %v1997 = vadd.f32 0.0, %v1996
    %v1998 = vpop.f32.mrb[0].mxu0
    %v1999 = vadd.f32 0.0, %v1998
    %2000 = vmatprep.mubr.f32.mxu0 0.0
    %2001 = vmatmul.mubr.f32.gmra.mrb[0].mxu0 %v1865
    %v2002 = vpop.f32.mrb[0].mxu0
    %v2003 = vadd.f32 0.0, %v2002
    %v2004 = vpop.f32.mrb[0].mxu0
    %v2005 = vadd.f32 0.0, %v2004
    %2006 = vmatprep.mubr.f32.mxu0 0.0
    %2007 = vmatmul.mubr.f32.gmra.mrb[0].mxu0 %v1868
    %v2008 = vpop.f32.mrb[0].mxu0
    %v2009 = vadd.f32 0.0, %v2008
    %v2010 = vpop.f32.mrb[0].mxu0
    %v2011 = vadd.f32 0.0, %v2010
    %2012 = vmatprep.mubr.f32.mxu0 0.0
    %2013 = vmatmul.mubr.f32.gmra.mrb[0].mxu0 %v1871
    %v2014 = vpop.f32.mrb[0].mxu0
    %v2015 = vadd.f32 0.0, %v2014
    %v2016 = vpop.f32.mrb[0].mxu0
    %v2017 = vadd.f32 0.0, %v2016
    %2018 = vmatprep.mubr.f32.mxu0 0.0
    %2019 = vmatmul.mubr.f32.gmra.mrb[0].mxu0 %v1874
    %v2020 = vpop.f32.mrb[0].mxu0
    %v2021 = vadd.f32 0.0, %v2020
    %v2022 = vpop.f32.mrb[0].mxu0
    %v2023 = vadd.f32 0.0, %v2022
    %2024 = vmatprep.mubr.f32.mxu0 0.0
    %2025 = vmatmul.mubr.f32.gmra.mrb[0].mxu0 %v1877
    %v2026 = vpop.f32.mrb[0].mxu0
    %v2027 = vadd.f32 0.0, %v2026
    %v2028 = vpop.f32.mrb[0].mxu0
    %v2029 = vadd.f32 0.0, %v2028
    %2030 = vmatprep.mubr.f32.mxu0 0.0
    %2031 = vmatmul.mubr.f32.gmra.mrb[0].mxu0 %v1880
    %v2032 = vpop.f32.mrb[0].mxu0
    %v2033 = vadd.f32 0.0, %v2032
    %v2034 = vpop.f32.mrb[0].mxu0
    %v2035 = vadd.f32 0.0, %v2034
    %2036 = vmatprep.mubr.f32.mxu0 0.0
    %2037 = vmatmul.mubr.f32.gmra.mrb[0].mxu0 %v1883
    %v2038 = vpop.f32.mrb[0].mxu0
    %v2039 = vadd.f32 0.0, %v2038
    %v2040 = vpop.f32.mrb[0].mxu0
    %v2041 = vadd.f32 0.0, %v2040
    %2042 = vmatprep.mubr.f32.mxu0 0.0
    %2043 = vmatmul.mubr.f32.gmra.mrb[0].mxu0 %v1886
    %v2044 = vpop.f32.mrb[0].mxu0
    %v2045 = vadd.f32 0.0, %v2044
    %v2046 = vpop.f32.mrb[0].mxu0
    %v2047 = vadd.f32 0.0, %v2046
    %2048 = vdwg.mxu0
    %v2049 = vmul.f32 %v1955, %v653
    %v2050 = vmul.f32 %v1957, %v655
    %v2051 = vmul.f32 %v1961, %v659
    %v2052 = vmul.f32 %v1963, %v661
    %v2053 = vmul.f32 %v1967, %v665
    %v2054 = vmul.f32 %v1969, %v667
    %v2055 = vmul.f32 %v1973, %v671
    %v2056 = vmul.f32 %v1975, %v673
    %v2057 = vmul.f32 %v1979, %v677
    %v2058 = vmul.f32 %v1981, %v679
    %v2059 = vmul.f32 %v1985, %v683
    %v2060 = vmul.f32 %v1987, %v685
    %v2061 = vmul.f32 %v1991, %v689
    %v2062 = vmul.f32 %v1993, %v691
    %v2063 = vmul.f32 %v1997, %v695
    %v2064 = vmul.f32 %v1999, %v697
    %v2065 = vmul.f32 %v2003, %v701
    %v2066 = vmul.f32 %v2005, %v703
    %v2067 = vmul.f32 %v2009, %v707
    %v2068 = vmul.f32 %v2011, %v709
    %v2069 = vmul.f32 %v2015, %v713
    %v2070 = vmul.f32 %v2017, %v715
    %v2071 = vmul.f32 %v2021, %v719
    %v2072 = vmul.f32 %v2023, %v721
    %v2073 = vmul.f32 %v2027, %v725
    %v2074 = vmul.f32 %v2029, %v727
    %v2075 = vmul.f32 %v2033, %v731
    %v2076 = vmul.f32 %v2035, %v733
    %v2077 = vmul.f32 %v2039, %v737
    %v2078 = vmul.f32 %v2041, %v739
    %v2079 = vmul.f32 %v2045, %v743
    %v2080 = vmul.f32 %v2047, %v745
    %2081 = vmatprep.subr.mxu0 0.0
    %2082 = vmatpush1.msra.mxu0 %v771
    %2083 = vmatprep.subr.mxu0 0.0
    %2084 = vmatpush1.msra.mxu0 %v772
    %2085 = vmatprep.subr.mxu0 0.0
    %2086 = vmatpush1.msra.mxu0 %v773
    %2087 = vmatprep.subr.mxu0 0.0
    %2088 = vmatpush1.msra.mxu0 %v774
    %2089 = vmatprep.subr.mxu0 0.0
    %2090 = vmatpush1.msra.mxu0 %v775
    %2091 = vmatprep.subr.mxu0 0.0
    %2092 = vmatpush1.msra.mxu0 %v776
    %2093 = vmatprep.subr.mxu0 0.0
    %2094 = vmatpush1.msra.mxu0 %v777
    %2095 = vmatprep.subr.mxu0 0.0
    %2096 = vmatpush1.msra.mxu0 %v778
    %2097 = vmatprep.subr.mxu0 0.0
    %2098 = vmatpush1.msra.mxu0 %v779
    %2099 = vmatprep.subr.mxu0 0.0
    %2100 = vmatpush1.msra.mxu0 %v780
    %2101 = vmatprep.subr.mxu0 0.0
    %2102 = vmatpush1.msra.mxu0 %v781
    %2103 = vmatprep.subr.mxu0 0.0
    %2104 = vmatpush1.msra.mxu0 %v782
    %2105 = vmatprep.subr.mxu0 0.0
    %2106 = vmatpush1.msra.mxu0 %v783
    %2107 = vmatprep.subr.mxu0 0.0
    %2108 = vmatpush1.msra.mxu0 %v784
    %2109 = vmatprep.subr.mxu0 0.0
    %2110 = vmatpush1.msra.mxu0 %v785
    %2111 = vmatprep.subr.mxu0 0.0
    %2112 = vmatpush1.msra.mxu0 %v786
    %2113 = vmatprep.subr.mxu0 0.0
    %2114 = vmatpush1.msra.mxu0 %v787
    %2115 = vmatprep.subr.mxu0 0.0
    %2116 = vmatpush1.msra.mxu0 %v788
    %2117 = vmatprep.subr.mxu0 0.0
    %2118 = vmatpush1.msra.mxu0 %v789
    %2119 = vmatprep.subr.mxu0 0.0
    %2120 = vmatpush1.msra.mxu0 %v790
    %2121 = vmatprep.subr.mxu0 0.0
    %2122 = vmatpush1.msra.mxu0 %v791
    %2123 = vmatprep.subr.mxu0 0.0
    %2124 = vmatpush1.msra.mxu0 %v792
    %2125 = vmatprep.subr.mxu0 0.0
    %2126 = vmatpush1.msra.mxu0 %v793
    %2127 = vmatprep.subr.mxu0 0.0
    %2128 = vmatpush1.msra.mxu0 %v794
    %2129 = vmatprep.subr.mxu0 0.0
    %2130 = vmatpush1.msra.mxu0 %v795
    %2131 = vmatprep.subr.mxu0 0.0
    %2132 = vmatpush1.msra.mxu0 %v796
    %2133 = vmatprep.subr.mxu0 0.0
    %2134 = vmatpush1.msra.mxu0 %v797
    %2135 = vmatprep.subr.mxu0 0.0
    %2136 = vmatpush1.msra.mxu0 %v798
    %2137 = vmatprep.subr.mxu0 0.0
    %2138 = vmatpush1.msra.mxu0 %v799
    %2139 = vmatprep.subr.mxu0 0.0
    %2140 = vmatpush1.msra.mxu0 %v800
    %2141 = vmatprep.subr.mxu0 0.0
    %2142 = vmatpush1.msra.mxu0 %v801
    %2143 = vmatprep.subr.mxu0 0.0
    %2144 = vmatpush1.msra.mxu0 %v802
    %2145 = vmatprep.mubr.f32.mxu0 %v2050
    %2146 = vmatmul.mubr.f32.gmra.mrb[0].mxu0 %v2049
    %v2147 = vpop.f32.mrb[0].mxu0
    %v2148 = vadd.f32 0.0, %v2147
    %v2149 = vpop.f32.mrb[0].mxu0
    %2150 = vmatprep.mubr.f32.mxu0 %v2052
    %2151 = vmatmul.mubr.f32.gmra.mrb[0].mxu0 %v2051
    %v2152 = vpop.f32.mrb[0].mxu0
    %v2153 = vadd.f32 0.0, %v2152
    %v2154 = vpop.f32.mrb[0].mxu0
    %2155 = vmatprep.mubr.f32.mxu0 %v2054
    %2156 = vmatmul.mubr.f32.gmra.mrb[0].mxu0 %v2053
    %v2157 = vpop.f32.mrb[0].mxu0
    %v2158 = vadd.f32 0.0, %v2157
    %v2159 = vpop.f32.mrb[0].mxu0
    %2160 = vmatprep.mubr.f32.mxu0 %v2056
    %2161 = vmatmul.mubr.f32.gmra.mrb[0].mxu0 %v2055
    %v2162 = vpop.f32.mrb[0].mxu0
    %v2163 = vadd.f32 0.0, %v2162
    %v2164 = vpop.f32.mrb[0].mxu0
    %2165 = vmatprep.mubr.f32.mxu0 %v2058
    %2166 = vmatmul.mubr.f32.gmra.mrb[0].mxu0 %v2057
    %v2167 = vpop.f32.mrb[0].mxu0
    %v2168 = vadd.f32 0.0, %v2167
    %v2169 = vpop.f32.mrb[0].mxu0
    %2170 = vmatprep.mubr.f32.mxu0 %v2060
    %2171 = vmatmul.mubr.f32.gmra.mrb[0].mxu0 %v2059
    %v2172 = vpop.f32.mrb[0].mxu0
    %v2173 = vadd.f32 0.0, %v2172
    %v2174 = vpop.f32.mrb[0].mxu0
    %2175 = vmatprep.mubr.f32.mxu0 %v2062
    %2176 = vmatmul.mubr.f32.gmra.mrb[0].mxu0 %v2061
    %v2177 = vpop.f32.mrb[0].mxu0
    %v2178 = vadd.f32 0.0, %v2177
    %v2179 = vpop.f32.mrb[0].mxu0
    %2180 = vmatprep.mubr.f32.mxu0 %v2064
    %2181 = vmatmul.mubr.f32.gmra.mrb[0].mxu0 %v2063
    %v2182 = vpop.f32.mrb[0].mxu0
    %v2183 = vadd.f32 0.0, %v2182
    %v2184 = vpop.f32.mrb[0].mxu0
    %2185 = vmatprep.mubr.f32.mxu0 %v2066
    %2186 = vmatmul.mubr.f32.gmra.mrb[0].mxu0 %v2065
    %v2187 = vpop.f32.mrb[0].mxu0
    %v2188 = vadd.f32 0.0, %v2187
    %v2189 = vpop.f32.mrb[0].mxu0
    %2190 = vmatprep.mubr.f32.mxu0 %v2068
    %2191 = vmatmul.mubr.f32.gmra.mrb[0].mxu0 %v2067
    %v2192 = vpop.f32.mrb[0].mxu0
    %v2193 = vadd.f32 0.0, %v2192
    %v2194 = vpop.f32.mrb[0].mxu0
    %2195 = vmatprep.mubr.f32.mxu0 %v2070
    %2196 = vmatmul.mubr.f32.gmra.mrb[0].mxu0 %v2069
    %v2197 = vpop.f32.mrb[0].mxu0
    %v2198 = vadd.f32 0.0, %v2197
    %v2199 = vpop.f32.mrb[0].mxu0
    %2200 = vmatprep.mubr.f32.mxu0 %v2072
    %2201 = vmatmul.mubr.f32.gmra.mrb[0].mxu0 %v2071
    %v2202 = vpop.f32.mrb[0].mxu0
    %v2203 = vadd.f32 0.0, %v2202
    %v2204 = vpop.f32.mrb[0].mxu0
    %2205 = vmatprep.mubr.f32.mxu0 %v2074
    %2206 = vmatmul.mubr.f32.gmra.mrb[0].mxu0 %v2073
    %v2207 = vpop.f32.mrb[0].mxu0
    %v2208 = vadd.f32 0.0, %v2207
    %v2209 = vpop.f32.mrb[0].mxu0
    %2210 = vmatprep.mubr.f32.mxu0 %v2076
    %2211 = vmatmul.mubr.f32.gmra.mrb[0].mxu0 %v2075
    %v2212 = vpop.f32.mrb[0].mxu0
    %v2213 = vadd.f32 0.0, %v2212
    %v2214 = vpop.f32.mrb[0].mxu0
    %2215 = vmatprep.mubr.f32.mxu0 %v2078
    %2216 = vmatmul.mubr.f32.gmra.mrb[0].mxu0 %v2077
    %v2217 = vpop.f32.mrb[0].mxu0
    %v2218 = vadd.f32 0.0, %v2217
    %v2219 = vpop.f32.mrb[0].mxu0
    %2220 = vmatprep.mubr.f32.mxu0 %v2080
    %2221 = vmatmul.mubr.f32.gmra.mrb[0].mxu0 %v2079
    %v2222 = vpop.f32.mrb[0].mxu0
    %v2223 = vadd.f32 0.0, %v2222
    %v2224 = vpop.f32.mrb[0].mxu0
    %2225 = vdwg.mxu0
    %v2227 = vsel %vm307, %v1691, 0
    %v2230 = vsel %vm307, %v1692, 0
    %v2233 = vsel %vm307, %v1693, 0
    %v2236 = vsel %vm307, %v1694, 0
    %2238 = vmatprep.subr.mxu0 0.0
    %2239 = vmatpush1.msra.mxu0 %v803
    %2240 = vmatprep.subr.mxu0 0.0
    %2241 = vmatpush1.msra.mxu0 %v804
    %2242 = vmatprep.subr.mxu0 0.0
    %2243 = vmatpush1.msra.mxu0 0.0
    %2244 = vmatprep.subr.mxu0 0.0
    %2245 = vmatpush1.msra.mxu0 0.0
    %2246 = vmatprep.subr.mxu0 0.0
    %2247 = vmatpush1.msra.mxu0 0.0
    %2248 = vmatprep.subr.mxu0 0.0
    %2249 = vmatpush1.msra.mxu0 0.0
    %2250 = vmatprep.subr.mxu0 0.0
    %2251 = vmatpush1.msra.mxu0 0.0
    %2252 = vmatprep.subr.mxu0 0.0
    %2253 = vmatpush1.msra.mxu0 0.0
    %2254 = vmatprep.subr.mxu0 0.0
    %2255 = vmatpush1.msra.mxu0 0.0
    %2256 = vmatprep.subr.mxu0 0.0
    %2257 = vmatpush1.msra.mxu0 0.0
    %2258 = vmatprep.subr.mxu0 0.0
    %2259 = vmatpush1.msra.mxu0 0.0
    %2260 = vmatprep.subr.mxu0 0.0
    %2261 = vmatpush1.msra.mxu0 0.0
    %2262 = vmatprep.subr.mxu0 0.0
    %2263 = vmatpush1.msra.mxu0 0.0
    %2264 = vmatprep.subr.mxu0 0.0
    %2265 = vmatpush1.msra.mxu0 0.0
    %2266 = vmatprep.subr.mxu0 0.0
    %2267 = vmatpush1.msra.mxu0 0.0
    %2268 = vmatprep.subr.mxu0 0.0
    %2269 = vmatpush1.msra.mxu0 0.0
    %2270 = vmatprep.subr.mxu0 0.0
    %2271 = vmatpush1.msra.mxu0 0.0
    %2272 = vmatprep.subr.mxu0 0.0
    %2273 = vmatpush1.msra.mxu0 0.0
    %2274 = vmatprep.subr.mxu0 0.0
    %2275 = vmatpush1.msra.mxu0 0.0
    %2276 = vmatprep.subr.mxu0 0.0
    %2277 = vmatpush1.msra.mxu0 0.0
    %2278 = vmatprep.subr.mxu0 0.0
    %2279 = vmatpush1.msra.mxu0 0.0
    %2280 = vmatprep.subr.mxu0 0.0
    %2281 = vmatpush1.msra.mxu0 0.0
    %2282 = vmatprep.subr.mxu0 0.0
    %2283 = vmatpush1.msra.mxu0 0.0
    %2284 = vmatprep.subr.mxu0 0.0
    %2285 = vmatpush1.msra.mxu0 0.0
    %2286 = vmatprep.subr.mxu0 0.0
    %2287 = vmatpush1.msra.mxu0 0.0
    %2288 = vmatprep.subr.mxu0 0.0
    %2289 = vmatpush1.msra.mxu0 0.0
    %2290 = vmatprep.subr.mxu0 0.0
    %2291 = vmatpush1.msra.mxu0 0.0
    %2292 = vmatprep.subr.mxu0 0.0
    %2293 = vmatpush1.msra.mxu0 0.0
    %2294 = vmatprep.subr.mxu0 0.0
    %2295 = vmatpush1.msra.mxu0 0.0
    %2296 = vmatprep.subr.mxu0 0.0
    %2297 = vmatpush1.msra.mxu0 0.0
    %2298 = vmatprep.subr.mxu0 0.0
    %2299 = vmatpush1.msra.mxu0 0.0
    %2300 = vmatprep.subr.mxu0 0.0
    %2301 = vmatpush1.msra.mxu0 0.0
    %2302 = vmatprep.mubr.f32.mxu0 0.0
    %2303 = vmatmul.mubr.f32.gmra.mrb[0].mxu0 %v2227
    %v2304 = vpop.f32.mrb[0].mxu0
    %v2305 = vadd.f32 0.0, %v2304
    %v2306 = vpop.f32.mrb[0].mxu0
    %2307 = vmatprep.mubr.f32.mxu0 0.0
    %2308 = vmatmul.mubr.f32.gmra.mrb[0].mxu0 %v2230
    %v2309 = vpop.f32.mrb[0].mxu0
    %v2310 = vadd.f32 0.0, %v2309
    %v2311 = vpop.f32.mrb[0].mxu0
    %2312 = vmatprep.mubr.f32.mxu0 0.0
    %2313 = vmatmul.mubr.f32.gmra.mrb[0].mxu0 %v2233
    %v2314 = vpop.f32.mrb[0].mxu0
    %v2315 = vadd.f32 0.0, %v2314
    %v2316 = vpop.f32.mrb[0].mxu0
    %2317 = vmatprep.mubr.f32.mxu0 0.0
    %2318 = vmatmul.mubr.f32.gmra.mrb[0].mxu0 %v2236
    %v2319 = vpop.f32.mrb[0].mxu0
    %v2320 = vadd.f32 0.0, %v2319
    %v2321 = vpop.f32.mrb[0].mxu0
    %2322 = vdwg.mxu0
    %2323 = vmatprep.subr.mxu0 0.0
    %2324 = vmatpush1.msra.mxu0 %v2148
    %2325 = vmatprep.subr.mxu0 0.0
    %2326 = vmatpush1.msra.mxu0 %v2153
    %2327 = vmatprep.subr.mxu0 0.0
    %2328 = vmatpush1.msra.mxu0 %v2158
    %2329 = vmatprep.subr.mxu0 0.0
    %2330 = vmatpush1.msra.mxu0 %v2163
    %2331 = vmatprep.subr.mxu0 0.0
    %2332 = vmatpush1.msra.mxu0 %v2168
    %2333 = vmatprep.subr.mxu0 0.0
    %2334 = vmatpush1.msra.mxu0 %v2173
    %2335 = vmatprep.subr.mxu0 0.0
    %2336 = vmatpush1.msra.mxu0 %v2178
    %2337 = vmatprep.subr.mxu0 0.0
    %2338 = vmatpush1.msra.mxu0 %v2183
    %2339 = vmatprep.subr.mxu0 0.0
    %2340 = vmatpush1.msra.mxu0 %v2188
    %2341 = vmatprep.subr.mxu0 0.0
    %2342 = vmatpush1.msra.mxu0 %v2193
    %2343 = vmatprep.subr.mxu0 0.0
    %2344 = vmatpush1.msra.mxu0 %v2198
    %2345 = vmatprep.subr.mxu0 0.0
    %2346 = vmatpush1.msra.mxu0 %v2203
    %2347 = vmatprep.subr.mxu0 0.0
    %2348 = vmatpush1.msra.mxu0 %v2208
    %2349 = vmatprep.subr.mxu0 0.0
    %2350 = vmatpush1.msra.mxu0 %v2213
    %2351 = vmatprep.subr.mxu0 0.0
    %2352 = vmatpush1.msra.mxu0 %v2218
    %2353 = vmatprep.subr.mxu0 0.0
    %2354 = vmatpush1.msra.mxu0 %v2223
    %2355 = vmatprep.subr.mxu0 0.0
    %2356 = vmatpush1.msra.mxu0 0.0
    %2357 = vmatprep.subr.mxu0 0.0
    %2358 = vmatpush1.msra.mxu0 0.0
    %2359 = vmatprep.subr.mxu0 0.0
    %2360 = vmatpush1.msra.mxu0 0.0
    %2361 = vmatprep.subr.mxu0 0.0
    %2362 = vmatpush1.msra.mxu0 0.0
    %2363 = vmatprep.subr.mxu0 0.0
    %2364 = vmatpush1.msra.mxu0 0.0
    %2365 = vmatprep.subr.mxu0 0.0
    %2366 = vmatpush1.msra.mxu0 0.0
    %2367 = vmatprep.subr.mxu0 0.0
    %2368 = vmatpush1.msra.mxu0 0.0
    %2369 = vmatprep.subr.mxu0 0.0
    %2370 = vmatpush1.msra.mxu0 0.0
    %2371 = vmatprep.subr.mxu0 0.0
    %2372 = vmatpush1.msra.mxu0 0.0
    %2373 = vmatprep.subr.mxu0 0.0
    %2374 = vmatpush1.msra.mxu0 0.0
    %2375 = vmatprep.subr.mxu0 0.0
    %2376 = vmatpush1.msra.mxu0 0.0
    %2377 = vmatprep.subr.mxu0 0.0
    %2378 = vmatpush1.msra.mxu0 0.0
    %2379 = vmatprep.subr.mxu0 0.0
    %2380 = vmatpush1.msra.mxu0 0.0
    %2381 = vmatprep.subr.mxu0 0.0
    %2382 = vmatpush1.msra.mxu0 0.0
    %2383 = vmatprep.subr.mxu0 0.0
    %2384 = vmatpush1.msra.mxu0 0.0
    %2385 = vmatprep.subr.mxu0 0.0
    %2386 = vmatpush1.msra.mxu0 0.0
    %2387 = vmatprep.mubr.f32.mxu0 0.0
    %2388 = vmatmul.mubr.f32.gmra.mrb[0].mxu0 %v763
    %v2389 = vpop.f32.mrb[0].mxu0
    %v2390 = vadd.f32 %v2305, %v2389
    %v2391 = vpop.f32.mrb[0].mxu0
    %2392 = vmatprep.mubr.f32.mxu0 0.0
    %2393 = vmatmul.mubr.f32.gmra.mrb[0].mxu0 %v764
    %v2394 = vpop.f32.mrb[0].mxu0
    %v2395 = vadd.f32 %v2310, %v2394
    %v2396 = vpop.f32.mrb[0].mxu0
    %2397 = vmatprep.mubr.f32.mxu0 0.0
    %2398 = vmatmul.mubr.f32.gmra.mrb[0].mxu0 %v765
    %v2399 = vpop.f32.mrb[0].mxu0
    %v2400 = vadd.f32 %v2315, %v2399
    %v2401 = vpop.f32.mrb[0].mxu0
    %2402 = vmatprep.mubr.f32.mxu0 0.0
    %2403 = vmatmul.mubr.f32.gmra.mrb[0].mxu0 %v766
    %v2404 = vpop.f32.mrb[0].mxu0
    %v2405 = vadd.f32 %v2320, %v2404
    %v2406 = vpop.f32.mrb[0].mxu0
    %2407 = vdwg.mxu0
    %v2408 = vadd.f32 %v2390, %v810
    %v2409 = vadd.f32 %v2395, %v810
    %v2410 = vadd.f32 %v2400, %v810
    %v2411 = vadd.f32 %v2405, %v810
    %v2412 = vmax.f32 %v2408, 0.0
    %v2413 = vmax.f32 %v2409, 0.0
    %v2414 = vmax.f32 %v2410, 0.0
    %v2415 = vmax.f32 %v2411, 0.0
    %2416 = vmatprep.subr.mxu0 0.0
    %2417 = vmatpush1.msra.mxu0 %v2412
    %2418 = vmatprep.subr.mxu0 0.0
    %2419 = vmatpush1.msra.mxu0 %v2413
    %2420 = vmatprep.subr.mxu0 0.0
    %2421 = vmatpush1.msra.mxu0 %v2414
    %2422 = vmatprep.subr.mxu0 0.0
    %2423 = vmatpush1.msra.mxu0 %v2415
    %2424 = vmatprep.subr.mxu0 0.0
    %2425 = vmatpush1.msra.mxu0 0.0
    %2426 = vmatprep.subr.mxu0 0.0
    %2427 = vmatpush1.msra.mxu0 0.0
    %2428 = vmatprep.subr.mxu0 0.0
    %2429 = vmatpush1.msra.mxu0 0.0
    %2430 = vmatprep.subr.mxu0 0.0
    %2431 = vmatpush1.msra.mxu0 0.0
    %2432 = vmatprep.subr.mxu0 0.0
    %2433 = vmatpush1.msra.mxu0 0.0
    %2434 = vmatprep.subr.mxu0 0.0
    %2435 = vmatpush1.msra.mxu0 0.0
    %2436 = vmatprep.subr.mxu0 0.0
    %2437 = vmatpush1.msra.mxu0 0.0
    %2438 = vmatprep.subr.mxu0 0.0
    %2439 = vmatpush1.msra.mxu0 0.0
    %2440 = vmatprep.subr.mxu0 0.0
    %2441 = vmatpush1.msra.mxu0 0.0
    %2442 = vmatprep.subr.mxu0 0.0
    %2443 = vmatpush1.msra.mxu0 0.0
    %2444 = vmatprep.subr.mxu0 0.0
    %2445 = vmatpush1.msra.mxu0 0.0
    %2446 = vmatprep.subr.mxu0 0.0
    %2447 = vmatpush1.msra.mxu0 0.0
    %2448 = vmatprep.subr.mxu0 0.0
    %2449 = vmatpush1.msra.mxu0 0.0
    %2450 = vmatprep.subr.mxu0 0.0
    %2451 = vmatpush1.msra.mxu0 0.0
    %2452 = vmatprep.subr.mxu0 0.0
    %2453 = vmatpush1.msra.mxu0 0.0
    %2454 = vmatprep.subr.mxu0 0.0
    %2455 = vmatpush1.msra.mxu0 0.0
    %2456 = vmatprep.subr.mxu0 0.0
    %2457 = vmatpush1.msra.mxu0 0.0
    %2458 = vmatprep.subr.mxu0 0.0
    %2459 = vmatpush1.msra.mxu0 0.0
    %2460 = vmatprep.subr.mxu0 0.0
    %2461 = vmatpush1.msra.mxu0 0.0
    %2462 = vmatprep.subr.mxu0 0.0
    %2463 = vmatpush1.msra.mxu0 0.0
    %2464 = vmatprep.subr.mxu0 0.0
    %2465 = vmatpush1.msra.mxu0 0.0
    %2466 = vmatprep.subr.mxu0 0.0
    %2467 = vmatpush1.msra.mxu0 0.0
    %2468 = vmatprep.subr.mxu0 0.0
    %2469 = vmatpush1.msra.mxu0 0.0
    %2470 = vmatprep.subr.mxu0 0.0
    %2471 = vmatpush1.msra.mxu0 0.0
    %2472 = vmatprep.subr.mxu0 0.0
    %2473 = vmatpush1.msra.mxu0 0.0
    %2474 = vmatprep.subr.mxu0 0.0
    %2475 = vmatpush1.msra.mxu0 0.0
    %2476 = vmatprep.subr.mxu0 0.0
    %2477 = vmatpush1.msra.mxu0 0.0
    %2478 = vmatprep.subr.mxu0 0.0
    %2479 = vmatpush1.msra.mxu0 0.0
    %2480 = vmatprep.mubr.f32.mxu0 0.0
    %2481 = vmatmul.mubr.f32.gmra.mrb[0].mxu0 %v927
    %v2482 = vpop.f32.mrb[0].mxu0
    %v2483 = vadd.f32 0.0, %v2482
    %v2484 = vpop.f32.mrb[0].mxu0
    %2485 = vmatprep.mubr.f32.mxu0 0.0
    %2486 = vmatmul.mubr.f32.gmra.mrb[0].mxu0 %v930
    %v2487 = vpop.f32.mrb[0].mxu0
    %v2488 = vadd.f32 0.0, %v2487
    %v2489 = vpop.f32.mrb[0].mxu0
    %2490 = vmatprep.mubr.f32.mxu0 0.0
    %2491 = vmatmul.mubr.f32.gmra.mrb[0].mxu0 %v933
    %v2492 = vpop.f32.mrb[0].mxu0
    %v2493 = vadd.f32 0.0, %v2492
    %v2494 = vpop.f32.mrb[0].mxu0
    %2495 = vmatprep.mubr.f32.mxu0 0.0
    %2496 = vmatmul.mubr.f32.gmra.mrb[0].mxu0 %v936
    %v2497 = vpop.f32.mrb[0].mxu0
    %v2498 = vadd.f32 0.0, %v2497
    %v2499 = vpop.f32.mrb[0].mxu0
    %2500 = vmatprep.mubr.f32.mxu0 0.0
    %2501 = vmatmul.mubr.f32.gmra.mrb[0].mxu0 %v939
    %v2502 = vpop.f32.mrb[0].mxu0
    %v2503 = vadd.f32 0.0, %v2502
    %v2504 = vpop.f32.mrb[0].mxu0
    %2505 = vmatprep.mubr.f32.mxu0 0.0
    %2506 = vmatmul.mubr.f32.gmra.mrb[0].mxu0 %v942
    %v2507 = vpop.f32.mrb[0].mxu0
    %v2508 = vadd.f32 0.0, %v2507
    %v2509 = vpop.f32.mrb[0].mxu0
    %2510 = vmatprep.mubr.f32.mxu0 0.0
    %2511 = vmatmul.mubr.f32.gmra.mrb[0].mxu0 %v945
    %v2512 = vpop.f32.mrb[0].mxu0
    %v2513 = vadd.f32 0.0, %v2512
    %v2514 = vpop.f32.mrb[0].mxu0
    %2515 = vmatprep.mubr.f32.mxu0 0.0
    %2516 = vmatmul.mubr.f32.gmra.mrb[0].mxu0 %v948
    %v2517 = vpop.f32.mrb[0].mxu0
    %v2518 = vadd.f32 0.0, %v2517
    %v2519 = vpop.f32.mrb[0].mxu0
    %2520 = vmatprep.mubr.f32.mxu0 0.0
    %2521 = vmatmul.mubr.f32.gmra.mrb[0].mxu0 %v951
    %v2522 = vpop.f32.mrb[0].mxu0
    %v2523 = vadd.f32 0.0, %v2522
    %v2524 = vpop.f32.mrb[0].mxu0
    %2525 = vmatprep.mubr.f32.mxu0 0.0
    %2526 = vmatmul.mubr.f32.gmra.mrb[0].mxu0 %v954
    %v2527 = vpop.f32.mrb[0].mxu0
    %v2528 = vadd.f32 0.0, %v2527
    %v2529 = vpop.f32.mrb[0].mxu0
    %2530 = vmatprep.mubr.f32.mxu0 0.0
    %2531 = vmatmul.mubr.f32.gmra.mrb[0].mxu0 %v957
    %v2532 = vpop.f32.mrb[0].mxu0
    %v2533 = vadd.f32 0.0, %v2532
    %v2534 = vpop.f32.mrb[0].mxu0
    %2535 = vmatprep.mubr.f32.mxu0 0.0
    %2536 = vmatmul.mubr.f32.gmra.mrb[0].mxu0 %v960
    %v2537 = vpop.f32.mrb[0].mxu0
    %v2538 = vadd.f32 0.0, %v2537
    %v2539 = vpop.f32.mrb[0].mxu0
    %2540 = vmatprep.mubr.f32.mxu0 0.0
    %2541 = vmatmul.mubr.f32.gmra.mrb[0].mxu0 %v963
    %v2542 = vpop.f32.mrb[0].mxu0
    %v2543 = vadd.f32 0.0, %v2542
    %v2544 = vpop.f32.mrb[0].mxu0
    %2545 = vmatprep.mubr.f32.mxu0 0.0
    %2546 = vmatmul.mubr.f32.gmra.mrb[0].mxu0 %v966
    %v2547 = vpop.f32.mrb[0].mxu0
    %v2548 = vadd.f32 0.0, %v2547
    %v2549 = vpop.f32.mrb[0].mxu0
    %2550 = vmatprep.mubr.f32.mxu0 0.0
    %2551 = vmatmul.mubr.f32.gmra.mrb[0].mxu0 %v969
    %v2552 = vpop.f32.mrb[0].mxu0
    %v2553 = vadd.f32 0.0, %v2552
    %v2554 = vpop.f32.mrb[0].mxu0
    %2555 = vmatprep.mubr.f32.mxu0 0.0
    %2556 = vmatmul.mubr.f32.gmra.mrb[0].mxu0 %v972
    %v2557 = vpop.f32.mrb[0].mxu0
    %v2558 = vadd.f32 0.0, %v2557
    %v2559 = vpop.f32.mrb[0].mxu0
    %2560 = vdwg.mxu0
    %v2562 = vsel %vm307, %v2483, 0
    %v2565 = vsel %vm307, %v2488, 0
    %v2568 = vsel %vm307, %v2493, 0
    %v2571 = vsel %vm307, %v2498, 0
    %v2574 = vsel %vm307, %v2503, 0
    %v2577 = vsel %vm307, %v2508, 0
    %v2580 = vsel %vm307, %v2513, 0
    %v2583 = vsel %vm307, %v2518, 0
    %v2586 = vsel %vm307, %v2523, 0
    %v2589 = vsel %vm307, %v2528, 0
    %v2592 = vsel %vm307, %v2533, 0
    %v2595 = vsel %vm307, %v2538, 0
    %v2598 = vsel %vm307, %v2543, 0
    %v2601 = vsel %vm307, %v2548, 0
    %v2604 = vsel %vm307, %v2553, 0
    %v2607 = vsel %vm307, %v2558, 0
    %2609 = vmatprep.subr.mxu0 %v768
    %2610 = vmatpush1.msra.mxu0 %v767
    %2611 = vmatprep.subr.mxu0 %v770
    %2612 = vmatpush1.msra.mxu0 %v769
    %2613 = vmatprep.subr.mxu0 0.0
    %2614 = vmatpush1.msra.mxu0 0.0
    %2615 = vmatprep.subr.mxu0 0.0
    %2616 = vmatpush1.msra.mxu0 0.0
    %2617 = vmatprep.subr.mxu0 0.0
    %2618 = vmatpush1.msra.mxu0 0.0
    %2619 = vmatprep.subr.mxu0 0.0
    %2620 = vmatpush1.msra.mxu0 0.0
    %2621 = vmatprep.subr.mxu0 0.0
    %2622 = vmatpush1.msra.mxu0 0.0
    %2623 = vmatprep.subr.mxu0 0.0
    %2624 = vmatpush1.msra.mxu0 0.0
    %2625 = vmatprep.subr.mxu0 0.0
    %2626 = vmatpush1.msra.mxu0 0.0
    %2627 = vmatprep.subr.mxu0 0.0
    %2628 = vmatpush1.msra.mxu0 0.0
    %2629 = vmatprep.subr.mxu0 0.0
    %2630 = vmatpush1.msra.mxu0 0.0
    %2631 = vmatprep.subr.mxu0 0.0
    %2632 = vmatpush1.msra.mxu0 0.0
    %2633 = vmatprep.subr.mxu0 0.0
    %2634 = vmatpush1.msra.mxu0 0.0
    %2635 = vmatprep.subr.mxu0 0.0
    %2636 = vmatpush1.msra.mxu0 0.0
    %2637 = vmatprep.subr.mxu0 0.0
    %2638 = vmatpush1.msra.mxu0 0.0
    %2639 = vmatprep.subr.mxu0 0.0
    %2640 = vmatpush1.msra.mxu0 0.0
    %2641 = vmatprep.subr.mxu0 0.0
    %2642 = vmatpush1.msra.mxu0 0.0
    %2643 = vmatprep.subr.mxu0 0.0
    %2644 = vmatpush1.msra.mxu0 0.0
    %2645 = vmatprep.subr.mxu0 0.0
    %2646 = vmatpush1.msra.mxu0 0.0
    %2647 = vmatprep.subr.mxu0 0.0
    %2648 = vmatpush1.msra.mxu0 0.0
    %2649 = vmatprep.subr.mxu0 0.0
    %2650 = vmatpush1.msra.mxu0 0.0
    %2651 = vmatprep.subr.mxu0 0.0
    %2652 = vmatpush1.msra.mxu0 0.0
    %2653 = vmatprep.subr.mxu0 0.0
    %2654 = vmatpush1.msra.mxu0 0.0
    %2655 = vmatprep.subr.mxu0 0.0
    %2656 = vmatpush1.msra.mxu0 0.0
    %2657 = vmatprep.subr.mxu0 0.0
    %2658 = vmatpush1.msra.mxu0 0.0
    %2659 = vmatprep.subr.mxu0 0.0
    %2660 = vmatpush1.msra.mxu0 0.0
    %2661 = vmatprep.subr.mxu0 0.0
    %2662 = vmatpush1.msra.mxu0 0.0
    %2663 = vmatprep.subr.mxu0 0.0
    %2664 = vmatpush1.msra.mxu0 0.0
    %2665 = vmatprep.subr.mxu0 0.0
    %2666 = vmatpush1.msra.mxu0 0.0
    %2667 = vmatprep.subr.mxu0 0.0
    %2668 = vmatpush1.msra.mxu0 0.0
    %2669 = vmatprep.subr.mxu0 0.0
    %2670 = vmatpush1.msra.mxu0 0.0
    %2671 = vmatprep.subr.mxu0 0.0
    %2672 = vmatpush1.msra.mxu0 0.0
    %2673 = vmatprep.mubr.f32.mxu0 0.0
    %2674 = vmatmul.mubr.f32.gmra.mrb[0].mxu0 %v2562
    %v2675 = vpop.f32.mrb[0].mxu0
    %v2676 = vadd.f32 0.0, %v2675
    %v2677 = vpop.f32.mrb[0].mxu0
    %v2678 = vadd.f32 0.0, %v2677
    %2679 = vmatprep.mubr.f32.mxu0 0.0
    %2680 = vmatmul.mubr.f32.gmra.mrb[0].mxu0 %v2565
    %v2681 = vpop.f32.mrb[0].mxu0
    %v2682 = vadd.f32 0.0, %v2681
    %v2683 = vpop.f32.mrb[0].mxu0
    %v2684 = vadd.f32 0.0, %v2683
    %2685 = vmatprep.mubr.f32.mxu0 0.0
    %2686 = vmatmul.mubr.f32.gmra.mrb[0].mxu0 %v2568
    %v2687 = vpop.f32.mrb[0].mxu0
    %v2688 = vadd.f32 0.0, %v2687
    %v2689 = vpop.f32.mrb[0].mxu0
    %v2690 = vadd.f32 0.0, %v2689
    %2691 = vmatprep.mubr.f32.mxu0 0.0
    %2692 = vmatmul.mubr.f32.gmra.mrb[0].mxu0 %v2571
    %v2693 = vpop.f32.mrb[0].mxu0
    %v2694 = vadd.f32 0.0, %v2693
    %v2695 = vpop.f32.mrb[0].mxu0
    %v2696 = vadd.f32 0.0, %v2695
    %2697 = vmatprep.mubr.f32.mxu0 0.0
    %2698 = vmatmul.mubr.f32.gmra.mrb[0].mxu0 %v2574
    %v2699 = vpop.f32.mrb[0].mxu0
    %v2700 = vadd.f32 0.0, %v2699
    %v2701 = vpop.f32.mrb[0].mxu0
    %v2702 = vadd.f32 0.0, %v2701
    %2703 = vmatprep.mubr.f32.mxu0 0.0
    %2704 = vmatmul.mubr.f32.gmra.mrb[0].mxu0 %v2577
    %v2705 = vpop.f32.mrb[0].mxu0
    %v2706 = vadd.f32 0.0, %v2705
    %v2707 = vpop.f32.mrb[0].mxu0
    %v2708 = vadd.f32 0.0, %v2707
    %2709 = vmatprep.mubr.f32.mxu0 0.0
    %2710 = vmatmul.mubr.f32.gmra.mrb[0].mxu0 %v2580
    %v2711 = vpop.f32.mrb[0].mxu0
    %v2712 = vadd.f32 0.0, %v2711
    %v2713 = vpop.f32.mrb[0].mxu0
    %v2714 = vadd.f32 0.0, %v2713
    %2715 = vmatprep.mubr.f32.mxu0 0.0
    %2716 = vmatmul.mubr.f32.gmra.mrb[0].mxu0 %v2583
    %v2717 = vpop.f32.mrb[0].mxu0
    %v2718 = vadd.f32 0.0, %v2717
    %v2719 = vpop.f32.mrb[0].mxu0
    %v2720 = vadd.f32 0.0, %v2719
    %2721 = vmatprep.mubr.f32.mxu0 0.0
    %2722 = vmatmul.mubr.f32.gmra.mrb[0].mxu0 %v2586
    %v2723 = vpop.f32.mrb[0].mxu0
    %v2724 = vadd.f32 0.0, %v2723
    %v2725 = vpop.f32.mrb[0].mxu0
    %v2726 = vadd.f32 0.0, %v2725
    %2727 = vmatprep.mubr.f32.mxu0 0.0
    %2728 = vmatmul.mubr.f32.gmra.mrb[0].mxu0 %v2589
    %v2729 = vpop.f32.mrb[0].mxu0
    %v2730 = vadd.f32 0.0, %v2729
    %v2731 = vpop.f32.mrb[0].mxu0
    %v2732 = vadd.f32 0.0, %v2731
    %2733 = vmatprep.mubr.f32.mxu0 0.0
    %2734 = vmatmul.mubr.f32.gmra.mrb[0].mxu0 %v2592
    %v2735 = vpop.f32.mrb[0].mxu0
    %v2736 = vadd.f32 0.0, %v2735
    %v2737 = vpop.f32.mrb[0].mxu0
    %v2738 = vadd.f32 0.0, %v2737
    %2739 = vmatprep.mubr.f32.mxu0 0.0
    %2740 = vmatmul.mubr.f32.gmra.mrb[0].mxu0 %v2595
    %v2741 = vpop.f32.mrb[0].mxu0
    %v2742 = vadd.f32 0.0, %v2741
    %v2743 = vpop.f32.mrb[0].mxu0
    %v2744 = vadd.f32 0.0, %v2743
    %2745 = vmatprep.mubr.f32.mxu0 0.0
    %2746 = vmatmul.mubr.f32.gmra.mrb[0].mxu0 %v2598
    %v2747 = vpop.f32.mrb[0].mxu0
    %v2748 = vadd.f32 0.0, %v2747
    %v2749 = vpop.f32.mrb[0].mxu0
    %v2750 = vadd.f32 0.0, %v2749
    %2751 = vmatprep.mubr.f32.mxu0 0.0
    %2752 = vmatmul.mubr.f32.gmra.mrb[0].mxu0 %v2601
    %v2753 = vpop.f32.mrb[0].mxu0
    %v2754 = vadd.f32 0.0, %v2753
    %v2755 = vpop.f32.mrb[0].mxu0
    %v2756 = vadd.f32 0.0, %v2755
    %2757 = vmatprep.mubr.f32.mxu0 0.0
    %2758 = vmatmul.mubr.f32.gmra.mrb[0].mxu0 %v2604
    %v2759 = vpop.f32.mrb[0].mxu0
    %v2760 = vadd.f32 0.0, %v2759
    %v2761 = vpop.f32.mrb[0].mxu0
    %v2762 = vadd.f32 0.0, %v2761
    %2763 = vmatprep.mubr.f32.mxu0 0.0
    %2764 = vmatmul.mubr.f32.gmra.mrb[0].mxu0 %v2607
    %v2765 = vpop.f32.mrb[0].mxu0
    %v2766 = vadd.f32 0.0, %v2765
    %v2767 = vpop.f32.mrb[0].mxu0
    %v2768 = vadd.f32 0.0, %v2767
    %2769 = vdwg.mxu0
    %v2770 = vmul.f32 %v2676, %v653
    %v2771 = vmul.f32 %v2678, %v655
    %v2772 = vmul.f32 %v2682, %v659
    %v2773 = vmul.f32 %v2684, %v661
    %v2774 = vmul.f32 %v2688, %v665
    %v2775 = vmul.f32 %v2690, %v667
    %v2776 = vmul.f32 %v2694, %v671
    %v2777 = vmul.f32 %v2696, %v673
    %v2778 = vmul.f32 %v2700, %v677
    %v2779 = vmul.f32 %v2702, %v679
    %v2780 = vmul.f32 %v2706, %v683
    %v2781 = vmul.f32 %v2708, %v685
    %v2782 = vmul.f32 %v2712, %v689
    %v2783 = vmul.f32 %v2714, %v691
    %v2784 = vmul.f32 %v2718, %v695
    %v2785 = vmul.f32 %v2720, %v697
    %v2786 = vmul.f32 %v2724, %v701
    %v2787 = vmul.f32 %v2726, %v703
    %v2788 = vmul.f32 %v2730, %v707
    %v2789 = vmul.f32 %v2732, %v709
    %v2790 = vmul.f32 %v2736, %v713
    %v2791 = vmul.f32 %v2738, %v715
    %v2792 = vmul.f32 %v2742, %v719
    %v2793 = vmul.f32 %v2744, %v721
    %v2794 = vmul.f32 %v2748, %v725
    %v2795 = vmul.f32 %v2750, %v727
    %v2796 = vmul.f32 %v2754, %v731
    %v2797 = vmul.f32 %v2756, %v733
    %v2798 = vmul.f32 %v2760, %v737
    %v2799 = vmul.f32 %v2762, %v739
    %v2800 = vmul.f32 %v2766, %v743
    %v2801 = vmul.f32 %v2768, %v745
    %2802 = vmatprep.subr.mxu0 0.0
    %2803 = vmatpush1.msra.mxu0 %v771
    %2804 = vmatprep.subr.mxu0 0.0
    %2805 = vmatpush1.msra.mxu0 %v772
    %2806 = vmatprep.subr.mxu0 0.0
    %2807 = vmatpush1.msra.mxu0 %v773
    %2808 = vmatprep.subr.mxu0 0.0
    %2809 = vmatpush1.msra.mxu0 %v774
    %2810 = vmatprep.subr.mxu0 0.0
    %2811 = vmatpush1.msra.mxu0 %v775
    %2812 = vmatprep.subr.mxu0 0.0
    %2813 = vmatpush1.msra.mxu0 %v776
    %2814 = vmatprep.subr.mxu0 0.0
    %2815 = vmatpush1.msra.mxu0 %v777
    %2816 = vmatprep.subr.mxu0 0.0
    %2817 = vmatpush1.msra.mxu0 %v778
    %2818 = vmatprep.subr.mxu0 0.0
    %2819 = vmatpush1.msra.mxu0 %v779
    %2820 = vmatprep.subr.mxu0 0.0
    %2821 = vmatpush1.msra.mxu0 %v780
    %2822 = vmatprep.subr.mxu0 0.0
    %2823 = vmatpush1.msra.mxu0 %v781
    %2824 = vmatprep.subr.mxu0 0.0
    %2825 = vmatpush1.msra.mxu0 %v782
    %2826 = vmatprep.subr.mxu0 0.0
    %2827 = vmatpush1.msra.mxu0 %v783
    %2828 = vmatprep.subr.mxu0 0.0
    %2829 = vmatpush1.msra.mxu0 %v784
    %2830 = vmatprep.subr.mxu0 0.0
    %2831 = vmatpush1.msra.mxu0 %v785
    %2832 = vmatprep.subr.mxu0 0.0
    %2833 = vmatpush1.msra.mxu0 %v786
    %2834 = vmatprep.subr.mxu0 0.0
    %2835 = vmatpush1.msra.mxu0 %v787
    %2836 = vmatprep.subr.mxu0 0.0
    %2837 = vmatpush1.msra.mxu0 %v788
    %2838 = vmatprep.subr.mxu0 0.0
    %2839 = vmatpush1.msra.mxu0 %v789
    %2840 = vmatprep.subr.mxu0 0.0
    %2841 = vmatpush1.msra.mxu0 %v790
    %2842 = vmatprep.subr.mxu0 0.0
    %2843 = vmatpush1.msra.mxu0 %v791
    %2844 = vmatprep.subr.mxu0 0.0
    %2845 = vmatpush1.msra.mxu0 %v792
    %2846 = vmatprep.subr.mxu0 0.0
    %2847 = vmatpush1.msra.mxu0 %v793
    %2848 = vmatprep.subr.mxu0 0.0
    %2849 = vmatpush1.msra.mxu0 %v794
    %2850 = vmatprep.subr.mxu0 0.0
    %2851 = vmatpush1.msra.mxu0 %v795
    %2852 = vmatprep.subr.mxu0 0.0
    %2853 = vmatpush1.msra.mxu0 %v796
    %2854 = vmatprep.subr.mxu0 0.0
    %2855 = vmatpush1.msra.mxu0 %v797
    %2856 = vmatprep.subr.mxu0 0.0
    %2857 = vmatpush1.msra.mxu0 %v798
    %2858 = vmatprep.subr.mxu0 0.0
    %2859 = vmatpush1.msra.mxu0 %v799
    %2860 = vmatprep.subr.mxu0 0.0
    %2861 = vmatpush1.msra.mxu0 %v800
    %2862 = vmatprep.subr.mxu0 0.0
    %2863 = vmatpush1.msra.mxu0 %v801
    %2864 = vmatprep.subr.mxu0 0.0
    %2865 = vmatpush1.msra.mxu0 %v802
    %2866 = vmatprep.mubr.f32.mxu0 %v2771
    %2867 = vmatmul.mubr.f32.gmra.mrb[0].mxu0 %v2770
    %v2868 = vpop.f32.mrb[0].mxu0
    %v2869 = vadd.f32 0.0, %v2868
    %v2870 = vpop.f32.mrb[0].mxu0
    %2871 = vmatprep.mubr.f32.mxu0 %v2773
    %2872 = vmatmul.mubr.f32.gmra.mrb[0].mxu0 %v2772
    %v2873 = vpop.f32.mrb[0].mxu0
    %v2874 = vadd.f32 0.0, %v2873
    %v2875 = vpop.f32.mrb[0].mxu0
    %2876 = vmatprep.mubr.f32.mxu0 %v2775
    %2877 = vmatmul.mubr.f32.gmra.mrb[0].mxu0 %v2774
    %v2878 = vpop.f32.mrb[0].mxu0
    %v2879 = vadd.f32 0.0, %v2878
    %v2880 = vpop.f32.mrb[0].mxu0
    %2881 = vmatprep.mubr.f32.mxu0 %v2777
    %2882 = vmatmul.mubr.f32.gmra.mrb[0].mxu0 %v2776
    %v2883 = vpop.f32.mrb[0].mxu0
    %v2884 = vadd.f32 0.0, %v2883
    %v2885 = vpop.f32.mrb[0].mxu0
    %2886 = vmatprep.mubr.f32.mxu0 %v2779
    %2887 = vmatmul.mubr.f32.gmra.mrb[0].mxu0 %v2778
    %v2888 = vpop.f32.mrb[0].mxu0
    %v2889 = vadd.f32 0.0, %v2888
    %v2890 = vpop.f32.mrb[0].mxu0
    %2891 = vmatprep.mubr.f32.mxu0 %v2781
    %2892 = vmatmul.mubr.f32.gmra.mrb[0].mxu0 %v2780
    %v2893 = vpop.f32.mrb[0].mxu0
    %v2894 = vadd.f32 0.0, %v2893
    %v2895 = vpop.f32.mrb[0].mxu0
    %2896 = vmatprep.mubr.f32.mxu0 %v2783
    %2897 = vmatmul.mubr.f32.gmra.mrb[0].mxu0 %v2782
    %v2898 = vpop.f32.mrb[0].mxu0
    %v2899 = vadd.f32 0.0, %v2898
    %v2900 = vpop.f32.mrb[0].mxu0
    %2901 = vmatprep.mubr.f32.mxu0 %v2785
    %2902 = vmatmul.mubr.f32.gmra.mrb[0].mxu0 %v2784
    %v2903 = vpop.f32.mrb[0].mxu0
    %v2904 = vadd.f32 0.0, %v2903
    %v2905 = vpop.f32.mrb[0].mxu0
    %2906 = vmatprep.mubr.f32.mxu0 %v2787
    %2907 = vmatmul.mubr.f32.gmra.mrb[0].mxu0 %v2786
    %v2908 = vpop.f32.mrb[0].mxu0
    %v2909 = vadd.f32 0.0, %v2908
    %v2910 = vpop.f32.mrb[0].mxu0
    %2911 = vmatprep.mubr.f32.mxu0 %v2789
    %2912 = vmatmul.mubr.f32.gmra.mrb[0].mxu0 %v2788
    %v2913 = vpop.f32.mrb[0].mxu0
    %v2914 = vadd.f32 0.0, %v2913
    %v2915 = vpop.f32.mrb[0].mxu0
    %2916 = vmatprep.mubr.f32.mxu0 %v2791
    %2917 = vmatmul.mubr.f32.gmra.mrb[0].mxu0 %v2790
    %v2918 = vpop.f32.mrb[0].mxu0
    %v2919 = vadd.f32 0.0, %v2918
    %v2920 = vpop.f32.mrb[0].mxu0
    %2921 = vmatprep.mubr.f32.mxu0 %v2793
    %2922 = vmatmul.mubr.f32.gmra.mrb[0].mxu0 %v2792
    %v2923 = vpop.f32.mrb[0].mxu0
    %v2924 = vadd.f32 0.0, %v2923
    %v2925 = vpop.f32.mrb[0].mxu0
    %2926 = vmatprep.mubr.f32.mxu0 %v2795
    %2927 = vmatmul.mubr.f32.gmra.mrb[0].mxu0 %v2794
    %v2928 = vpop.f32.mrb[0].mxu0
    %v2929 = vadd.f32 0.0, %v2928
    %v2930 = vpop.f32.mrb[0].mxu0
    %2931 = vmatprep.mubr.f32.mxu0 %v2797
    %2932 = vmatmul.mubr.f32.gmra.mrb[0].mxu0 %v2796
    %v2933 = vpop.f32.mrb[0].mxu0
    %v2934 = vadd.f32 0.0, %v2933
    %v2935 = vpop.f32.mrb[0].mxu0
    %2936 = vmatprep.mubr.f32.mxu0 %v2799
    %2937 = vmatmul.mubr.f32.gmra.mrb[0].mxu0 %v2798
    %v2938 = vpop.f32.mrb[0].mxu0
    %v2939 = vadd.f32 0.0, %v2938
    %v2940 = vpop.f32.mrb[0].mxu0
    %2941 = vmatprep.mubr.f32.mxu0 %v2801
    %2942 = vmatmul.mubr.f32.gmra.mrb[0].mxu0 %v2800
    %v2943 = vpop.f32.mrb[0].mxu0
    %v2944 = vadd.f32 0.0, %v2943
    %v2945 = vpop.f32.mrb[0].mxu0
    %2946 = vdwg.mxu0
    %v2948 = vsel %vm307, %v2412, 0
    %v2951 = vsel %vm307, %v2413, 0
    %v2954 = vsel %vm307, %v2414, 0
    %v2957 = vsel %vm307, %v2415, 0
    %2959 = vmatprep.subr.mxu0 0.0
    %2960 = vmatpush1.msra.mxu0 %v803
    %2961 = vmatprep.subr.mxu0 0.0
    %2962 = vmatpush1.msra.mxu0 %v804
    %2963 = vmatprep.subr.mxu0 0.0
    %2964 = vmatpush1.msra.mxu0 0.0
    %2965 = vmatprep.subr.mxu0 0.0
    %2966 = vmatpush1.msra.mxu0 0.0
    %2967 = vmatprep.subr.mxu0 0.0
    %2968 = vmatpush1.msra.mxu0 0.0
    %2969 = vmatprep.subr.mxu0 0.0
    %2970 = vmatpush1.msra.mxu0 0.0
    %2971 = vmatprep.subr.mxu0 0.0
    %2972 = vmatpush1.msra.mxu0 0.0
    %2973 = vmatprep.subr.mxu0 0.0
    %2974 = vmatpush1.msra.mxu0 0.0
    %2975 = vmatprep.subr.mxu0 0.0
    %2976 = vmatpush1.msra.mxu0 0.0
    %2977 = vmatprep.subr.mxu0 0.0
    %2978 = vmatpush1.msra.mxu0 0.0
    %2979 = vmatprep.subr.mxu0 0.0
    %2980 = vmatpush1.msra.mxu0 0.0
    %2981 = vmatprep.subr.mxu0 0.0
    %2982 = vmatpush1.msra.mxu0 0.0
    %2983 = vmatprep.subr.mxu0 0.0
    %2984 = vmatpush1.msra.mxu0 0.0
    %2985 = vmatprep.subr.mxu0 0.0
    %2986 = vmatpush1.msra.mxu0 0.0
    %2987 = vmatprep.subr.mxu0 0.0
    %2988 = vmatpush1.msra.mxu0 0.0
    %2989 = vmatprep.subr.mxu0 0.0
    %2990 = vmatpush1.msra.mxu0 0.0
    %2991 = vmatprep.subr.mxu0 0.0
    %2992 = vmatpush1.msra.mxu0 0.0
    %2993 = vmatprep.subr.mxu0 0.0
    %2994 = vmatpush1.msra.mxu0 0.0
    %2995 = vmatprep.subr.mxu0 0.0
    %2996 = vmatpush1.msra.mxu0 0.0
    %2997 = vmatprep.subr.mxu0 0.0
    %2998 = vmatpush1.msra.mxu0 0.0
    %2999 = vmatprep.subr.mxu0 0.0
    %3000 = vmatpush1.msra.mxu0 0.0
    %3001 = vmatprep.subr.mxu0 0.0
    %3002 = vmatpush1.msra.mxu0 0.0
    %3003 = vmatprep.subr.mxu0 0.0
    %3004 = vmatpush1.msra.mxu0 0.0
    %3005 = vmatprep.subr.mxu0 0.0
    %3006 = vmatpush1.msra.mxu0 0.0
    %3007 = vmatprep.subr.mxu0 0.0
    %3008 = vmatpush1.msra.mxu0 0.0
    %3009 = vmatprep.subr.mxu0 0.0
    %3010 = vmatpush1.msra.mxu0 0.0
    %3011 = vmatprep.subr.mxu0 0.0
    %3012 = vmatpush1.msra.mxu0 0.0
    %3013 = vmatprep.subr.mxu0 0.0
    %3014 = vmatpush1.msra.mxu0 0.0
    %3015 = vmatprep.subr.mxu0 0.0
    %3016 = vmatpush1.msra.mxu0 0.0
    %3017 = vmatprep.subr.mxu0 0.0
    %3018 = vmatpush1.msra.mxu0 0.0
    %3019 = vmatprep.subr.mxu0 0.0
    %3020 = vmatpush1.msra.mxu0 0.0
    %3021 = vmatprep.subr.mxu0 0.0
    %3022 = vmatpush1.msra.mxu0 0.0
    %3023 = vmatprep.mubr.f32.mxu0 0.0
    %3024 = vmatmul.mubr.f32.gmra.mrb[0].mxu0 %v2948
    %v3025 = vpop.f32.mrb[0].mxu0
    %v3026 = vadd.f32 0.0, %v3025
    %v3027 = vpop.f32.mrb[0].mxu0
    %3028 = vmatprep.mubr.f32.mxu0 0.0
    %3029 = vmatmul.mubr.f32.gmra.mrb[0].mxu0 %v2951
    %v3030 = vpop.f32.mrb[0].mxu0
    %v3031 = vadd.f32 0.0, %v3030
    %v3032 = vpop.f32.mrb[0].mxu0
    %3033 = vmatprep.mubr.f32.mxu0 0.0
    %3034 = vmatmul.mubr.f32.gmra.mrb[0].mxu0 %v2954
    %v3035 = vpop.f32.mrb[0].mxu0
    %v3036 = vadd.f32 0.0, %v3035
    %v3037 = vpop.f32.mrb[0].mxu0
    %3038 = vmatprep.mubr.f32.mxu0 0.0
    %3039 = vmatmul.mubr.f32.gmra.mrb[0].mxu0 %v2957
    %v3040 = vpop.f32.mrb[0].mxu0
    %v3041 = vadd.f32 0.0, %v3040
    %v3042 = vpop.f32.mrb[0].mxu0
    %3043 = vdwg.mxu0
    %3044 = vmatprep.subr.mxu0 0.0
    %3045 = vmatpush1.msra.mxu0 %v2869
    %3046 = vmatprep.subr.mxu0 0.0
    %3047 = vmatpush1.msra.mxu0 %v2874
    %3048 = vmatprep.subr.mxu0 0.0
    %3049 = vmatpush1.msra.mxu0 %v2879
    %3050 = vmatprep.subr.mxu0 0.0
    %3051 = vmatpush1.msra.mxu0 %v2884
    %3052 = vmatprep.subr.mxu0 0.0
    %3053 = vmatpush1.msra.mxu0 %v2889
    %3054 = vmatprep.subr.mxu0 0.0
    %3055 = vmatpush1.msra.mxu0 %v2894
    %3056 = vmatprep.subr.mxu0 0.0
    %3057 = vmatpush1.msra.mxu0 %v2899
    %3058 = vmatprep.subr.mxu0 0.0
    %3059 = vmatpush1.msra.mxu0 %v2904
    %3060 = vmatprep.subr.mxu0 0.0
    %3061 = vmatpush1.msra.mxu0 %v2909
    %3062 = vmatprep.subr.mxu0 0.0
    %3063 = vmatpush1.msra.mxu0 %v2914
    %3064 = vmatprep.subr.mxu0 0.0
    %3065 = vmatpush1.msra.mxu0 %v2919
    %3066 = vmatprep.subr.mxu0 0.0
    %3067 = vmatpush1.msra.mxu0 %v2924
    %3068 = vmatprep.subr.mxu0 0.0
    %3069 = vmatpush1.msra.mxu0 %v2929
    %3070 = vmatprep.subr.mxu0 0.0
    %3071 = vmatpush1.msra.mxu0 %v2934
    %3072 = vmatprep.subr.mxu0 0.0
    %3073 = vmatpush1.msra.mxu0 %v2939
    %3074 = vmatprep.subr.mxu0 0.0
    %3075 = vmatpush1.msra.mxu0 %v2944
    %3076 = vmatprep.subr.mxu0 0.0
    %3077 = vmatpush1.msra.mxu0 0.0
    %3078 = vmatprep.subr.mxu0 0.0
    %3079 = vmatpush1.msra.mxu0 0.0
    %3080 = vmatprep.subr.mxu0 0.0
    %3081 = vmatpush1.msra.mxu0 0.0
    %3082 = vmatprep.subr.mxu0 0.0
    %3083 = vmatpush1.msra.mxu0 0.0
    %3084 = vmatprep.subr.mxu0 0.0
    %3085 = vmatpush1.msra.mxu0 0.0
    %3086 = vmatprep.subr.mxu0 0.0
    %3087 = vmatpush1.msra.mxu0 0.0
    %3088 = vmatprep.subr.mxu0 0.0
    %3089 = vmatpush1.msra.mxu0 0.0
    %3090 = vmatprep.subr.mxu0 0.0
    %3091 = vmatpush1.msra.mxu0 0.0
    %3092 = vmatprep.subr.mxu0 0.0
    %3093 = vmatpush1.msra.mxu0 0.0
    %3094 = vmatprep.subr.mxu0 0.0
    %3095 = vmatpush1.msra.mxu0 0.0
    %3096 = vmatprep.subr.mxu0 0.0
    %3097 = vmatpush1.msra.mxu0 0.0
    %3098 = vmatprep.subr.mxu0 0.0
    %3099 = vmatpush1.msra.mxu0 0.0
    %3100 = vmatprep.subr.mxu0 0.0
    %3101 = vmatpush1.msra.mxu0 0.0
    %3102 = vmatprep.subr.mxu0 0.0
    %3103 = vmatpush1.msra.mxu0 0.0
    %3104 = vmatprep.subr.mxu0 0.0
    %3105 = vmatpush1.msra.mxu0 0.0
    %3106 = vmatprep.subr.mxu0 0.0
    %3107 = vmatpush1.msra.mxu0 0.0
    %3108 = vmatprep.mubr.f32.mxu0 0.0
    %3109 = vmatmul.mubr.f32.gmra.mrb[0].mxu0 %v763
    %v3110 = vpop.f32.mrb[0].mxu0
    %v3111 = vadd.f32 %v3026, %v3110
    %v3112 = vpop.f32.mrb[0].mxu0
    %3113 = vmatprep.mubr.f32.mxu0 0.0
    %3114 = vmatmul.mubr.f32.gmra.mrb[0].mxu0 %v764
    %v3115 = vpop.f32.mrb[0].mxu0
    %v3116 = vadd.f32 %v3031, %v3115
    %v3117 = vpop.f32.mrb[0].mxu0
    %3118 = vmatprep.mubr.f32.mxu0 0.0
    %3119 = vmatmul.mubr.f32.gmra.mrb[0].mxu0 %v765
    %v3120 = vpop.f32.mrb[0].mxu0
    %v3121 = vadd.f32 %v3036, %v3120
    %v3122 = vpop.f32.mrb[0].mxu0
    %3123 = vmatprep.mubr.f32.mxu0 0.0
    %3124 = vmatmul.mubr.f32.gmra.mrb[0].mxu0 %v766
    %v3125 = vpop.f32.mrb[0].mxu0
    %v3126 = vadd.f32 %v3041, %v3125
    %v3127 = vpop.f32.mrb[0].mxu0
    %3128 = vdwg.mxu0
    %v3129 = vadd.f32 %v3111, %v810
    %v3130 = vadd.f32 %v3116, %v810
    %v3131 = vadd.f32 %v3121, %v810
    %v3132 = vadd.f32 %v3126, %v810
    %v3133 = vmax.f32 %v3129, 0.0
    %v3134 = vmax.f32 %v3130, 0.0
    %v3135 = vmax.f32 %v3131, 0.0
    %v3136 = vmax.f32 %v3132, 0.0
    %3137 = vmatprep.subr.mxu0 0.0
    %3138 = vmatpush1.msra.mxu0 %v3133
    %3139 = vmatprep.subr.mxu0 0.0
    %3140 = vmatpush1.msra.mxu0 %v3134
    %3141 = vmatprep.subr.mxu0 0.0
    %3142 = vmatpush1.msra.mxu0 %v3135
    %3143 = vmatprep.subr.mxu0 0.0
    %3144 = vmatpush1.msra.mxu0 %v3136
    %3145 = vmatprep.subr.mxu0 0.0
    %3146 = vmatpush1.msra.mxu0 0.0
    %3147 = vmatprep.subr.mxu0 0.0
    %3148 = vmatpush1.msra.mxu0 0.0
    %3149 = vmatprep.subr.mxu0 0.0
    %3150 = vmatpush1.msra.mxu0 0.0
    %3151 = vmatprep.subr.mxu0 0.0
    %3152 = vmatpush1.msra.mxu0 0.0
    %3153 = vmatprep.subr.mxu0 0.0
    %3154 = vmatpush1.msra.mxu0 0.0
    %3155 = vmatprep.subr.mxu0 0.0
    %3156 = vmatpush1.msra.mxu0 0.0
    %3157 = vmatprep.subr.mxu0 0.0
    %3158 = vmatpush1.msra.mxu0 0.0
    %3159 = vmatprep.subr.mxu0 0.0
    %3160 = vmatpush1.msra.mxu0 0.0
    %3161 = vmatprep.subr.mxu0 0.0
    %3162 = vmatpush1.msra.mxu0 0.0
    %3163 = vmatprep.subr.mxu0 0.0
    %3164 = vmatpush1.msra.mxu0 0.0
    %3165 = vmatprep.subr.mxu0 0.0
    %3166 = vmatpush1.msra.mxu0 0.0
    %3167 = vmatprep.subr.mxu0 0.0
    %3168 = vmatpush1.msra.mxu0 0.0
    %3169 = vmatprep.subr.mxu0 0.0
    %3170 = vmatpush1.msra.mxu0 0.0
    %3171 = vmatprep.subr.mxu0 0.0
    %3172 = vmatpush1.msra.mxu0 0.0
    %3173 = vmatprep.subr.mxu0 0.0
    %3174 = vmatpush1.msra.mxu0 0.0
    %3175 = vmatprep.subr.mxu0 0.0
    %3176 = vmatpush1.msra.mxu0 0.0
    %3177 = vmatprep.subr.mxu0 0.0
    %3178 = vmatpush1.msra.mxu0 0.0
    %3179 = vmatprep.subr.mxu0 0.0
    %3180 = vmatpush1.msra.mxu0 0.0
    %3181 = vmatprep.subr.mxu0 0.0
    %3182 = vmatpush1.msra.mxu0 0.0
    %3183 = vmatprep.subr.mxu0 0.0
    %3184 = vmatpush1.msra.mxu0 0.0
    %3185 = vmatprep.subr.mxu0 0.0
    %3186 = vmatpush1.msra.mxu0 0.0
    %3187 = vmatprep.subr.mxu0 0.0
    %3188 = vmatpush1.msra.mxu0 0.0
    %3189 = vmatprep.subr.mxu0 0.0
    %3190 = vmatpush1.msra.mxu0 0.0
    %3191 = vmatprep.subr.mxu0 0.0
    %3192 = vmatpush1.msra.mxu0 0.0
    %3193 = vmatprep.subr.mxu0 0.0
    %3194 = vmatpush1.msra.mxu0 0.0
    %3195 = vmatprep.subr.mxu0 0.0
    %3196 = vmatpush1.msra.mxu0 0.0
    %3197 = vmatprep.subr.mxu0 0.0
    %3198 = vmatpush1.msra.mxu0 0.0
    %3199 = vmatprep.subr.mxu0 0.0
    %3200 = vmatpush1.msra.mxu0 0.0
    %3201 = vmatprep.mubr.f32.mxu0 0.0
    %3202 = vmatmul.mubr.f32.gmra.mrb[0].mxu0 %v927
    %v3203 = vpop.f32.mrb[0].mxu0
    %v3204 = vadd.f32 0.0, %v3203
    %v3205 = vpop.f32.mrb[0].mxu0
    %3206 = vmatprep.mubr.f32.mxu0 0.0
    %3207 = vmatmul.mubr.f32.gmra.mrb[0].mxu0 %v930
    %v3208 = vpop.f32.mrb[0].mxu0
    %v3209 = vadd.f32 0.0, %v3208
    %v3210 = vpop.f32.mrb[0].mxu0
    %3211 = vmatprep.mubr.f32.mxu0 0.0
    %3212 = vmatmul.mubr.f32.gmra.mrb[0].mxu0 %v933
    %v3213 = vpop.f32.mrb[0].mxu0
    %v3214 = vadd.f32 0.0, %v3213
    %v3215 = vpop.f32.mrb[0].mxu0
    %3216 = vmatprep.mubr.f32.mxu0 0.0
    %3217 = vmatmul.mubr.f32.gmra.mrb[0].mxu0 %v936
    %v3218 = vpop.f32.mrb[0].mxu0
    %v3219 = vadd.f32 0.0, %v3218
    %v3220 = vpop.f32.mrb[0].mxu0
    %3221 = vmatprep.mubr.f32.mxu0 0.0
    %3222 = vmatmul.mubr.f32.gmra.mrb[0].mxu0 %v939
    %v3223 = vpop.f32.mrb[0].mxu0
    %v3224 = vadd.f32 0.0, %v3223
    %v3225 = vpop.f32.mrb[0].mxu0
    %3226 = vmatprep.mubr.f32.mxu0 0.0
    %3227 = vmatmul.mubr.f32.gmra.mrb[0].mxu0 %v942
    %v3228 = vpop.f32.mrb[0].mxu0
    %v3229 = vadd.f32 0.0, %v3228
    %v3230 = vpop.f32.mrb[0].mxu0
    %3231 = vmatprep.mubr.f32.mxu0 0.0
    %3232 = vmatmul.mubr.f32.gmra.mrb[0].mxu0 %v945
    %v3233 = vpop.f32.mrb[0].mxu0
    %v3234 = vadd.f32 0.0, %v3233
    %v3235 = vpop.f32.mrb[0].mxu0
    %3236 = vmatprep.mubr.f32.mxu0 0.0
    %3237 = vmatmul.mubr.f32.gmra.mrb[0].mxu0 %v948
    %v3238 = vpop.f32.mrb[0].mxu0
    %v3239 = vadd.f32 0.0, %v3238
    %v3240 = vpop.f32.mrb[0].mxu0
    %3241 = vmatprep.mubr.f32.mxu0 0.0
    %3242 = vmatmul.mubr.f32.gmra.mrb[0].mxu0 %v951
    %v3243 = vpop.f32.mrb[0].mxu0
    %v3244 = vadd.f32 0.0, %v3243
    %v3245 = vpop.f32.mrb[0].mxu0
    %3246 = vmatprep.mubr.f32.mxu0 0.0
    %3247 = vmatmul.mubr.f32.gmra.mrb[0].mxu0 %v954
    %v3248 = vpop.f32.mrb[0].mxu0
    %v3249 = vadd.f32 0.0, %v3248
    %v3250 = vpop.f32.mrb[0].mxu0
    %3251 = vmatprep.mubr.f32.mxu0 0.0
    %3252 = vmatmul.mubr.f32.gmra.mrb[0].mxu0 %v957
    %v3253 = vpop.f32.mrb[0].mxu0
    %v3254 = vadd.f32 0.0, %v3253
    %v3255 = vpop.f32.mrb[0].mxu0
    %3256 = vmatprep.mubr.f32.mxu0 0.0
    %3257 = vmatmul.mubr.f32.gmra.mrb[0].mxu0 %v960
    %v3258 = vpop.f32.mrb[0].mxu0
    %v3259 = vadd.f32 0.0, %v3258
    %v3260 = vpop.f32.mrb[0].mxu0
    %3261 = vmatprep.mubr.f32.mxu0 0.0
    %3262 = vmatmul.mubr.f32.gmra.mrb[0].mxu0 %v963
    %v3263 = vpop.f32.mrb[0].mxu0
    %v3264 = vadd.f32 0.0, %v3263
    %v3265 = vpop.f32.mrb[0].mxu0
    %3266 = vmatprep.mubr.f32.mxu0 0.0
    %3267 = vmatmul.mubr.f32.gmra.mrb[0].mxu0 %v966
    %v3268 = vpop.f32.mrb[0].mxu0
    %v3269 = vadd.f32 0.0, %v3268
    %v3270 = vpop.f32.mrb[0].mxu0
    %3271 = vmatprep.mubr.f32.mxu0 0.0
    %3272 = vmatmul.mubr.f32.gmra.mrb[0].mxu0 %v969
    %v3273 = vpop.f32.mrb[0].mxu0
    %v3274 = vadd.f32 0.0, %v3273
    %v3275 = vpop.f32.mrb[0].mxu0
    %3276 = vmatprep.mubr.f32.mxu0 0.0
    %3277 = vmatmul.mubr.f32.gmra.mrb[0].mxu0 %v972
    %v3278 = vpop.f32.mrb[0].mxu0
    %v3279 = vadd.f32 0.0, %v3278
    %v3280 = vpop.f32.mrb[0].mxu0
    %3281 = vdwg.mxu0
    %v3283 = vsel %vm307, %v3204, 0
    %v3286 = vsel %vm307, %v3209, 0
    %v3289 = vsel %vm307, %v3214, 0
    %v3292 = vsel %vm307, %v3219, 0
    %v3295 = vsel %vm307, %v3224, 0
    %v3298 = vsel %vm307, %v3229, 0
    %v3301 = vsel %vm307, %v3234, 0
    %v3304 = vsel %vm307, %v3239, 0
    %v3307 = vsel %vm307, %v3244, 0
    %v3310 = vsel %vm307, %v3249, 0
    %v3313 = vsel %vm307, %v3254, 0
    %v3316 = vsel %vm307, %v3259, 0
    %v3319 = vsel %vm307, %v3264, 0
    %v3322 = vsel %vm307, %v3269, 0
    %v3325 = vsel %vm307, %v3274, 0
    %v3328 = vsel %vm307, %v3279, 0
    %3330 = vmatprep.subr.mxu0 %v768
    %3331 = vmatpush1.msra.mxu0 %v767
    %3332 = vmatprep.subr.mxu0 %v770
    %3333 = vmatpush1.msra.mxu0 %v769
    %3334 = vmatprep.subr.mxu0 0.0
    %3335 = vmatpush1.msra.mxu0 0.0
    %3336 = vmatprep.subr.mxu0 0.0
    %3337 = vmatpush1.msra.mxu0 0.0
    %3338 = vmatprep.subr.mxu0 0.0
    %3339 = vmatpush1.msra.mxu0 0.0
    %3340 = vmatprep.subr.mxu0 0.0
    %3341 = vmatpush1.msra.mxu0 0.0
    %3342 = vmatprep.subr.mxu0 0.0
    %3343 = vmatpush1.msra.mxu0 0.0
    %3344 = vmatprep.subr.mxu0 0.0
    %3345 = vmatpush1.msra.mxu0 0.0
    %3346 = vmatprep.subr.mxu0 0.0
    %3347 = vmatpush1.msra.mxu0 0.0
    %3348 = vmatprep.subr.mxu0 0.0
    %3349 = vmatpush1.msra.mxu0 0.0
    %3350 = vmatprep.subr.mxu0 0.0
    %3351 = vmatpush1.msra.mxu0 0.0
    %3352 = vmatprep.subr.mxu0 0.0
    %3353 = vmatpush1.msra.mxu0 0.0
    %3354 = vmatprep.subr.mxu0 0.0
    %3355 = vmatpush1.msra.mxu0 0.0
    %3356 = vmatprep.subr.mxu0 0.0
    %3357 = vmatpush1.msra.mxu0 0.0
    %3358 = vmatprep.subr.mxu0 0.0
    %3359 = vmatpush1.msra.mxu0 0.0
    %3360 = vmatprep.subr.mxu0 0.0
    %3361 = vmatpush1.msra.mxu0 0.0
    %3362 = vmatprep.subr.mxu0 0.0
    %3363 = vmatpush1.msra.mxu0 0.0
    %3364 = vmatprep.subr.mxu0 0.0
    %3365 = vmatpush1.msra.mxu0 0.0
    %3366 = vmatprep.subr.mxu0 0.0
    %3367 = vmatpush1.msra.mxu0 0.0
    %3368 = vmatprep.subr.mxu0 0.0
    %3369 = vmatpush1.msra.mxu0 0.0
    %3370 = vmatprep.subr.mxu0 0.0
    %3371 = vmatpush1.msra.mxu0 0.0
    %3372 = vmatprep.subr.mxu0 0.0
    %3373 = vmatpush1.msra.mxu0 0.0
    %3374 = vmatprep.subr.mxu0 0.0
    %3375 = vmatpush1.msra.mxu0 0.0
    %3376 = vmatprep.subr.mxu0 0.0
    %3377 = vmatpush1.msra.mxu0 0.0
    %3378 = vmatprep.subr.mxu0 0.0
    %3379 = vmatpush1.msra.mxu0 0.0
    %3380 = vmatprep.subr.mxu0 0.0
    %3381 = vmatpush1.msra.mxu0 0.0
    %3382 = vmatprep.subr.mxu0 0.0
    %3383 = vmatpush1.msra.mxu0 0.0
    %3384 = vmatprep.subr.mxu0 0.0
    %3385 = vmatpush1.msra.mxu0 0.0
    %3386 = vmatprep.subr.mxu0 0.0
    %3387 = vmatpush1.msra.mxu0 0.0
    %3388 = vmatprep.subr.mxu0 0.0
    %3389 = vmatpush1.msra.mxu0 0.0
    %3390 = vmatprep.subr.mxu0 0.0
    %3391 = vmatpush1.msra.mxu0 0.0
    %3392 = vmatprep.subr.mxu0 0.0
    %3393 = vmatpush1.msra.mxu0 0.0
    %3394 = vmatprep.mubr.f32.mxu0 0.0
    %3395 = vmatmul.mubr.f32.gmra.mrb[0].mxu0 %v3283
    %v3396 = vpop.f32.mrb[0].mxu0
    %v3397 = vadd.f32 0.0, %v3396
    %v3398 = vpop.f32.mrb[0].mxu0
    %v3399 = vadd.f32 0.0, %v3398
    %3400 = vmatprep.mubr.f32.mxu0 0.0
    %3401 = vmatmul.mubr.f32.gmra.mrb[0].mxu0 %v3286
    %v3402 = vpop.f32.mrb[0].mxu0
    %v3403 = vadd.f32 0.0, %v3402
    %v3404 = vpop.f32.mrb[0].mxu0
    %v3405 = vadd.f32 0.0, %v3404
    %3406 = vmatprep.mubr.f32.mxu0 0.0
    %3407 = vmatmul.mubr.f32.gmra.mrb[0].mxu0 %v3289
    %v3408 = vpop.f32.mrb[0].mxu0
    %v3409 = vadd.f32 0.0, %v3408
    %v3410 = vpop.f32.mrb[0].mxu0
    %v3411 = vadd.f32 0.0, %v3410
    %3412 = vmatprep.mubr.f32.mxu0 0.0
    %3413 = vmatmul.mubr.f32.gmra.mrb[0].mxu0 %v3292
    %v3414 = vpop.f32.mrb[0].mxu0
    %v3415 = vadd.f32 0.0, %v3414
    %v3416 = vpop.f32.mrb[0].mxu0
    %v3417 = vadd.f32 0.0, %v3416
    %3418 = vmatprep.mubr.f32.mxu0 0.0
    %3419 = vmatmul.mubr.f32.gmra.mrb[0].mxu0 %v3295
    %v3420 = vpop.f32.mrb[0].mxu0
    %v3421 = vadd.f32 0.0, %v3420
    %v3422 = vpop.f32.mrb[0].mxu0
    %v3423 = vadd.f32 0.0, %v3422
    %3424 = vmatprep.mubr.f32.mxu0 0.0
    %3425 = vmatmul.mubr.f32.gmra.mrb[0].mxu0 %v3298
    %v3426 = vpop.f32.mrb[0].mxu0
    %v3427 = vadd.f32 0.0, %v3426
    %v3428 = vpop.f32.mrb[0].mxu0
    %v3429 = vadd.f32 0.0, %v3428
    %3430 = vmatprep.mubr.f32.mxu0 0.0
    %3431 = vmatmul.mubr.f32.gmra.mrb[0].mxu0 %v3301
    %v3432 = vpop.f32.mrb[0].mxu0
    %v3433 = vadd.f32 0.0, %v3432
    %v3434 = vpop.f32.mrb[0].mxu0
    %v3435 = vadd.f32 0.0, %v3434
    %3436 = vmatprep.mubr.f32.mxu0 0.0
    %3437 = vmatmul.mubr.f32.gmra.mrb[0].mxu0 %v3304
    %v3438 = vpop.f32.mrb[0].mxu0
    %v3439 = vadd.f32 0.0, %v3438
    %v3440 = vpop.f32.mrb[0].mxu0
    %v3441 = vadd.f32 0.0, %v3440
    %3442 = vmatprep.mubr.f32.mxu0 0.0
    %3443 = vmatmul.mubr.f32.gmra.mrb[0].mxu0 %v3307
    %v3444 = vpop.f32.mrb[0].mxu0
    %v3445 = vadd.f32 0.0, %v3444
    %v3446 = vpop.f32.mrb[0].mxu0
    %v3447 = vadd.f32 0.0, %v3446
    %3448 = vmatprep.mubr.f32.mxu0 0.0
    %3449 = vmatmul.mubr.f32.gmra.mrb[0].mxu0 %v3310
    %v3450 = vpop.f32.mrb[0].mxu0
    %v3451 = vadd.f32 0.0, %v3450
    %v3452 = vpop.f32.mrb[0].mxu0
    %v3453 = vadd.f32 0.0, %v3452
    %3454 = vmatprep.mubr.f32.mxu0 0.0
    %3455 = vmatmul.mubr.f32.gmra.mrb[0].mxu0 %v3313
    %v3456 = vpop.f32.mrb[0].mxu0
    %v3457 = vadd.f32 0.0, %v3456
    %v3458 = vpop.f32.mrb[0].mxu0
    %v3459 = vadd.f32 0.0, %v3458
    %3460 = vmatprep.mubr.f32.mxu0 0.0
    %3461 = vmatmul.mubr.f32.gmra.mrb[0].mxu0 %v3316
    %v3462 = vpop.f32.mrb[0].mxu0
    %v3463 = vadd.f32 0.0, %v3462
    %v3464 = vpop.f32.mrb[0].mxu0
    %v3465 = vadd.f32 0.0, %v3464
    %3466 = vmatprep.mubr.f32.mxu0 0.0
    %3467 = vmatmul.mubr.f32.gmra.mrb[0].mxu0 %v3319
    %v3468 = vpop.f32.mrb[0].mxu0
    %v3469 = vadd.f32 0.0, %v3468
    %v3470 = vpop.f32.mrb[0].mxu0
    %v3471 = vadd.f32 0.0, %v3470
    %3472 = vmatprep.mubr.f32.mxu0 0.0
    %3473 = vmatmul.mubr.f32.gmra.mrb[0].mxu0 %v3322
    %v3474 = vpop.f32.mrb[0].mxu0
    %v3475 = vadd.f32 0.0, %v3474
    %v3476 = vpop.f32.mrb[0].mxu0
    %v3477 = vadd.f32 0.0, %v3476
    %3478 = vmatprep.mubr.f32.mxu0 0.0
    %3479 = vmatmul.mubr.f32.gmra.mrb[0].mxu0 %v3325
    %v3480 = vpop.f32.mrb[0].mxu0
    %v3481 = vadd.f32 0.0, %v3480
    %v3482 = vpop.f32.mrb[0].mxu0
    %v3483 = vadd.f32 0.0, %v3482
    %3484 = vmatprep.mubr.f32.mxu0 0.0
    %3485 = vmatmul.mubr.f32.gmra.mrb[0].mxu0 %v3328
    %v3486 = vpop.f32.mrb[0].mxu0
    %v3487 = vadd.f32 0.0, %v3486
    %v3488 = vpop.f32.mrb[0].mxu0
    %v3489 = vadd.f32 0.0, %v3488
    %3490 = vdwg.mxu0
    %v3491 = vmul.f32 %v3397, %v653
    %v3492 = vmul.f32 %v3399, %v655
    %v3493 = vmul.f32 %v3403, %v659
    %v3494 = vmul.f32 %v3405, %v661
    %v3495 = vmul.f32 %v3409, %v665
    %v3496 = vmul.f32 %v3411, %v667
    %v3497 = vmul.f32 %v3415, %v671
    %v3498 = vmul.f32 %v3417, %v673
    %v3499 = vmul.f32 %v3421, %v677
    %v3500 = vmul.f32 %v3423, %v679
    %v3501 = vmul.f32 %v3427, %v683
    %v3502 = vmul.f32 %v3429, %v685
    %v3503 = vmul.f32 %v3433, %v689
    %v3504 = vmul.f32 %v3435, %v691
    %v3505 = vmul.f32 %v3439, %v695
    %v3506 = vmul.f32 %v3441, %v697
    %v3507 = vmul.f32 %v3445, %v701
    %v3508 = vmul.f32 %v3447, %v703
    %v3509 = vmul.f32 %v3451, %v707
    %v3510 = vmul.f32 %v3453, %v709
    %v3511 = vmul.f32 %v3457, %v713
    %v3512 = vmul.f32 %v3459, %v715
    %v3513 = vmul.f32 %v3463, %v719
    %v3514 = vmul.f32 %v3465, %v721
    %v3515 = vmul.f32 %v3469, %v725
    %v3516 = vmul.f32 %v3471, %v727
    %v3517 = vmul.f32 %v3475, %v731
    %v3518 = vmul.f32 %v3477, %v733
    %v3519 = vmul.f32 %v3481, %v737
    %v3520 = vmul.f32 %v3483, %v739
    %v3521 = vmul.f32 %v3487, %v743
    %v3522 = vmul.f32 %v3489, %v745
    %3523 = vmatprep.subr.mxu0 0.0
    %3524 = vmatpush1.msra.mxu0 %v771
    %3525 = vmatprep.subr.mxu0 0.0
    %3526 = vmatpush1.msra.mxu0 %v772
    %3527 = vmatprep.subr.mxu0 0.0
    %3528 = vmatpush1.msra.mxu0 %v773
    %3529 = vmatprep.subr.mxu0 0.0
    %3530 = vmatpush1.msra.mxu0 %v774
    %3531 = vmatprep.subr.mxu0 0.0
    %3532 = vmatpush1.msra.mxu0 %v775
    %3533 = vmatprep.subr.mxu0 0.0
    %3534 = vmatpush1.msra.mxu0 %v776
    %3535 = vmatprep.subr.mxu0 0.0
    %3536 = vmatpush1.msra.mxu0 %v777
    %3537 = vmatprep.subr.mxu0 0.0
    %3538 = vmatpush1.msra.mxu0 %v778
    %3539 = vmatprep.subr.mxu0 0.0
    %3540 = vmatpush1.msra.mxu0 %v779
    %3541 = vmatprep.subr.mxu0 0.0
    %3542 = vmatpush1.msra.mxu0 %v780
    %3543 = vmatprep.subr.mxu0 0.0
    %3544 = vmatpush1.msra.mxu0 %v781
    %3545 = vmatprep.subr.mxu0 0.0
    %3546 = vmatpush1.msra.mxu0 %v782
    %3547 = vmatprep.subr.mxu0 0.0
    %3548 = vmatpush1.msra.mxu0 %v783
    %3549 = vmatprep.subr.mxu0 0.0
    %3550 = vmatpush1.msra.mxu0 %v784
    %3551 = vmatprep.subr.mxu0 0.0
    %3552 = vmatpush1.msra.mxu0 %v785
    %3553 = vmatprep.subr.mxu0 0.0
    %3554 = vmatpush1.msra.mxu0 %v786
    %3555 = vmatprep.subr.mxu0 0.0
    %3556 = vmatpush1.msra.mxu0 %v787
    %3557 = vmatprep.subr.mxu0 0.0
    %3558 = vmatpush1.msra.mxu0 %v788
    %3559 = vmatprep.subr.mxu0 0.0
    %3560 = vmatpush1.msra.mxu0 %v789
    %3561 = vmatprep.subr.mxu0 0.0
    %3562 = vmatpush1.msra.mxu0 %v790
    %3563 = vmatprep.subr.mxu0 0.0
    %3564 = vmatpush1.msra.mxu0 %v791
    %3565 = vmatprep.subr.mxu0 0.0
    %3566 = vmatpush1.msra.mxu0 %v792
    %3567 = vmatprep.subr.mxu0 0.0
    %3568 = vmatpush1.msra.mxu0 %v793
    %3569 = vmatprep.subr.mxu0 0.0
    %3570 = vmatpush1.msra.mxu0 %v794
    %3571 = vmatprep.subr.mxu0 0.0
    %3572 = vmatpush1.msra.mxu0 %v795
    %3573 = vmatprep.subr.mxu0 0.0
    %3574 = vmatpush1.msra.mxu0 %v796
    %3575 = vmatprep.subr.mxu0 0.0
    %3576 = vmatpush1.msra.mxu0 %v797
    %3577 = vmatprep.subr.mxu0 0.0
    %3578 = vmatpush1.msra.mxu0 %v798
    %3579 = vmatprep.subr.mxu0 0.0
    %3580 = vmatpush1.msra.mxu0 %v799
    %3581 = vmatprep.subr.mxu0 0.0
    %3582 = vmatpush1.msra.mxu0 %v800
    %3583 = vmatprep.subr.mxu0 0.0
    %3584 = vmatpush1.msra.mxu0 %v801
    %3585 = vmatprep.subr.mxu0 0.0
    %3586 = vmatpush1.msra.mxu0 %v802
    %3587 = vmatprep.mubr.f32.mxu0 %v3492
    %3588 = vmatmul.mubr.f32.gmra.mrb[0].mxu0 %v3491
    %v3589 = vpop.f32.mrb[0].mxu0
    %v3590 = vadd.f32 0.0, %v3589
    %v3591 = vpop.f32.mrb[0].mxu0
    %3592 = vmatprep.mubr.f32.mxu0 %v3494
    %3593 = vmatmul.mubr.f32.gmra.mrb[0].mxu0 %v3493
    %v3594 = vpop.f32.mrb[0].mxu0
    %v3595 = vadd.f32 0.0, %v3594
    %v3596 = vpop.f32.mrb[0].mxu0
    %3597 = vmatprep.mubr.f32.mxu0 %v3496
    %3598 = vmatmul.mubr.f32.gmra.mrb[0].mxu0 %v3495
    %v3599 = vpop.f32.mrb[0].mxu0
    %v3600 = vadd.f32 0.0, %v3599
    %v3601 = vpop.f32.mrb[0].mxu0
    %3602 = vmatprep.mubr.f32.mxu0 %v3498
    %3603 = vmatmul.mubr.f32.gmra.mrb[0].mxu0 %v3497
    %v3604 = vpop.f32.mrb[0].mxu0
    %v3605 = vadd.f32 0.0, %v3604
    %v3606 = vpop.f32.mrb[0].mxu0
    %3607 = vmatprep.mubr.f32.mxu0 %v3500
    %3608 = vmatmul.mubr.f32.gmra.mrb[0].mxu0 %v3499
    %v3609 = vpop.f32.mrb[0].mxu0
    %v3610 = vadd.f32 0.0, %v3609
    %v3611 = vpop.f32.mrb[0].mxu0
    %3612 = vmatprep.mubr.f32.mxu0 %v3502
    %3613 = vmatmul.mubr.f32.gmra.mrb[0].mxu0 %v3501
    %v3614 = vpop.f32.mrb[0].mxu0
    %v3615 = vadd.f32 0.0, %v3614
    %v3616 = vpop.f32.mrb[0].mxu0
    %3617 = vmatprep.mubr.f32.mxu0 %v3504
    %3618 = vmatmul.mubr.f32.gmra.mrb[0].mxu0 %v3503
    %v3619 = vpop.f32.mrb[0].mxu0
    %v3620 = vadd.f32 0.0, %v3619
    %v3621 = vpop.f32.mrb[0].mxu0
    %3622 = vmatprep.mubr.f32.mxu0 %v3506
    %3623 = vmatmul.mubr.f32.gmra.mrb[0].mxu0 %v3505
    %v3624 = vpop.f32.mrb[0].mxu0
    %v3625 = vadd.f32 0.0, %v3624
    %v3626 = vpop.f32.mrb[0].mxu0
    %3627 = vmatprep.mubr.f32.mxu0 %v3508
    %3628 = vmatmul.mubr.f32.gmra.mrb[0].mxu0 %v3507
    %v3629 = vpop.f32.mrb[0].mxu0
    %v3630 = vadd.f32 0.0, %v3629
    %v3631 = vpop.f32.mrb[0].mxu0
    %3632 = vmatprep.mubr.f32.mxu0 %v3510
    %3633 = vmatmul.mubr.f32.gmra.mrb[0].mxu0 %v3509
    %v3634 = vpop.f32.mrb[0].mxu0
    %v3635 = vadd.f32 0.0, %v3634
    %v3636 = vpop.f32.mrb[0].mxu0
    %3637 = vmatprep.mubr.f32.mxu0 %v3512
    %3638 = vmatmul.mubr.f32.gmra.mrb[0].mxu0 %v3511
    %v3639 = vpop.f32.mrb[0].mxu0
    %v3640 = vadd.f32 0.0, %v3639
    %v3641 = vpop.f32.mrb[0].mxu0
    %3642 = vmatprep.mubr.f32.mxu0 %v3514
    %3643 = vmatmul.mubr.f32.gmra.mrb[0].mxu0 %v3513
    %v3644 = vpop.f32.mrb[0].mxu0
    %v3645 = vadd.f32 0.0, %v3644
    %v3646 = vpop.f32.mrb[0].mxu0
    %3647 = vmatprep.mubr.f32.mxu0 %v3516
    %3648 = vmatmul.mubr.f32.gmra.mrb[0].mxu0 %v3515
    %v3649 = vpop.f32.mrb[0].mxu0
    %v3650 = vadd.f32 0.0, %v3649
    %v3651 = vpop.f32.mrb[0].mxu0
    %3652 = vmatprep.mubr.f32.mxu0 %v3518
    %3653 = vmatmul.mubr.f32.gmra.mrb[0].mxu0 %v3517
    %v3654 = vpop.f32.mrb[0].mxu0
    %v3655 = vadd.f32 0.0, %v3654
    %v3656 = vpop.f32.mrb[0].mxu0
    %3657 = vmatprep.mubr.f32.mxu0 %v3520
    %3658 = vmatmul.mubr.f32.gmra.mrb[0].mxu0 %v3519
    %v3659 = vpop.f32.mrb[0].mxu0
    %v3660 = vadd.f32 0.0, %v3659
    %v3661 = vpop.f32.mrb[0].mxu0
    %3662 = vmatprep.mubr.f32.mxu0 %v3522
    %3663 = vmatmul.mubr.f32.gmra.mrb[0].mxu0 %v3521
    %v3664 = vpop.f32.mrb[0].mxu0
    %v3665 = vadd.f32 0.0, %v3664
    %v3666 = vpop.f32.mrb[0].mxu0
    %3667 = vdwg.mxu0
    %v3669 = vsel %vm307, %v3133, 0
    %v3672 = vsel %vm307, %v3134, 0
    %v3675 = vsel %vm307, %v3135, 0
    %v3678 = vsel %vm307, %v3136, 0
    %3680 = vmatprep.subr.mxu0 0.0
    %3681 = vmatpush1.msra.mxu0 %v803
    %3682 = vmatprep.subr.mxu0 0.0
    %3683 = vmatpush1.msra.mxu0 %v804
    %3684 = vmatprep.subr.mxu0 0.0
    %3685 = vmatpush1.msra.mxu0 0.0
    %3686 = vmatprep.subr.mxu0 0.0
    %3687 = vmatpush1.msra.mxu0 0.0
    %3688 = vmatprep.subr.mxu0 0.0
    %3689 = vmatpush1.msra.mxu0 0.0
    %3690 = vmatprep.subr.mxu0 0.0
    %3691 = vmatpush1.msra.mxu0 0.0
    %3692 = vmatprep.subr.mxu0 0.0
    %3693 = vmatpush1.msra.mxu0 0.0
    %3694 = vmatprep.subr.mxu0 0.0
    %3695 = vmatpush1.msra.mxu0 0.0
    %3696 = vmatprep.subr.mxu0 0.0
    %3697 = vmatpush1.msra.mxu0 0.0
    %3698 = vmatprep.subr.mxu0 0.0
    %3699 = vmatpush1.msra.mxu0 0.0
    %3700 = vmatprep.subr.mxu0 0.0
    %3701 = vmatpush1.msra.mxu0 0.0
    %3702 = vmatprep.subr.mxu0 0.0
    %3703 = vmatpush1.msra.mxu0 0.0
    %3704 = vmatprep.subr.mxu0 0.0
    %3705 = vmatpush1.msra.mxu0 0.0
    %3706 = vmatprep.subr.mxu0 0.0
    %3707 = vmatpush1.msra.mxu0 0.0
    %3708 = vmatprep.subr.mxu0 0.0
    %3709 = vmatpush1.msra.mxu0 0.0
    %3710 = vmatprep.subr.mxu0 0.0
    %3711 = vmatpush1.msra.mxu0 0.0
    %3712 = vmatprep.subr.mxu0 0.0
    %3713 = vmatpush1.msra.mxu0 0.0
    %3714 = vmatprep.subr.mxu0 0.0
    %3715 = vmatpush1.msra.mxu0 0.0
    %3716 = vmatprep.subr.mxu0 0.0
    %3717 = vmatpush1.msra.mxu0 0.0
    %3718 = vmatprep.subr.mxu0 0.0
    %3719 = vmatpush1.msra.mxu0 0.0
    %3720 = vmatprep.subr.mxu0 0.0
    %3721 = vmatpush1.msra.mxu0 0.0
    %3722 = vmatprep.subr.mxu0 0.0
    %3723 = vmatpush1.msra.mxu0 0.0
    %3724 = vmatprep.subr.mxu0 0.0
    %3725 = vmatpush1.msra.mxu0 0.0
    %3726 = vmatprep.subr.mxu0 0.0
    %3727 = vmatpush1.msra.mxu0 0.0
    %3728 = vmatprep.subr.mxu0 0.0
    %3729 = vmatpush1.msra.mxu0 0.0
    %3730 = vmatprep.subr.mxu0 0.0
    %3731 = vmatpush1.msra.mxu0 0.0
    %3732 = vmatprep.subr.mxu0 0.0
    %3733 = vmatpush1.msra.mxu0 0.0
    %3734 = vmatprep.subr.mxu0 0.0
    %3735 = vmatpush1.msra.mxu0 0.0
    %3736 = vmatprep.subr.mxu0 0.0
    %3737 = vmatpush1.msra.mxu0 0.0
    %3738 = vmatprep.subr.mxu0 0.0
    %3739 = vmatpush1.msra.mxu0 0.0
    %3740 = vmatprep.subr.mxu0 0.0
    %3741 = vmatpush1.msra.mxu0 0.0
    %3742 = vmatprep.subr.mxu0 0.0
    %3743 = vmatpush1.msra.mxu0 0.0
    %3744 = vmatprep.mubr.f32.mxu0 0.0
    %3745 = vmatmul.mubr.f32.gmra.mrb[0].mxu0 %v3669
    %v3746 = vpop.f32.mrb[0].mxu0
    %v3747 = vadd.f32 0.0, %v3746
    %v3748 = vpop.f32.mrb[0].mxu0
    %3749 = vmatprep.mubr.f32.mxu0 0.0
    %3750 = vmatmul.mubr.f32.gmra.mrb[0].mxu0 %v3672
    %v3751 = vpop.f32.mrb[0].mxu0
    %v3752 = vadd.f32 0.0, %v3751
    %v3753 = vpop.f32.mrb[0].mxu0
    %3754 = vmatprep.mubr.f32.mxu0 0.0
    %3755 = vmatmul.mubr.f32.gmra.mrb[0].mxu0 %v3675
    %v3756 = vpop.f32.mrb[0].mxu0
    %v3757 = vadd.f32 0.0, %v3756
    %v3758 = vpop.f32.mrb[0].mxu0
    %3759 = vmatprep.mubr.f32.mxu0 0.0
    %3760 = vmatmul.mubr.f32.gmra.mrb[0].mxu0 %v3678
    %v3761 = vpop.f32.mrb[0].mxu0
    %v3762 = vadd.f32 0.0, %v3761
    %v3763 = vpop.f32.mrb[0].mxu0
    %3764 = vdwg.mxu0
    %3765 = vmatprep.subr.mxu0 0.0
    %3766 = vmatpush1.msra.mxu0 %v3590
    %3767 = vmatprep.subr.mxu0 0.0
    %3768 = vmatpush1.msra.mxu0 %v3595
    %3769 = vmatprep.subr.mxu0 0.0
    %3770 = vmatpush1.msra.mxu0 %v3600
    %3771 = vmatprep.subr.mxu0 0.0
    %3772 = vmatpush1.msra.mxu0 %v3605
    %3773 = vmatprep.subr.mxu0 0.0
    %3774 = vmatpush1.msra.mxu0 %v3610
    %3775 = vmatprep.subr.mxu0 0.0
    %3776 = vmatpush1.msra.mxu0 %v3615
    %3777 = vmatprep.subr.mxu0 0.0
    %3778 = vmatpush1.msra.mxu0 %v3620
    %3779 = vmatprep.subr.mxu0 0.0
    %3780 = vmatpush1.msra.mxu0 %v3625
    %3781 = vmatprep.subr.mxu0 0.0
    %3782 = vmatpush1.msra.mxu0 %v3630
    %3783 = vmatprep.subr.mxu0 0.0
    %3784 = vmatpush1.msra.mxu0 %v3635
    %3785 = vmatprep.subr.mxu0 0.0
    %3786 = vmatpush1.msra.mxu0 %v3640
    %3787 = vmatprep.subr.mxu0 0.0
    %3788 = vmatpush1.msra.mxu0 %v3645
    %3789 = vmatprep.subr.mxu0 0.0
    %3790 = vmatpush1.msra.mxu0 %v3650
    %3791 = vmatprep.subr.mxu0 0.0
    %3792 = vmatpush1.msra.mxu0 %v3655
    %3793 = vmatprep.subr.mxu0 0.0
    %3794 = vmatpush1.msra.mxu0 %v3660
    %3795 = vmatprep.subr.mxu0 0.0
    %3796 = vmatpush1.msra.mxu0 %v3665
    %3797 = vmatprep.subr.mxu0 0.0
    %3798 = vmatpush1.msra.mxu0 0.0
    %3799 = vmatprep.subr.mxu0 0.0
    %3800 = vmatpush1.msra.mxu0 0.0
    %3801 = vmatprep.subr.mxu0 0.0
    %3802 = vmatpush1.msra.mxu0 0.0
    %3803 = vmatprep.subr.mxu0 0.0
    %3804 = vmatpush1.msra.mxu0 0.0
    %3805 = vmatprep.subr.mxu0 0.0
    %3806 = vmatpush1.msra.mxu0 0.0
    %3807 = vmatprep.subr.mxu0 0.0
    %3808 = vmatpush1.msra.mxu0 0.0
    %3809 = vmatprep.subr.mxu0 0.0
    %3810 = vmatpush1.msra.mxu0 0.0
    %3811 = vmatprep.subr.mxu0 0.0
    %3812 = vmatpush1.msra.mxu0 0.0
    %3813 = vmatprep.subr.mxu0 0.0
    %3814 = vmatpush1.msra.mxu0 0.0
    %3815 = vmatprep.subr.mxu0 0.0
    %3816 = vmatpush1.msra.mxu0 0.0
    %3817 = vmatprep.subr.mxu0 0.0
    %3818 = vmatpush1.msra.mxu0 0.0
    %3819 = vmatprep.subr.mxu0 0.0
    %3820 = vmatpush1.msra.mxu0 0.0
    %3821 = vmatprep.subr.mxu0 0.0
    %3822 = vmatpush1.msra.mxu0 0.0
    %3823 = vmatprep.subr.mxu0 0.0
    %3824 = vmatpush1.msra.mxu0 0.0
    %3825 = vmatprep.subr.mxu0 0.0
    %3826 = vmatpush1.msra.mxu0 0.0
    %3827 = vmatprep.subr.mxu0 0.0
    %3828 = vmatpush1.msra.mxu0 0.0
    %3829 = vmatprep.mubr.f32.mxu0 0.0
    %3830 = vmatmul.mubr.f32.gmra.mrb[0].mxu0 %v763
    %v3831 = vpop.f32.mrb[0].mxu0
    %v3832 = vadd.f32 %v3747, %v3831
    %v3833 = vpop.f32.mrb[0].mxu0
    %3834 = vmatprep.mubr.f32.mxu0 0.0
    %3835 = vmatmul.mubr.f32.gmra.mrb[0].mxu0 %v764
    %v3836 = vpop.f32.mrb[0].mxu0
    %v3837 = vadd.f32 %v3752, %v3836
    %v3838 = vpop.f32.mrb[0].mxu0
    %3839 = vmatprep.mubr.f32.mxu0 0.0
    %3840 = vmatmul.mubr.f32.gmra.mrb[0].mxu0 %v765
    %v3841 = vpop.f32.mrb[0].mxu0
    %v3842 = vadd.f32 %v3757, %v3841
    %v3843 = vpop.f32.mrb[0].mxu0
    %3844 = vmatprep.mubr.f32.mxu0 0.0
    %3845 = vmatmul.mubr.f32.gmra.mrb[0].mxu0 %v766
    %v3846 = vpop.f32.mrb[0].mxu0
    %v3847 = vadd.f32 %v3762, %v3846
    %v3848 = vpop.f32.mrb[0].mxu0
    %3849 = vdwg.mxu0
    %v3850 = vadd.f32 %v3832, %v810
    %v3851 = vadd.f32 %v3837, %v810
    %v3852 = vadd.f32 %v3842, %v810
    %v3853 = vadd.f32 %v3847, %v810
    %v3854 = vmax.f32 %v3850, 0.0
    %v3855 = vmax.f32 %v3851, 0.0
    %v3856 = vmax.f32 %v3852, 0.0
    %v3857 = vmax.f32 %v3853, 0.0
    %3858 = vmatprep.subr.mxu0 0.0
    %3859 = vmatpush1.msra.mxu0 %v3854
    %3860 = vmatprep.subr.mxu0 0.0
    %3861 = vmatpush1.msra.mxu0 %v3855
    %3862 = vmatprep.subr.mxu0 0.0
    %3863 = vmatpush1.msra.mxu0 %v3856
    %3864 = vmatprep.subr.mxu0 0.0
    %3865 = vmatpush1.msra.mxu0 %v3857
    %3866 = vmatprep.subr.mxu0 0.0
    %3867 = vmatpush1.msra.mxu0 0.0
    %3868 = vmatprep.subr.mxu0 0.0
    %3869 = vmatpush1.msra.mxu0 0.0
    %3870 = vmatprep.subr.mxu0 0.0
    %3871 = vmatpush1.msra.mxu0 0.0
    %3872 = vmatprep.subr.mxu0 0.0
    %3873 = vmatpush1.msra.mxu0 0.0
    %3874 = vmatprep.subr.mxu0 0.0
    %3875 = vmatpush1.msra.mxu0 0.0
    %3876 = vmatprep.subr.mxu0 0.0
    %3877 = vmatpush1.msra.mxu0 0.0
    %3878 = vmatprep.subr.mxu0 0.0
    %3879 = vmatpush1.msra.mxu0 0.0
    %3880 = vmatprep.subr.mxu0 0.0
    %3881 = vmatpush1.msra.mxu0 0.0
    %3882 = vmatprep.subr.mxu0 0.0
    %3883 = vmatpush1.msra.mxu0 0.0
    %3884 = vmatprep.subr.mxu0 0.0
    %3885 = vmatpush1.msra.mxu0 0.0
    %3886 = vmatprep.subr.mxu0 0.0
    %3887 = vmatpush1.msra.mxu0 0.0
    %3888 = vmatprep.subr.mxu0 0.0
    %3889 = vmatpush1.msra.mxu0 0.0
    %3890 = vmatprep.subr.mxu0 0.0
    %3891 = vmatpush1.msra.mxu0 0.0
    %3892 = vmatprep.subr.mxu0 0.0
    %3893 = vmatpush1.msra.mxu0 0.0
    %3894 = vmatprep.subr.mxu0 0.0
    %3895 = vmatpush1.msra.mxu0 0.0
    %3896 = vmatprep.subr.mxu0 0.0
    %3897 = vmatpush1.msra.mxu0 0.0
    %3898 = vmatprep.subr.mxu0 0.0
    %3899 = vmatpush1.msra.mxu0 0.0
    %3900 = vmatprep.subr.mxu0 0.0
    %3901 = vmatpush1.msra.mxu0 0.0
    %3902 = vmatprep.subr.mxu0 0.0
    %3903 = vmatpush1.msra.mxu0 0.0
    %3904 = vmatprep.subr.mxu0 0.0
    %3905 = vmatpush1.msra.mxu0 0.0
    %3906 = vmatprep.subr.mxu0 0.0
    %3907 = vmatpush1.msra.mxu0 0.0
    %3908 = vmatprep.subr.mxu0 0.0
    %3909 = vmatpush1.msra.mxu0 0.0
    %3910 = vmatprep.subr.mxu0 0.0
    %3911 = vmatpush1.msra.mxu0 0.0
    %3912 = vmatprep.subr.mxu0 0.0
    %3913 = vmatpush1.msra.mxu0 0.0
    %3914 = vmatprep.subr.mxu0 0.0
    %3915 = vmatpush1.msra.mxu0 0.0
    %3916 = vmatprep.subr.mxu0 0.0
    %3917 = vmatpush1.msra.mxu0 0.0
    %3918 = vmatprep.subr.mxu0 0.0
    %3919 = vmatpush1.msra.mxu0 0.0
    %3920 = vmatprep.subr.mxu0 0.0
    %3921 = vmatpush1.msra.mxu0 0.0
    %3922 = vmatprep.mubr.f32.mxu0 0.0
    %3923 = vmatmul.mubr.f32.gmra.mrb[0].mxu0 %v927
    %v3924 = vpop.f32.mrb[0].mxu0
    %v3925 = vadd.f32 0.0, %v3924
    %v3926 = vpop.f32.mrb[0].mxu0
    %3927 = vmatprep.mubr.f32.mxu0 0.0
    %3928 = vmatmul.mubr.f32.gmra.mrb[0].mxu0 %v930
    %v3929 = vpop.f32.mrb[0].mxu0
    %v3930 = vadd.f32 0.0, %v3929
    %v3931 = vpop.f32.mrb[0].mxu0
    %3932 = vmatprep.mubr.f32.mxu0 0.0
    %3933 = vmatmul.mubr.f32.gmra.mrb[0].mxu0 %v933
    %v3934 = vpop.f32.mrb[0].mxu0
    %v3935 = vadd.f32 0.0, %v3934
    %v3936 = vpop.f32.mrb[0].mxu0
    %3937 = vmatprep.mubr.f32.mxu0 0.0
    %3938 = vmatmul.mubr.f32.gmra.mrb[0].mxu0 %v936
    %v3939 = vpop.f32.mrb[0].mxu0
    %v3940 = vadd.f32 0.0, %v3939
    %v3941 = vpop.f32.mrb[0].mxu0
    %3942 = vmatprep.mubr.f32.mxu0 0.0
    %3943 = vmatmul.mubr.f32.gmra.mrb[0].mxu0 %v939
    %v3944 = vpop.f32.mrb[0].mxu0
    %v3945 = vadd.f32 0.0, %v3944
    %v3946 = vpop.f32.mrb[0].mxu0
    %3947 = vmatprep.mubr.f32.mxu0 0.0
    %3948 = vmatmul.mubr.f32.gmra.mrb[0].mxu0 %v942
    %v3949 = vpop.f32.mrb[0].mxu0
    %v3950 = vadd.f32 0.0, %v3949
    %v3951 = vpop.f32.mrb[0].mxu0
    %3952 = vmatprep.mubr.f32.mxu0 0.0
    %3953 = vmatmul.mubr.f32.gmra.mrb[0].mxu0 %v945
    %v3954 = vpop.f32.mrb[0].mxu0
    %v3955 = vadd.f32 0.0, %v3954
    %v3956 = vpop.f32.mrb[0].mxu0
    %3957 = vmatprep.mubr.f32.mxu0 0.0
    %3958 = vmatmul.mubr.f32.gmra.mrb[0].mxu0 %v948
    %v3959 = vpop.f32.mrb[0].mxu0
    %v3960 = vadd.f32 0.0, %v3959
    %v3961 = vpop.f32.mrb[0].mxu0
    %3962 = vmatprep.mubr.f32.mxu0 0.0
    %3963 = vmatmul.mubr.f32.gmra.mrb[0].mxu0 %v951
    %v3964 = vpop.f32.mrb[0].mxu0
    %v3965 = vadd.f32 0.0, %v3964
    %v3966 = vpop.f32.mrb[0].mxu0
    %3967 = vmatprep.mubr.f32.mxu0 0.0
    %3968 = vmatmul.mubr.f32.gmra.mrb[0].mxu0 %v954
    %v3969 = vpop.f32.mrb[0].mxu0
    %v3970 = vadd.f32 0.0, %v3969
    %v3971 = vpop.f32.mrb[0].mxu0
    %3972 = vmatprep.mubr.f32.mxu0 0.0
    %3973 = vmatmul.mubr.f32.gmra.mrb[0].mxu0 %v957
    %v3974 = vpop.f32.mrb[0].mxu0
    %v3975 = vadd.f32 0.0, %v3974
    %v3976 = vpop.f32.mrb[0].mxu0
    %3977 = vmatprep.mubr.f32.mxu0 0.0
    %3978 = vmatmul.mubr.f32.gmra.mrb[0].mxu0 %v960
    %v3979 = vpop.f32.mrb[0].mxu0
    %v3980 = vadd.f32 0.0, %v3979
    %v3981 = vpop.f32.mrb[0].mxu0
    %3982 = vmatprep.mubr.f32.mxu0 0.0
    %3983 = vmatmul.mubr.f32.gmra.mrb[0].mxu0 %v963
    %v3984 = vpop.f32.mrb[0].mxu0
    %v3985 = vadd.f32 0.0, %v3984
    %v3986 = vpop.f32.mrb[0].mxu0
    %3987 = vmatprep.mubr.f32.mxu0 0.0
    %3988 = vmatmul.mubr.f32.gmra.mrb[0].mxu0 %v966
    %v3989 = vpop.f32.mrb[0].mxu0
    %v3990 = vadd.f32 0.0, %v3989
    %v3991 = vpop.f32.mrb[0].mxu0
    %3992 = vmatprep.mubr.f32.mxu0 0.0
    %3993 = vmatmul.mubr.f32.gmra.mrb[0].mxu0 %v969
    %v3994 = vpop.f32.mrb[0].mxu0
    %v3995 = vadd.f32 0.0, %v3994
    %v3996 = vpop.f32.mrb[0].mxu0
    %3997 = vmatprep.mubr.f32.mxu0 0.0
    %3998 = vmatmul.mubr.f32.gmra.mrb[0].mxu0 %v972
    %v3999 = vpop.f32.mrb[0].mxu0
    %v4000 = vadd.f32 0.0, %v3999
    %v4001 = vpop.f32.mrb[0].mxu0
    %4002 = vdwg.mxu0
    %v4004 = vsel %vm307, %v3925, 0
    %v4007 = vsel %vm307, %v3930, 0
    %v4010 = vsel %vm307, %v3935, 0
    %v4013 = vsel %vm307, %v3940, 0
    %v4016 = vsel %vm307, %v3945, 0
    %v4019 = vsel %vm307, %v3950, 0
    %v4022 = vsel %vm307, %v3955, 0
    %v4025 = vsel %vm307, %v3960, 0
    %v4028 = vsel %vm307, %v3965, 0
    %v4031 = vsel %vm307, %v3970, 0
    %v4034 = vsel %vm307, %v3975, 0
    %v4037 = vsel %vm307, %v3980, 0
    %v4040 = vsel %vm307, %v3985, 0
    %v4043 = vsel %vm307, %v3990, 0
    %v4046 = vsel %vm307, %v3995, 0
    %v4049 = vsel %vm307, %v4000, 0
    %4051 = vmatprep.subr.mxu0 %v768
    %4052 = vmatpush1.msra.mxu0 %v767
    %4053 = vmatprep.subr.mxu0 %v770
    %4054 = vmatpush1.msra.mxu0 %v769
    %4055 = vmatprep.subr.mxu0 0.0
    %4056 = vmatpush1.msra.mxu0 0.0
    %4057 = vmatprep.subr.mxu0 0.0
    %4058 = vmatpush1.msra.mxu0 0.0
    %4059 = vmatprep.subr.mxu0 0.0
    %4060 = vmatpush1.msra.mxu0 0.0
    %4061 = vmatprep.subr.mxu0 0.0
    %4062 = vmatpush1.msra.mxu0 0.0
    %4063 = vmatprep.subr.mxu0 0.0
    %4064 = vmatpush1.msra.mxu0 0.0
    %4065 = vmatprep.subr.mxu0 0.0
    %4066 = vmatpush1.msra.mxu0 0.0
    %4067 = vmatprep.subr.mxu0 0.0
    %4068 = vmatpush1.msra.mxu0 0.0
    %4069 = vmatprep.subr.mxu0 0.0
    %4070 = vmatpush1.msra.mxu0 0.0
    %4071 = vmatprep.subr.mxu0 0.0
    %4072 = vmatpush1.msra.mxu0 0.0
    %4073 = vmatprep.subr.mxu0 0.0
    %4074 = vmatpush1.msra.mxu0 0.0
    %4075 = vmatprep.subr.mxu0 0.0
    %4076 = vmatpush1.msra.mxu0 0.0
    %4077 = vmatprep.subr.mxu0 0.0
    %4078 = vmatpush1.msra.mxu0 0.0
    %4079 = vmatprep.subr.mxu0 0.0
    %4080 = vmatpush1.msra.mxu0 0.0
    %4081 = vmatprep.subr.mxu0 0.0
    %4082 = vmatpush1.msra.mxu0 0.0
    %4083 = vmatprep.subr.mxu0 0.0
    %4084 = vmatpush1.msra.mxu0 0.0
    %4085 = vmatprep.subr.mxu0 0.0
    %4086 = vmatpush1.msra.mxu0 0.0
    %4087 = vmatprep.subr.mxu0 0.0
    %4088 = vmatpush1.msra.mxu0 0.0
    %4089 = vmatprep.subr.mxu0 0.0
    %4090 = vmatpush1.msra.mxu0 0.0
    %4091 = vmatprep.subr.mxu0 0.0
    %4092 = vmatpush1.msra.mxu0 0.0
    %4093 = vmatprep.subr.mxu0 0.0
    %4094 = vmatpush1.msra.mxu0 0.0
    %4095 = vmatprep.subr.mxu0 0.0
    %4096 = vmatpush1.msra.mxu0 0.0
    %4097 = vmatprep.subr.mxu0 0.0
    %4098 = vmatpush1.msra.mxu0 0.0
    %4099 = vmatprep.subr.mxu0 0.0
    %4100 = vmatpush1.msra.mxu0 0.0
    %4101 = vmatprep.subr.mxu0 0.0
    %4102 = vmatpush1.msra.mxu0 0.0
    %4103 = vmatprep.subr.mxu0 0.0
    %4104 = vmatpush1.msra.mxu0 0.0
    %4105 = vmatprep.subr.mxu0 0.0
    %4106 = vmatpush1.msra.mxu0 0.0
    %4107 = vmatprep.subr.mxu0 0.0
    %4108 = vmatpush1.msra.mxu0 0.0
    %4109 = vmatprep.subr.mxu0 0.0
    %4110 = vmatpush1.msra.mxu0 0.0
    %4111 = vmatprep.subr.mxu0 0.0
    %4112 = vmatpush1.msra.mxu0 0.0
    %4113 = vmatprep.subr.mxu0 0.0
    %4114 = vmatpush1.msra.mxu0 0.0
    %4115 = vmatprep.mubr.f32.mxu0 0.0
    %4116 = vmatmul.mubr.f32.gmra.mrb[0].mxu0 %v4004
    %v4117 = vpop.f32.mrb[0].mxu0
    %v4118 = vadd.f32 0.0, %v4117
    %v4119 = vpop.f32.mrb[0].mxu0
    %v4120 = vadd.f32 0.0, %v4119
    %4121 = vmatprep.mubr.f32.mxu0 0.0
    %4122 = vmatmul.mubr.f32.gmra.mrb[0].mxu0 %v4007
    %v4123 = vpop.f32.mrb[0].mxu0
    %v4124 = vadd.f32 0.0, %v4123
    %v4125 = vpop.f32.mrb[0].mxu0
    %v4126 = vadd.f32 0.0, %v4125
    %4127 = vmatprep.mubr.f32.mxu0 0.0
    %4128 = vmatmul.mubr.f32.gmra.mrb[0].mxu0 %v4010
    %v4129 = vpop.f32.mrb[0].mxu0
    %v4130 = vadd.f32 0.0, %v4129
    %v4131 = vpop.f32.mrb[0].mxu0
    %v4132 = vadd.f32 0.0, %v4131
    %4133 = vmatprep.mubr.f32.mxu0 0.0
    %4134 = vmatmul.mubr.f32.gmra.mrb[0].mxu0 %v4013
    %v4135 = vpop.f32.mrb[0].mxu0
    %v4136 = vadd.f32 0.0, %v4135
    %v4137 = vpop.f32.mrb[0].mxu0
    %v4138 = vadd.f32 0.0, %v4137
    %4139 = vmatprep.mubr.f32.mxu0 0.0
    %4140 = vmatmul.mubr.f32.gmra.mrb[0].mxu0 %v4016
    %v4141 = vpop.f32.mrb[0].mxu0
    %v4142 = vadd.f32 0.0, %v4141
    %v4143 = vpop.f32.mrb[0].mxu0
    %v4144 = vadd.f32 0.0, %v4143
    %4145 = vmatprep.mubr.f32.mxu0 0.0
    %4146 = vmatmul.mubr.f32.gmra.mrb[0].mxu0 %v4019
    %v4147 = vpop.f32.mrb[0].mxu0
    %v4148 = vadd.f32 0.0, %v4147
    %v4149 = vpop.f32.mrb[0].mxu0
    %v4150 = vadd.f32 0.0, %v4149
    %4151 = vmatprep.mubr.f32.mxu0 0.0
    %4152 = vmatmul.mubr.f32.gmra.mrb[0].mxu0 %v4022
    %v4153 = vpop.f32.mrb[0].mxu0
    %v4154 = vadd.f32 0.0, %v4153
    %v4155 = vpop.f32.mrb[0].mxu0
    %v4156 = vadd.f32 0.0, %v4155
    %4157 = vmatprep.mubr.f32.mxu0 0.0
    %4158 = vmatmul.mubr.f32.gmra.mrb[0].mxu0 %v4025
    %v4159 = vpop.f32.mrb[0].mxu0
    %v4160 = vadd.f32 0.0, %v4159
    %v4161 = vpop.f32.mrb[0].mxu0
    %v4162 = vadd.f32 0.0, %v4161
    %4163 = vmatprep.mubr.f32.mxu0 0.0
    %4164 = vmatmul.mubr.f32.gmra.mrb[0].mxu0 %v4028
    %v4165 = vpop.f32.mrb[0].mxu0
    %v4166 = vadd.f32 0.0, %v4165
    %v4167 = vpop.f32.mrb[0].mxu0
    %v4168 = vadd.f32 0.0, %v4167
    %4169 = vmatprep.mubr.f32.mxu0 0.0
    %4170 = vmatmul.mubr.f32.gmra.mrb[0].mxu0 %v4031
    %v4171 = vpop.f32.mrb[0].mxu0
    %v4172 = vadd.f32 0.0, %v4171
    %v4173 = vpop.f32.mrb[0].mxu0
    %v4174 = vadd.f32 0.0, %v4173
    %4175 = vmatprep.mubr.f32.mxu0 0.0
    %4176 = vmatmul.mubr.f32.gmra.mrb[0].mxu0 %v4034
    %v4177 = vpop.f32.mrb[0].mxu0
    %v4178 = vadd.f32 0.0, %v4177
    %v4179 = vpop.f32.mrb[0].mxu0
    %v4180 = vadd.f32 0.0, %v4179
    %4181 = vmatprep.mubr.f32.mxu0 0.0
    %4182 = vmatmul.mubr.f32.gmra.mrb[0].mxu0 %v4037
    %v4183 = vpop.f32.mrb[0].mxu0
    %v4184 = vadd.f32 0.0, %v4183
    %v4185 = vpop.f32.mrb[0].mxu0
    %v4186 = vadd.f32 0.0, %v4185
    %4187 = vmatprep.mubr.f32.mxu0 0.0
    %4188 = vmatmul.mubr.f32.gmra.mrb[0].mxu0 %v4040
    %v4189 = vpop.f32.mrb[0].mxu0
    %v4190 = vadd.f32 0.0, %v4189
    %v4191 = vpop.f32.mrb[0].mxu0
    %v4192 = vadd.f32 0.0, %v4191
    %4193 = vmatprep.mubr.f32.mxu0 0.0
    %4194 = vmatmul.mubr.f32.gmra.mrb[0].mxu0 %v4043
    %v4195 = vpop.f32.mrb[0].mxu0
    %v4196 = vadd.f32 0.0, %v4195
    %v4197 = vpop.f32.mrb[0].mxu0
    %v4198 = vadd.f32 0.0, %v4197
    %4199 = vmatprep.mubr.f32.mxu0 0.0
    %4200 = vmatmul.mubr.f32.gmra.mrb[0].mxu0 %v4046
    %v4201 = vpop.f32.mrb[0].mxu0
    %v4202 = vadd.f32 0.0, %v4201
    %v4203 = vpop.f32.mrb[0].mxu0
    %v4204 = vadd.f32 0.0, %v4203
    %4205 = vmatprep.mubr.f32.mxu0 0.0
    %4206 = vmatmul.mubr.f32.gmra.mrb[0].mxu0 %v4049
    %v4207 = vpop.f32.mrb[0].mxu0
    %v4208 = vadd.f32 0.0, %v4207
    %v4209 = vpop.f32.mrb[0].mxu0
    %v4210 = vadd.f32 0.0, %v4209
    %4211 = vdwg.mxu0
    %v4212 = vmul.f32 %v4118, %v653
    %v4213 = vmul.f32 %v4120, %v655
    %v4214 = vmul.f32 %v4124, %v659
    %v4215 = vmul.f32 %v4126, %v661
    %v4216 = vmul.f32 %v4130, %v665
    %v4217 = vmul.f32 %v4132, %v667
    %v4218 = vmul.f32 %v4136, %v671
    %v4219 = vmul.f32 %v4138, %v673
    %v4220 = vmul.f32 %v4142, %v677
    %v4221 = vmul.f32 %v4144, %v679
    %v4222 = vmul.f32 %v4148, %v683
    %v4223 = vmul.f32 %v4150, %v685
    %v4224 = vmul.f32 %v4154, %v689
    %v4225 = vmul.f32 %v4156, %v691
    %v4226 = vmul.f32 %v4160, %v695
    %v4227 = vmul.f32 %v4162, %v697
    %v4228 = vmul.f32 %v4166, %v701
    %v4229 = vmul.f32 %v4168, %v703
    %v4230 = vmul.f32 %v4172, %v707
    %v4231 = vmul.f32 %v4174, %v709
    %v4232 = vmul.f32 %v4178, %v713
    %v4233 = vmul.f32 %v4180, %v715
    %v4234 = vmul.f32 %v4184, %v719
    %v4235 = vmul.f32 %v4186, %v721
    %v4236 = vmul.f32 %v4190, %v725
    %v4237 = vmul.f32 %v4192, %v727
    %v4238 = vmul.f32 %v4196, %v731
    %v4239 = vmul.f32 %v4198, %v733
    %v4240 = vmul.f32 %v4202, %v737
    %v4241 = vmul.f32 %v4204, %v739
    %v4242 = vmul.f32 %v4208, %v743
    %v4243 = vmul.f32 %v4210, %v745
    %4244 = vmatprep.subr.mxu0 0.0
    %4245 = vmatpush1.msra.mxu0 %v771
    %4246 = vmatprep.subr.mxu0 0.0
    %4247 = vmatpush1.msra.mxu0 %v772
    %4248 = vmatprep.subr.mxu0 0.0
    %4249 = vmatpush1.msra.mxu0 %v773
    %4250 = vmatprep.subr.mxu0 0.0
    %4251 = vmatpush1.msra.mxu0 %v774
    %4252 = vmatprep.subr.mxu0 0.0
    %4253 = vmatpush1.msra.mxu0 %v775
    %4254 = vmatprep.subr.mxu0 0.0
    %4255 = vmatpush1.msra.mxu0 %v776
    %4256 = vmatprep.subr.mxu0 0.0
    %4257 = vmatpush1.msra.mxu0 %v777
    %4258 = vmatprep.subr.mxu0 0.0
    %4259 = vmatpush1.msra.mxu0 %v778
    %4260 = vmatprep.subr.mxu0 0.0
    %4261 = vmatpush1.msra.mxu0 %v779
    %4262 = vmatprep.subr.mxu0 0.0
    %4263 = vmatpush1.msra.mxu0 %v780
    %4264 = vmatprep.subr.mxu0 0.0
    %4265 = vmatpush1.msra.mxu0 %v781
    %4266 = vmatprep.subr.mxu0 0.0
    %4267 = vmatpush1.msra.mxu0 %v782
    %4268 = vmatprep.subr.mxu0 0.0
    %4269 = vmatpush1.msra.mxu0 %v783
    %4270 = vmatprep.subr.mxu0 0.0
    %4271 = vmatpush1.msra.mxu0 %v784
    %4272 = vmatprep.subr.mxu0 0.0
    %4273 = vmatpush1.msra.mxu0 %v785
    %4274 = vmatprep.subr.mxu0 0.0
    %4275 = vmatpush1.msra.mxu0 %v786
    %4276 = vmatprep.subr.mxu0 0.0
    %4277 = vmatpush1.msra.mxu0 %v787
    %4278 = vmatprep.subr.mxu0 0.0
    %4279 = vmatpush1.msra.mxu0 %v788
    %4280 = vmatprep.subr.mxu0 0.0
    %4281 = vmatpush1.msra.mxu0 %v789
    %4282 = vmatprep.subr.mxu0 0.0
    %4283 = vmatpush1.msra.mxu0 %v790
    %4284 = vmatprep.subr.mxu0 0.0
    %4285 = vmatpush1.msra.mxu0 %v791
    %4286 = vmatprep.subr.mxu0 0.0
    %4287 = vmatpush1.msra.mxu0 %v792
    %4288 = vmatprep.subr.mxu0 0.0
    %4289 = vmatpush1.msra.mxu0 %v793
    %4290 = vmatprep.subr.mxu0 0.0
    %4291 = vmatpush1.msra.mxu0 %v794
    %4292 = vmatprep.subr.mxu0 0.0
    %4293 = vmatpush1.msra.mxu0 %v795
    %4294 = vmatprep.subr.mxu0 0.0
    %4295 = vmatpush1.msra.mxu0 %v796
    %4296 = vmatprep.subr.mxu0 0.0
    %4297 = vmatpush1.msra.mxu0 %v797
    %4298 = vmatprep.subr.mxu0 0.0
    %4299 = vmatpush1.msra.mxu0 %v798
    %4300 = vmatprep.subr.mxu0 0.0
    %4301 = vmatpush1.msra.mxu0 %v799
    %4302 = vmatprep.subr.mxu0 0.0
    %4303 = vmatpush1.msra.mxu0 %v800
    %4304 = vmatprep.subr.mxu0 0.0
    %4305 = vmatpush1.msra.mxu0 %v801
    %4306 = vmatprep.subr.mxu0 0.0
    %4307 = vmatpush1.msra.mxu0 %v802
    %4308 = vmatprep.mubr.f32.mxu0 %v4213
    %4309 = vmatmul.mubr.f32.gmra.mrb[0].mxu0 %v4212
    %v4310 = vpop.f32.mrb[0].mxu0
    %v4311 = vadd.f32 0.0, %v4310
    %v4312 = vpop.f32.mrb[0].mxu0
    %4313 = vmatprep.mubr.f32.mxu0 %v4215
    %4314 = vmatmul.mubr.f32.gmra.mrb[0].mxu0 %v4214
    %v4315 = vpop.f32.mrb[0].mxu0
    %v4316 = vadd.f32 0.0, %v4315
    %v4317 = vpop.f32.mrb[0].mxu0
    %4318 = vmatprep.mubr.f32.mxu0 %v4217
    %4319 = vmatmul.mubr.f32.gmra.mrb[0].mxu0 %v4216
    %v4320 = vpop.f32.mrb[0].mxu0
    %v4321 = vadd.f32 0.0, %v4320
    %v4322 = vpop.f32.mrb[0].mxu0
    %4323 = vmatprep.mubr.f32.mxu0 %v4219
    %4324 = vmatmul.mubr.f32.gmra.mrb[0].mxu0 %v4218
    %v4325 = vpop.f32.mrb[0].mxu0
    %v4326 = vadd.f32 0.0, %v4325
    %v4327 = vpop.f32.mrb[0].mxu0
    %4328 = vmatprep.mubr.f32.mxu0 %v4221
    %4329 = vmatmul.mubr.f32.gmra.mrb[0].mxu0 %v4220
    %v4330 = vpop.f32.mrb[0].mxu0
    %v4331 = vadd.f32 0.0, %v4330
    %v4332 = vpop.f32.mrb[0].mxu0
    %4333 = vmatprep.mubr.f32.mxu0 %v4223
    %4334 = vmatmul.mubr.f32.gmra.mrb[0].mxu0 %v4222
    %v4335 = vpop.f32.mrb[0].mxu0
    %v4336 = vadd.f32 0.0, %v4335
    %v4337 = vpop.f32.mrb[0].mxu0
    %4338 = vmatprep.mubr.f32.mxu0 %v4225
    %4339 = vmatmul.mubr.f32.gmra.mrb[0].mxu0 %v4224
    %v4340 = vpop.f32.mrb[0].mxu0
    %v4341 = vadd.f32 0.0, %v4340
    %v4342 = vpop.f32.mrb[0].mxu0
    %4343 = vmatprep.mubr.f32.mxu0 %v4227
    %4344 = vmatmul.mubr.f32.gmra.mrb[0].mxu0 %v4226
    %v4345 = vpop.f32.mrb[0].mxu0
    %v4346 = vadd.f32 0.0, %v4345
    %v4347 = vpop.f32.mrb[0].mxu0
    %4348 = vmatprep.mubr.f32.mxu0 %v4229
    %4349 = vmatmul.mubr.f32.gmra.mrb[0].mxu0 %v4228
    %v4350 = vpop.f32.mrb[0].mxu0
    %v4351 = vadd.f32 0.0, %v4350
    %v4352 = vpop.f32.mrb[0].mxu0
    %4353 = vmatprep.mubr.f32.mxu0 %v4231
    %4354 = vmatmul.mubr.f32.gmra.mrb[0].mxu0 %v4230
    %v4355 = vpop.f32.mrb[0].mxu0
    %v4356 = vadd.f32 0.0, %v4355
    %v4357 = vpop.f32.mrb[0].mxu0
    %4358 = vmatprep.mubr.f32.mxu0 %v4233
    %4359 = vmatmul.mubr.f32.gmra.mrb[0].mxu0 %v4232
    %v4360 = vpop.f32.mrb[0].mxu0
    %v4361 = vadd.f32 0.0, %v4360
    %v4362 = vpop.f32.mrb[0].mxu0
    %4363 = vmatprep.mubr.f32.mxu0 %v4235
    %4364 = vmatmul.mubr.f32.gmra.mrb[0].mxu0 %v4234
    %v4365 = vpop.f32.mrb[0].mxu0
    %v4366 = vadd.f32 0.0, %v4365
    %v4367 = vpop.f32.mrb[0].mxu0
    %4368 = vmatprep.mubr.f32.mxu0 %v4237
    %4369 = vmatmul.mubr.f32.gmra.mrb[0].mxu0 %v4236
    %v4370 = vpop.f32.mrb[0].mxu0
    %v4371 = vadd.f32 0.0, %v4370
    %v4372 = vpop.f32.mrb[0].mxu0
    %4373 = vmatprep.mubr.f32.mxu0 %v4239
    %4374 = vmatmul.mubr.f32.gmra.mrb[0].mxu0 %v4238
    %v4375 = vpop.f32.mrb[0].mxu0
    %v4376 = vadd.f32 0.0, %v4375
    %v4377 = vpop.f32.mrb[0].mxu0
    %4378 = vmatprep.mubr.f32.mxu0 %v4241
    %4379 = vmatmul.mubr.f32.gmra.mrb[0].mxu0 %v4240
    %v4380 = vpop.f32.mrb[0].mxu0
    %v4381 = vadd.f32 0.0, %v4380
    %v4382 = vpop.f32.mrb[0].mxu0
    %4383 = vmatprep.mubr.f32.mxu0 %v4243
    %4384 = vmatmul.mubr.f32.gmra.mrb[0].mxu0 %v4242
    %v4385 = vpop.f32.mrb[0].mxu0
    %v4386 = vadd.f32 0.0, %v4385
    %v4387 = vpop.f32.mrb[0].mxu0
    %4388 = vdwg.mxu0
    %v4390 = vsel %vm307, %v3854, 0
    %v4393 = vsel %vm307, %v3855, 0
    %v4396 = vsel %vm307, %v3856, 0
    %v4399 = vsel %vm307, %v3857, 0
    %4401 = vmatprep.subr.mxu0 0.0
    %4402 = vmatpush1.msra.mxu0 %v803
    %4403 = vmatprep.subr.mxu0 0.0
    %4404 = vmatpush1.msra.mxu0 %v804
    %4405 = vmatprep.subr.mxu0 0.0
    %4406 = vmatpush1.msra.mxu0 0.0
    %4407 = vmatprep.subr.mxu0 0.0
    %4408 = vmatpush1.msra.mxu0 0.0
    %4409 = vmatprep.subr.mxu0 0.0
    %4410 = vmatpush1.msra.mxu0 0.0
    %4411 = vmatprep.subr.mxu0 0.0
    %4412 = vmatpush1.msra.mxu0 0.0
    %4413 = vmatprep.subr.mxu0 0.0
    %4414 = vmatpush1.msra.mxu0 0.0
    %4415 = vmatprep.subr.mxu0 0.0
    %4416 = vmatpush1.msra.mxu0 0.0
    %4417 = vmatprep.subr.mxu0 0.0
    %4418 = vmatpush1.msra.mxu0 0.0
    %4419 = vmatprep.subr.mxu0 0.0
    %4420 = vmatpush1.msra.mxu0 0.0
    %4421 = vmatprep.subr.mxu0 0.0
    %4422 = vmatpush1.msra.mxu0 0.0
    %4423 = vmatprep.subr.mxu0 0.0
    %4424 = vmatpush1.msra.mxu0 0.0
    %4425 = vmatprep.subr.mxu0 0.0
    %4426 = vmatpush1.msra.mxu0 0.0
    %4427 = vmatprep.subr.mxu0 0.0
    %4428 = vmatpush1.msra.mxu0 0.0
    %4429 = vmatprep.subr.mxu0 0.0
    %4430 = vmatpush1.msra.mxu0 0.0
    %4431 = vmatprep.subr.mxu0 0.0
    %4432 = vmatpush1.msra.mxu0 0.0
    %4433 = vmatprep.subr.mxu0 0.0
    %4434 = vmatpush1.msra.mxu0 0.0
    %4435 = vmatprep.subr.mxu0 0.0
    %4436 = vmatpush1.msra.mxu0 0.0
    %4437 = vmatprep.subr.mxu0 0.0
    %4438 = vmatpush1.msra.mxu0 0.0
    %4439 = vmatprep.subr.mxu0 0.0
    %4440 = vmatpush1.msra.mxu0 0.0
    %4441 = vmatprep.subr.mxu0 0.0
    %4442 = vmatpush1.msra.mxu0 0.0
    %4443 = vmatprep.subr.mxu0 0.0
    %4444 = vmatpush1.msra.mxu0 0.0
    %4445 = vmatprep.subr.mxu0 0.0
    %4446 = vmatpush1.msra.mxu0 0.0
    %4447 = vmatprep.subr.mxu0 0.0
    %4448 = vmatpush1.msra.mxu0 0.0
    %4449 = vmatprep.subr.mxu0 0.0
    %4450 = vmatpush1.msra.mxu0 0.0
    %4451 = vmatprep.subr.mxu0 0.0
    %4452 = vmatpush1.msra.mxu0 0.0
    %4453 = vmatprep.subr.mxu0 0.0
    %4454 = vmatpush1.msra.mxu0 0.0
    %4455 = vmatprep.subr.mxu0 0.0
    %4456 = vmatpush1.msra.mxu0 0.0
    %4457 = vmatprep.subr.mxu0 0.0
    %4458 = vmatpush1.msra.mxu0 0.0
    %4459 = vmatprep.subr.mxu0 0.0
    %4460 = vmatpush1.msra.mxu0 0.0
    %4461 = vmatprep.subr.mxu0 0.0
    %4462 = vmatpush1.msra.mxu0 0.0
    %4463 = vmatprep.subr.mxu0 0.0
    %4464 = vmatpush1.msra.mxu0 0.0
    %4465 = vmatprep.mubr.f32.mxu0 0.0
    %4466 = vmatmul.mubr.f32.gmra.mrb[0].mxu0 %v4390
    %v4467 = vpop.f32.mrb[0].mxu0
    %v4468 = vadd.f32 0.0, %v4467
    %v4469 = vpop.f32.mrb[0].mxu0
    %4470 = vmatprep.mubr.f32.mxu0 0.0
    %4471 = vmatmul.mubr.f32.gmra.mrb[0].mxu0 %v4393
    %v4472 = vpop.f32.mrb[0].mxu0
    %v4473 = vadd.f32 0.0, %v4472
    %v4474 = vpop.f32.mrb[0].mxu0
    %4475 = vmatprep.mubr.f32.mxu0 0.0
    %4476 = vmatmul.mubr.f32.gmra.mrb[0].mxu0 %v4396
    %v4477 = vpop.f32.mrb[0].mxu0
    %v4478 = vadd.f32 0.0, %v4477
    %v4479 = vpop.f32.mrb[0].mxu0
    %4480 = vmatprep.mubr.f32.mxu0 0.0
    %4481 = vmatmul.mubr.f32.gmra.mrb[0].mxu0 %v4399
    %v4482 = vpop.f32.mrb[0].mxu0
    %v4483 = vadd.f32 0.0, %v4482
    %v4484 = vpop.f32.mrb[0].mxu0
    %4485 = vdwg.mxu0
    %4486 = vmatprep.subr.mxu0 0.0
    %4487 = vmatpush1.msra.mxu0 %v4311
    %4488 = vmatprep.subr.mxu0 0.0
    %4489 = vmatpush1.msra.mxu0 %v4316
    %4490 = vmatprep.subr.mxu0 0.0
    %4491 = vmatpush1.msra.mxu0 %v4321
    %4492 = vmatprep.subr.mxu0 0.0
    %4493 = vmatpush1.msra.mxu0 %v4326
    %4494 = vmatprep.subr.mxu0 0.0
    %4495 = vmatpush1.msra.mxu0 %v4331
    %4496 = vmatprep.subr.mxu0 0.0
    %4497 = vmatpush1.msra.mxu0 %v4336
    %4498 = vmatprep.subr.mxu0 0.0
    %4499 = vmatpush1.msra.mxu0 %v4341
    %4500 = vmatprep.subr.mxu0 0.0
    %4501 = vmatpush1.msra.mxu0 %v4346
    %4502 = vmatprep.subr.mxu0 0.0
    %4503 = vmatpush1.msra.mxu0 %v4351
    %4504 = vmatprep.subr.mxu0 0.0
    %4505 = vmatpush1.msra.mxu0 %v4356
    %4506 = vmatprep.subr.mxu0 0.0
    %4507 = vmatpush1.msra.mxu0 %v4361
    %4508 = vmatprep.subr.mxu0 0.0
    %4509 = vmatpush1.msra.mxu0 %v4366
    %4510 = vmatprep.subr.mxu0 0.0
    %4511 = vmatpush1.msra.mxu0 %v4371
    %4512 = vmatprep.subr.mxu0 0.0
    %4513 = vmatpush1.msra.mxu0 %v4376
    %4514 = vmatprep.subr.mxu0 0.0
    %4515 = vmatpush1.msra.mxu0 %v4381
    %4516 = vmatprep.subr.mxu0 0.0
    %4517 = vmatpush1.msra.mxu0 %v4386
    %4518 = vmatprep.subr.mxu0 0.0
    %4519 = vmatpush1.msra.mxu0 0.0
    %4520 = vmatprep.subr.mxu0 0.0
    %4521 = vmatpush1.msra.mxu0 0.0
    %4522 = vmatprep.subr.mxu0 0.0
    %4523 = vmatpush1.msra.mxu0 0.0
    %4524 = vmatprep.subr.mxu0 0.0
    %4525 = vmatpush1.msra.mxu0 0.0
    %4526 = vmatprep.subr.mxu0 0.0
    %4527 = vmatpush1.msra.mxu0 0.0
    %4528 = vmatprep.subr.mxu0 0.0
    %4529 = vmatpush1.msra.mxu0 0.0
    %4530 = vmatprep.subr.mxu0 0.0
    %4531 = vmatpush1.msra.mxu0 0.0
    %4532 = vmatprep.subr.mxu0 0.0
    %4533 = vmatpush1.msra.mxu0 0.0
    %4534 = vmatprep.subr.mxu0 0.0
    %4535 = vmatpush1.msra.mxu0 0.0
    %4536 = vmatprep.subr.mxu0 0.0
    %4537 = vmatpush1.msra.mxu0 0.0
    %4538 = vmatprep.subr.mxu0 0.0
    %4539 = vmatpush1.msra.mxu0 0.0
    %4540 = vmatprep.subr.mxu0 0.0
    %4541 = vmatpush1.msra.mxu0 0.0
    %4542 = vmatprep.subr.mxu0 0.0
    %4543 = vmatpush1.msra.mxu0 0.0
    %4544 = vmatprep.subr.mxu0 0.0
    %4545 = vmatpush1.msra.mxu0 0.0
    %4546 = vmatprep.subr.mxu0 0.0
    %4547 = vmatpush1.msra.mxu0 0.0
    %4548 = vmatprep.subr.mxu0 0.0
    %4549 = vmatpush1.msra.mxu0 0.0
    %4550 = vmatprep.mubr.f32.mxu0 0.0
    %4551 = vmatmul.mubr.f32.gmra.mrb[0].mxu0 %v763
    %v4552 = vpop.f32.mrb[0].mxu0
    %v4553 = vadd.f32 %v4468, %v4552
    %v4554 = vpop.f32.mrb[0].mxu0
    %4555 = vmatprep.mubr.f32.mxu0 0.0
    %4556 = vmatmul.mubr.f32.gmra.mrb[0].mxu0 %v764
    %v4557 = vpop.f32.mrb[0].mxu0
    %v4558 = vadd.f32 %v4473, %v4557
    %v4559 = vpop.f32.mrb[0].mxu0
    %4560 = vmatprep.mubr.f32.mxu0 0.0
    %4561 = vmatmul.mubr.f32.gmra.mrb[0].mxu0 %v765
    %v4562 = vpop.f32.mrb[0].mxu0
    %v4563 = vadd.f32 %v4478, %v4562
    %v4564 = vpop.f32.mrb[0].mxu0
    %4565 = vmatprep.mubr.f32.mxu0 0.0
    %4566 = vmatmul.mubr.f32.gmra.mrb[0].mxu0 %v766
    %v4567 = vpop.f32.mrb[0].mxu0
    %v4568 = vadd.f32 %v4483, %v4567
    %v4569 = vpop.f32.mrb[0].mxu0
    %4570 = vdwg.mxu0
    %v4571 = vadd.f32 %v4553, %v810
    %v4572 = vadd.f32 %v4558, %v810
    %v4573 = vadd.f32 %v4563, %v810
    %v4574 = vadd.f32 %v4568, %v810
    %v4575 = vmax.f32 %v4571, 0.0
    %v4576 = vmax.f32 %v4572, 0.0
    %v4577 = vmax.f32 %v4573, 0.0
    %v4578 = vmax.f32 %v4574, 0.0
    %4579 = vmatprep.subr.mxu0 0.0
    %4580 = vmatpush1.msra.mxu0 %v4575
    %4581 = vmatprep.subr.mxu0 0.0
    %4582 = vmatpush1.msra.mxu0 %v4576
    %4583 = vmatprep.subr.mxu0 0.0
    %4584 = vmatpush1.msra.mxu0 %v4577
    %4585 = vmatprep.subr.mxu0 0.0
    %4586 = vmatpush1.msra.mxu0 %v4578
    %4587 = vmatprep.subr.mxu0 0.0
    %4588 = vmatpush1.msra.mxu0 0.0
    %4589 = vmatprep.subr.mxu0 0.0
    %4590 = vmatpush1.msra.mxu0 0.0
    %4591 = vmatprep.subr.mxu0 0.0
    %4592 = vmatpush1.msra.mxu0 0.0
    %4593 = vmatprep.subr.mxu0 0.0
    %4594 = vmatpush1.msra.mxu0 0.0
    %4595 = vmatprep.subr.mxu0 0.0
    %4596 = vmatpush1.msra.mxu0 0.0
    %4597 = vmatprep.subr.mxu0 0.0
    %4598 = vmatpush1.msra.mxu0 0.0
    %4599 = vmatprep.subr.mxu0 0.0
    %4600 = vmatpush1.msra.mxu0 0.0
    %4601 = vmatprep.subr.mxu0 0.0
    %4602 = vmatpush1.msra.mxu0 0.0
    %4603 = vmatprep.subr.mxu0 0.0
    %4604 = vmatpush1.msra.mxu0 0.0
    %4605 = vmatprep.subr.mxu0 0.0
    %4606 = vmatpush1.msra.mxu0 0.0
    %4607 = vmatprep.subr.mxu0 0.0
    %4608 = vmatpush1.msra.mxu0 0.0
    %4609 = vmatprep.subr.mxu0 0.0
    %4610 = vmatpush1.msra.mxu0 0.0
    %4611 = vmatprep.subr.mxu0 0.0
    %4612 = vmatpush1.msra.mxu0 0.0
    %4613 = vmatprep.subr.mxu0 0.0
    %4614 = vmatpush1.msra.mxu0 0.0
    %4615 = vmatprep.subr.mxu0 0.0
    %4616 = vmatpush1.msra.mxu0 0.0
    %4617 = vmatprep.subr.mxu0 0.0
    %4618 = vmatpush1.msra.mxu0 0.0
    %4619 = vmatprep.subr.mxu0 0.0
    %4620 = vmatpush1.msra.mxu0 0.0
    %4621 = vmatprep.subr.mxu0 0.0
    %4622 = vmatpush1.msra.mxu0 0.0
    %4623 = vmatprep.subr.mxu0 0.0
    %4624 = vmatpush1.msra.mxu0 0.0
    %4625 = vmatprep.subr.mxu0 0.0
    %4626 = vmatpush1.msra.mxu0 0.0
    %4627 = vmatprep.subr.mxu0 0.0
    %4628 = vmatpush1.msra.mxu0 0.0
    %4629 = vmatprep.subr.mxu0 0.0
    %4630 = vmatpush1.msra.mxu0 0.0
    %4631 = vmatprep.subr.mxu0 0.0
    %4632 = vmatpush1.msra.mxu0 0.0
    %4633 = vmatprep.subr.mxu0 0.0
    %4634 = vmatpush1.msra.mxu0 0.0
    %4635 = vmatprep.subr.mxu0 0.0
    %4636 = vmatpush1.msra.mxu0 0.0
    %4637 = vmatprep.subr.mxu0 0.0
    %4638 = vmatpush1.msra.mxu0 0.0
    %4639 = vmatprep.subr.mxu0 0.0
    %4640 = vmatpush1.msra.mxu0 0.0
    %4641 = vmatprep.subr.mxu0 0.0
    %4642 = vmatpush1.msra.mxu0 0.0
    %4643 = vmatprep.mubr.f32.mxu0 0.0
    %4644 = vmatmul.mubr.f32.gmra.mrb[0].mxu0 %v927
    %v4645 = vpop.f32.mrb[0].mxu0
    %v4646 = vadd.f32 0.0, %v4645
    %v4647 = vpop.f32.mrb[0].mxu0
    %4648 = vmatprep.mubr.f32.mxu0 0.0
    %4649 = vmatmul.mubr.f32.gmra.mrb[0].mxu0 %v930
    %v4650 = vpop.f32.mrb[0].mxu0
    %v4651 = vadd.f32 0.0, %v4650
    %v4652 = vpop.f32.mrb[0].mxu0
    %4653 = vmatprep.mubr.f32.mxu0 0.0
    %4654 = vmatmul.mubr.f32.gmra.mrb[0].mxu0 %v933
    %v4655 = vpop.f32.mrb[0].mxu0
    %v4656 = vadd.f32 0.0, %v4655
    %v4657 = vpop.f32.mrb[0].mxu0
    %4658 = vmatprep.mubr.f32.mxu0 0.0
    %4659 = vmatmul.mubr.f32.gmra.mrb[0].mxu0 %v936
    %v4660 = vpop.f32.mrb[0].mxu0
    %v4661 = vadd.f32 0.0, %v4660
    %v4662 = vpop.f32.mrb[0].mxu0
    %4663 = vmatprep.mubr.f32.mxu0 0.0
    %4664 = vmatmul.mubr.f32.gmra.mrb[0].mxu0 %v939
    %v4665 = vpop.f32.mrb[0].mxu0
    %v4666 = vadd.f32 0.0, %v4665
    %v4667 = vpop.f32.mrb[0].mxu0
    %4668 = vmatprep.mubr.f32.mxu0 0.0
    %4669 = vmatmul.mubr.f32.gmra.mrb[0].mxu0 %v942
    %v4670 = vpop.f32.mrb[0].mxu0
    %v4671 = vadd.f32 0.0, %v4670
    %v4672 = vpop.f32.mrb[0].mxu0
    %4673 = vmatprep.mubr.f32.mxu0 0.0
    %4674 = vmatmul.mubr.f32.gmra.mrb[0].mxu0 %v945
    %v4675 = vpop.f32.mrb[0].mxu0
    %v4676 = vadd.f32 0.0, %v4675
    %v4677 = vpop.f32.mrb[0].mxu0
    %4678 = vmatprep.mubr.f32.mxu0 0.0
    %4679 = vmatmul.mubr.f32.gmra.mrb[0].mxu0 %v948
    %v4680 = vpop.f32.mrb[0].mxu0
    %v4681 = vadd.f32 0.0, %v4680
    %v4682 = vpop.f32.mrb[0].mxu0
    %4683 = vmatprep.mubr.f32.mxu0 0.0
    %4684 = vmatmul.mubr.f32.gmra.mrb[0].mxu0 %v951
    %v4685 = vpop.f32.mrb[0].mxu0
    %v4686 = vadd.f32 0.0, %v4685
    %v4687 = vpop.f32.mrb[0].mxu0
    %4688 = vmatprep.mubr.f32.mxu0 0.0
    %4689 = vmatmul.mubr.f32.gmra.mrb[0].mxu0 %v954
    %v4690 = vpop.f32.mrb[0].mxu0
    %v4691 = vadd.f32 0.0, %v4690
    %v4692 = vpop.f32.mrb[0].mxu0
    %4693 = vmatprep.mubr.f32.mxu0 0.0
    %4694 = vmatmul.mubr.f32.gmra.mrb[0].mxu0 %v957
    %v4695 = vpop.f32.mrb[0].mxu0
    %v4696 = vadd.f32 0.0, %v4695
    %v4697 = vpop.f32.mrb[0].mxu0
    %4698 = vmatprep.mubr.f32.mxu0 0.0
    %4699 = vmatmul.mubr.f32.gmra.mrb[0].mxu0 %v960
    %v4700 = vpop.f32.mrb[0].mxu0
    %v4701 = vadd.f32 0.0, %v4700
    %v4702 = vpop.f32.mrb[0].mxu0
    %4703 = vmatprep.mubr.f32.mxu0 0.0
    %4704 = vmatmul.mubr.f32.gmra.mrb[0].mxu0 %v963
    %v4705 = vpop.f32.mrb[0].mxu0
    %v4706 = vadd.f32 0.0, %v4705
    %v4707 = vpop.f32.mrb[0].mxu0
    %4708 = vmatprep.mubr.f32.mxu0 0.0
    %4709 = vmatmul.mubr.f32.gmra.mrb[0].mxu0 %v966
    %v4710 = vpop.f32.mrb[0].mxu0
    %v4711 = vadd.f32 0.0, %v4710
    %v4712 = vpop.f32.mrb[0].mxu0
    %4713 = vmatprep.mubr.f32.mxu0 0.0
    %4714 = vmatmul.mubr.f32.gmra.mrb[0].mxu0 %v969
    %v4715 = vpop.f32.mrb[0].mxu0
    %v4716 = vadd.f32 0.0, %v4715
    %v4717 = vpop.f32.mrb[0].mxu0
    %4718 = vmatprep.mubr.f32.mxu0 0.0
    %4719 = vmatmul.mubr.f32.gmra.mrb[0].mxu0 %v972
    %v4720 = vpop.f32.mrb[0].mxu0
    %v4721 = vadd.f32 0.0, %v4720
    %v4722 = vpop.f32.mrb[0].mxu0
    %4723 = vdwg.mxu0
    %v4725 = vsel %vm307, %v4646, 0
    %v4728 = vsel %vm307, %v4651, 0
    %v4731 = vsel %vm307, %v4656, 0
    %v4734 = vsel %vm307, %v4661, 0
    %v4737 = vsel %vm307, %v4666, 0
    %v4740 = vsel %vm307, %v4671, 0
    %v4743 = vsel %vm307, %v4676, 0
    %v4746 = vsel %vm307, %v4681, 0
    %v4749 = vsel %vm307, %v4686, 0
    %v4752 = vsel %vm307, %v4691, 0
    %v4755 = vsel %vm307, %v4696, 0
    %v4758 = vsel %vm307, %v4701, 0
    %v4761 = vsel %vm307, %v4706, 0
    %v4764 = vsel %vm307, %v4711, 0
    %v4767 = vsel %vm307, %v4716, 0
    %v4770 = vsel %vm307, %v4721, 0
    %4772 = vmatprep.subr.mxu0 %v768
    %4773 = vmatpush1.msra.mxu0 %v767
    %4774 = vmatprep.subr.mxu0 %v770
    %4775 = vmatpush1.msra.mxu0 %v769
    %4776 = vmatprep.subr.mxu0 0.0
    %4777 = vmatpush1.msra.mxu0 0.0
    %4778 = vmatprep.subr.mxu0 0.0
    %4779 = vmatpush1.msra.mxu0 0.0
    %4780 = vmatprep.subr.mxu0 0.0
    %4781 = vmatpush1.msra.mxu0 0.0
    %4782 = vmatprep.subr.mxu0 0.0
    %4783 = vmatpush1.msra.mxu0 0.0
    %4784 = vmatprep.subr.mxu0 0.0
    %4785 = vmatpush1.msra.mxu0 0.0
    %4786 = vmatprep.subr.mxu0 0.0
    %4787 = vmatpush1.msra.mxu0 0.0
    %4788 = vmatprep.subr.mxu0 0.0
    %4789 = vmatpush1.msra.mxu0 0.0
    %4790 = vmatprep.subr.mxu0 0.0
    %4791 = vmatpush1.msra.mxu0 0.0
    %4792 = vmatprep.subr.mxu0 0.0
    %4793 = vmatpush1.msra.mxu0 0.0
    %4794 = vmatprep.subr.mxu0 0.0
    %4795 = vmatpush1.msra.mxu0 0.0
    %4796 = vmatprep.subr.mxu0 0.0
    %4797 = vmatpush1.msra.mxu0 0.0
    %4798 = vmatprep.subr.mxu0 0.0
    %4799 = vmatpush1.msra.mxu0 0.0
    %4800 = vmatprep.subr.mxu0 0.0
    %4801 = vmatpush1.msra.mxu0 0.0
    %4802 = vmatprep.subr.mxu0 0.0
    %4803 = vmatpush1.msra.mxu0 0.0
    %4804 = vmatprep.subr.mxu0 0.0
    %4805 = vmatpush1.msra.mxu0 0.0
    %4806 = vmatprep.subr.mxu0 0.0
    %4807 = vmatpush1.msra.mxu0 0.0
    %4808 = vmatprep.subr.mxu0 0.0
    %4809 = vmatpush1.msra.mxu0 0.0
    %4810 = vmatprep.subr.mxu0 0.0
    %4811 = vmatpush1.msra.mxu0 0.0
    %4812 = vmatprep.subr.mxu0 0.0
    %4813 = vmatpush1.msra.mxu0 0.0
    %4814 = vmatprep.subr.mxu0 0.0
    %4815 = vmatpush1.msra.mxu0 0.0
    %4816 = vmatprep.subr.mxu0 0.0
    %4817 = vmatpush1.msra.mxu0 0.0
    %4818 = vmatprep.subr.mxu0 0.0
    %4819 = vmatpush1.msra.mxu0 0.0
    %4820 = vmatprep.subr.mxu0 0.0
    %4821 = vmatpush1.msra.mxu0 0.0
    %4822 = vmatprep.subr.mxu0 0.0
    %4823 = vmatpush1.msra.mxu0 0.0
    %4824 = vmatprep.subr.mxu0 0.0
    %4825 = vmatpush1.msra.mxu0 0.0
    %4826 = vmatprep.subr.mxu0 0.0
    %4827 = vmatpush1.msra.mxu0 0.0
    %4828 = vmatprep.subr.mxu0 0.0
    %4829 = vmatpush1.msra.mxu0 0.0
    %4830 = vmatprep.subr.mxu0 0.0
    %4831 = vmatpush1.msra.mxu0 0.0
    %4832 = vmatprep.subr.mxu0 0.0
    %4833 = vmatpush1.msra.mxu0 0.0
    %4834 = vmatprep.subr.mxu0 0.0
    %4835 = vmatpush1.msra.mxu0 0.0
    %4836 = vmatprep.mubr.f32.mxu0 0.0
    %4837 = vmatmul.mubr.f32.gmra.mrb[0].mxu0 %v4725
    %v4838 = vpop.f32.mrb[0].mxu0
    %v4839 = vadd.f32 0.0, %v4838
    %v4840 = vpop.f32.mrb[0].mxu0
    %v4841 = vadd.f32 0.0, %v4840
    %4842 = vmatprep.mubr.f32.mxu0 0.0
    %4843 = vmatmul.mubr.f32.gmra.mrb[0].mxu0 %v4728
    %v4844 = vpop.f32.mrb[0].mxu0
    %v4845 = vadd.f32 0.0, %v4844
    %v4846 = vpop.f32.mrb[0].mxu0
    %v4847 = vadd.f32 0.0, %v4846
    %4848 = vmatprep.mubr.f32.mxu0 0.0
    %4849 = vmatmul.mubr.f32.gmra.mrb[0].mxu0 %v4731
    %v4850 = vpop.f32.mrb[0].mxu0
    %v4851 = vadd.f32 0.0, %v4850
    %v4852 = vpop.f32.mrb[0].mxu0
    %v4853 = vadd.f32 0.0, %v4852
    %4854 = vmatprep.mubr.f32.mxu0 0.0
    %4855 = vmatmul.mubr.f32.gmra.mrb[0].mxu0 %v4734
    %v4856 = vpop.f32.mrb[0].mxu0
    %v4857 = vadd.f32 0.0, %v4856
    %v4858 = vpop.f32.mrb[0].mxu0
    %v4859 = vadd.f32 0.0, %v4858
    %4860 = vmatprep.mubr.f32.mxu0 0.0
    %4861 = vmatmul.mubr.f32.gmra.mrb[0].mxu0 %v4737
    %v4862 = vpop.f32.mrb[0].mxu0
    %v4863 = vadd.f32 0.0, %v4862
    %v4864 = vpop.f32.mrb[0].mxu0
    %v4865 = vadd.f32 0.0, %v4864
    %4866 = vmatprep.mubr.f32.mxu0 0.0
    %4867 = vmatmul.mubr.f32.gmra.mrb[0].mxu0 %v4740
    %v4868 = vpop.f32.mrb[0].mxu0
    %v4869 = vadd.f32 0.0, %v4868
    %v4870 = vpop.f32.mrb[0].mxu0
    %v4871 = vadd.f32 0.0, %v4870
    %4872 = vmatprep.mubr.f32.mxu0 0.0
    %4873 = vmatmul.mubr.f32.gmra.mrb[0].mxu0 %v4743
    %v4874 = vpop.f32.mrb[0].mxu0
    %v4875 = vadd.f32 0.0, %v4874
    %v4876 = vpop.f32.mrb[0].mxu0
    %v4877 = vadd.f32 0.0, %v4876
    %4878 = vmatprep.mubr.f32.mxu0 0.0
    %4879 = vmatmul.mubr.f32.gmra.mrb[0].mxu0 %v4746
    %v4880 = vpop.f32.mrb[0].mxu0
    %v4881 = vadd.f32 0.0, %v4880
    %v4882 = vpop.f32.mrb[0].mxu0
    %v4883 = vadd.f32 0.0, %v4882
    %4884 = vmatprep.mubr.f32.mxu0 0.0
    %4885 = vmatmul.mubr.f32.gmra.mrb[0].mxu0 %v4749
    %v4886 = vpop.f32.mrb[0].mxu0
    %v4887 = vadd.f32 0.0, %v4886
    %v4888 = vpop.f32.mrb[0].mxu0
    %v4889 = vadd.f32 0.0, %v4888
    %4890 = vmatprep.mubr.f32.mxu0 0.0
    %4891 = vmatmul.mubr.f32.gmra.mrb[0].mxu0 %v4752
    %v4892 = vpop.f32.mrb[0].mxu0
    %v4893 = vadd.f32 0.0, %v4892
    %v4894 = vpop.f32.mrb[0].mxu0
    %v4895 = vadd.f32 0.0, %v4894
    %4896 = vmatprep.mubr.f32.mxu0 0.0
    %4897 = vmatmul.mubr.f32.gmra.mrb[0].mxu0 %v4755
    %v4898 = vpop.f32.mrb[0].mxu0
    %v4899 = vadd.f32 0.0, %v4898
    %v4900 = vpop.f32.mrb[0].mxu0
    %v4901 = vadd.f32 0.0, %v4900
    %4902 = vmatprep.mubr.f32.mxu0 0.0
    %4903 = vmatmul.mubr.f32.gmra.mrb[0].mxu0 %v4758
    %v4904 = vpop.f32.mrb[0].mxu0
    %v4905 = vadd.f32 0.0, %v4904
    %v4906 = vpop.f32.mrb[0].mxu0
    %v4907 = vadd.f32 0.0, %v4906
    %4908 = vmatprep.mubr.f32.mxu0 0.0
    %4909 = vmatmul.mubr.f32.gmra.mrb[0].mxu0 %v4761
    %v4910 = vpop.f32.mrb[0].mxu0
    %v4911 = vadd.f32 0.0, %v4910
    %v4912 = vpop.f32.mrb[0].mxu0
    %v4913 = vadd.f32 0.0, %v4912
    %4914 = vmatprep.mubr.f32.mxu0 0.0
    %4915 = vmatmul.mubr.f32.gmra.mrb[0].mxu0 %v4764
    %v4916 = vpop.f32.mrb[0].mxu0
    %v4917 = vadd.f32 0.0, %v4916
    %v4918 = vpop.f32.mrb[0].mxu0
    %v4919 = vadd.f32 0.0, %v4918
    %4920 = vmatprep.mubr.f32.mxu0 0.0
    %4921 = vmatmul.mubr.f32.gmra.mrb[0].mxu0 %v4767
    %v4922 = vpop.f32.mrb[0].mxu0
    %v4923 = vadd.f32 0.0, %v4922
    %v4924 = vpop.f32.mrb[0].mxu0
    %v4925 = vadd.f32 0.0, %v4924
    %4926 = vmatprep.mubr.f32.mxu0 0.0
    %4927 = vmatmul.mubr.f32.gmra.mrb[0].mxu0 %v4770
    %v4928 = vpop.f32.mrb[0].mxu0
    %v4929 = vadd.f32 0.0, %v4928
    %v4930 = vpop.f32.mrb[0].mxu0
    %v4931 = vadd.f32 0.0, %v4930
    %4932 = vdwg.mxu0
    %v4933 = vmul.f32 %v4839, %v653
    %v4934 = vmul.f32 %v4841, %v655
    %v4935 = vmul.f32 %v4845, %v659
    %v4936 = vmul.f32 %v4847, %v661
    %v4937 = vmul.f32 %v4851, %v665
    %v4938 = vmul.f32 %v4853, %v667
    %v4939 = vmul.f32 %v4857, %v671
    %v4940 = vmul.f32 %v4859, %v673
    %v4941 = vmul.f32 %v4863, %v677
    %v4942 = vmul.f32 %v4865, %v679
    %v4943 = vmul.f32 %v4869, %v683
    %v4944 = vmul.f32 %v4871, %v685
    %v4945 = vmul.f32 %v4875, %v689
    %v4946 = vmul.f32 %v4877, %v691
    %v4947 = vmul.f32 %v4881, %v695
    %v4948 = vmul.f32 %v4883, %v697
    %v4949 = vmul.f32 %v4887, %v701
    %v4950 = vmul.f32 %v4889, %v703
    %v4951 = vmul.f32 %v4893, %v707
    %v4952 = vmul.f32 %v4895, %v709
    %v4953 = vmul.f32 %v4899, %v713
    %v4954 = vmul.f32 %v4901, %v715
    %v4955 = vmul.f32 %v4905, %v719
    %v4956 = vmul.f32 %v4907, %v721
    %v4957 = vmul.f32 %v4911, %v725
    %v4958 = vmul.f32 %v4913, %v727
    %v4959 = vmul.f32 %v4917, %v731
    %v4960 = vmul.f32 %v4919, %v733
    %v4961 = vmul.f32 %v4923, %v737
    %v4962 = vmul.f32 %v4925, %v739
    %v4963 = vmul.f32 %v4929, %v743
    %v4964 = vmul.f32 %v4931, %v745
    %4965 = vmatprep.subr.mxu0 0.0
    %4966 = vmatpush1.msra.mxu0 %v771
    %4967 = vmatprep.subr.mxu0 0.0
    %4968 = vmatpush1.msra.mxu0 %v772
    %4969 = vmatprep.subr.mxu0 0.0
    %4970 = vmatpush1.msra.mxu0 %v773
    %4971 = vmatprep.subr.mxu0 0.0
    %4972 = vmatpush1.msra.mxu0 %v774
    %4973 = vmatprep.subr.mxu0 0.0
    %4974 = vmatpush1.msra.mxu0 %v775
    %4975 = vmatprep.subr.mxu0 0.0
    %4976 = vmatpush1.msra.mxu0 %v776
    %4977 = vmatprep.subr.mxu0 0.0
    %4978 = vmatpush1.msra.mxu0 %v777
    %4979 = vmatprep.subr.mxu0 0.0
    %4980 = vmatpush1.msra.mxu0 %v778
    %4981 = vmatprep.subr.mxu0 0.0
    %4982 = vmatpush1.msra.mxu0 %v779
    %4983 = vmatprep.subr.mxu0 0.0
    %4984 = vmatpush1.msra.mxu0 %v780
    %4985 = vmatprep.subr.mxu0 0.0
    %4986 = vmatpush1.msra.mxu0 %v781
    %4987 = vmatprep.subr.mxu0 0.0
    %4988 = vmatpush1.msra.mxu0 %v782
    %4989 = vmatprep.subr.mxu0 0.0
    %4990 = vmatpush1.msra.mxu0 %v783
    %4991 = vmatprep.subr.mxu0 0.0
    %4992 = vmatpush1.msra.mxu0 %v784
    %4993 = vmatprep.subr.mxu0 0.0
    %4994 = vmatpush1.msra.mxu0 %v785
    %4995 = vmatprep.subr.mxu0 0.0
    %4996 = vmatpush1.msra.mxu0 %v786
    %4997 = vmatprep.subr.mxu0 0.0
    %4998 = vmatpush1.msra.mxu0 %v787
    %4999 = vmatprep.subr.mxu0 0.0
    %5000 = vmatpush1.msra.mxu0 %v788
    %5001 = vmatprep.subr.mxu0 0.0
    %5002 = vmatpush1.msra.mxu0 %v789
    %5003 = vmatprep.subr.mxu0 0.0
    %5004 = vmatpush1.msra.mxu0 %v790
    %5005 = vmatprep.subr.mxu0 0.0
    %5006 = vmatpush1.msra.mxu0 %v791
    %5007 = vmatprep.subr.mxu0 0.0
    %5008 = vmatpush1.msra.mxu0 %v792
    %5009 = vmatprep.subr.mxu0 0.0
    %5010 = vmatpush1.msra.mxu0 %v793
    %5011 = vmatprep.subr.mxu0 0.0
    %5012 = vmatpush1.msra.mxu0 %v794
    %5013 = vmatprep.subr.mxu0 0.0
    %5014 = vmatpush1.msra.mxu0 %v795
    %5015 = vmatprep.subr.mxu0 0.0
    %5016 = vmatpush1.msra.mxu0 %v796
    %5017 = vmatprep.subr.mxu0 0.0
    %5018 = vmatpush1.msra.mxu0 %v797
    %5019 = vmatprep.subr.mxu0 0.0
    %5020 = vmatpush1.msra.mxu0 %v798
    %5021 = vmatprep.subr.mxu0 0.0
    %5022 = vmatpush1.msra.mxu0 %v799
    %5023 = vmatprep.subr.mxu0 0.0
    %5024 = vmatpush1.msra.mxu0 %v800
    %5025 = vmatprep.subr.mxu0 0.0
    %5026 = vmatpush1.msra.mxu0 %v801
    %5027 = vmatprep.subr.mxu0 0.0
    %5028 = vmatpush1.msra.mxu0 %v802
    %5029 = vmatprep.mubr.f32.mxu0 %v4934
    %5030 = vmatmul.mubr.f32.gmra.mrb[0].mxu0 %v4933
    %v5031 = vpop.f32.mrb[0].mxu0
    %v5032 = vadd.f32 0.0, %v5031
    %v5033 = vpop.f32.mrb[0].mxu0
    %5034 = vmatprep.mubr.f32.mxu0 %v4936
    %5035 = vmatmul.mubr.f32.gmra.mrb[0].mxu0 %v4935
    %v5036 = vpop.f32.mrb[0].mxu0
    %v5037 = vadd.f32 0.0, %v5036
    %v5038 = vpop.f32.mrb[0].mxu0
    %5039 = vmatprep.mubr.f32.mxu0 %v4938
    %5040 = vmatmul.mubr.f32.gmra.mrb[0].mxu0 %v4937
    %v5041 = vpop.f32.mrb[0].mxu0
    %v5042 = vadd.f32 0.0, %v5041
    %v5043 = vpop.f32.mrb[0].mxu0
    %5044 = vmatprep.mubr.f32.mxu0 %v4940
    %5045 = vmatmul.mubr.f32.gmra.mrb[0].mxu0 %v4939
    %v5046 = vpop.f32.mrb[0].mxu0
    %v5047 = vadd.f32 0.0, %v5046
    %v5048 = vpop.f32.mrb[0].mxu0
    %5049 = vmatprep.mubr.f32.mxu0 %v4942
    %5050 = vmatmul.mubr.f32.gmra.mrb[0].mxu0 %v4941
    %v5051 = vpop.f32.mrb[0].mxu0
    %v5052 = vadd.f32 0.0, %v5051
    %v5053 = vpop.f32.mrb[0].mxu0
    %5054 = vmatprep.mubr.f32.mxu0 %v4944
    %5055 = vmatmul.mubr.f32.gmra.mrb[0].mxu0 %v4943
    %v5056 = vpop.f32.mrb[0].mxu0
    %v5057 = vadd.f32 0.0, %v5056
    %v5058 = vpop.f32.mrb[0].mxu0
    %5059 = vmatprep.mubr.f32.mxu0 %v4946
    %5060 = vmatmul.mubr.f32.gmra.mrb[0].mxu0 %v4945
    %v5061 = vpop.f32.mrb[0].mxu0
    %v5062 = vadd.f32 0.0, %v5061
    %v5063 = vpop.f32.mrb[0].mxu0
    %5064 = vmatprep.mubr.f32.mxu0 %v4948
    %5065 = vmatmul.mubr.f32.gmra.mrb[0].mxu0 %v4947
    %v5066 = vpop.f32.mrb[0].mxu0
    %v5067 = vadd.f32 0.0, %v5066
    %v5068 = vpop.f32.mrb[0].mxu0
    %5069 = vmatprep.mubr.f32.mxu0 %v4950
    %5070 = vmatmul.mubr.f32.gmra.mrb[0].mxu0 %v4949
    %v5071 = vpop.f32.mrb[0].mxu0
    %v5072 = vadd.f32 0.0, %v5071
    %v5073 = vpop.f32.mrb[0].mxu0
    %5074 = vmatprep.mubr.f32.mxu0 %v4952
    %5075 = vmatmul.mubr.f32.gmra.mrb[0].mxu0 %v4951
    %v5076 = vpop.f32.mrb[0].mxu0
    %v5077 = vadd.f32 0.0, %v5076
    %v5078 = vpop.f32.mrb[0].mxu0
    %5079 = vmatprep.mubr.f32.mxu0 %v4954
    %5080 = vmatmul.mubr.f32.gmra.mrb[0].mxu0 %v4953
    %v5081 = vpop.f32.mrb[0].mxu0
    %v5082 = vadd.f32 0.0, %v5081
    %v5083 = vpop.f32.mrb[0].mxu0
    %5084 = vmatprep.mubr.f32.mxu0 %v4956
    %5085 = vmatmul.mubr.f32.gmra.mrb[0].mxu0 %v4955
    %v5086 = vpop.f32.mrb[0].mxu0
    %v5087 = vadd.f32 0.0, %v5086
    %v5088 = vpop.f32.mrb[0].mxu0
    %5089 = vmatprep.mubr.f32.mxu0 %v4958
    %5090 = vmatmul.mubr.f32.gmra.mrb[0].mxu0 %v4957
    %v5091 = vpop.f32.mrb[0].mxu0
    %v5092 = vadd.f32 0.0, %v5091
    %v5093 = vpop.f32.mrb[0].mxu0
    %5094 = vmatprep.mubr.f32.mxu0 %v4960
    %5095 = vmatmul.mubr.f32.gmra.mrb[0].mxu0 %v4959
    %v5096 = vpop.f32.mrb[0].mxu0
    %v5097 = vadd.f32 0.0, %v5096
    %v5098 = vpop.f32.mrb[0].mxu0
    %5099 = vmatprep.mubr.f32.mxu0 %v4962
    %5100 = vmatmul.mubr.f32.gmra.mrb[0].mxu0 %v4961
    %v5101 = vpop.f32.mrb[0].mxu0
    %v5102 = vadd.f32 0.0, %v5101
    %v5103 = vpop.f32.mrb[0].mxu0
    %5104 = vmatprep.mubr.f32.mxu0 %v4964
    %5105 = vmatmul.mubr.f32.gmra.mrb[0].mxu0 %v4963
    %v5106 = vpop.f32.mrb[0].mxu0
    %v5107 = vadd.f32 0.0, %v5106
    %v5108 = vpop.f32.mrb[0].mxu0
    %5109 = vdwg.mxu0
    %v5111 = vsel %vm307, %v4575, 0
    %v5114 = vsel %vm307, %v4576, 0
    %v5117 = vsel %vm307, %v4577, 0
    %v5120 = vsel %vm307, %v4578, 0
    %5122 = vmatprep.subr.mxu0 0.0
    %5123 = vmatpush1.msra.mxu0 %v803
    %5124 = vmatprep.subr.mxu0 0.0
    %5125 = vmatpush1.msra.mxu0 %v804
    %5126 = vmatprep.subr.mxu0 0.0
    %5127 = vmatpush1.msra.mxu0 0.0
    %5128 = vmatprep.subr.mxu0 0.0
    %5129 = vmatpush1.msra.mxu0 0.0
    %5130 = vmatprep.subr.mxu0 0.0
    %5131 = vmatpush1.msra.mxu0 0.0
    %5132 = vmatprep.subr.mxu0 0.0
    %5133 = vmatpush1.msra.mxu0 0.0
    %5134 = vmatprep.subr.mxu0 0.0
    %5135 = vmatpush1.msra.mxu0 0.0
    %5136 = vmatprep.subr.mxu0 0.0
    %5137 = vmatpush1.msra.mxu0 0.0
    %5138 = vmatprep.subr.mxu0 0.0
    %5139 = vmatpush1.msra.mxu0 0.0
    %5140 = vmatprep.subr.mxu0 0.0
    %5141 = vmatpush1.msra.mxu0 0.0
    %5142 = vmatprep.subr.mxu0 0.0
    %5143 = vmatpush1.msra.mxu0 0.0
    %5144 = vmatprep.subr.mxu0 0.0
    %5145 = vmatpush1.msra.mxu0 0.0
    %5146 = vmatprep.subr.mxu0 0.0
    %5147 = vmatpush1.msra.mxu0 0.0
    %5148 = vmatprep.subr.mxu0 0.0
    %5149 = vmatpush1.msra.mxu0 0.0
    %5150 = vmatprep.subr.mxu0 0.0
    %5151 = vmatpush1.msra.mxu0 0.0
    %5152 = vmatprep.subr.mxu0 0.0
    %5153 = vmatpush1.msra.mxu0 0.0
    %5154 = vmatprep.subr.mxu0 0.0
    %5155 = vmatpush1.msra.mxu0 0.0
    %5156 = vmatprep.subr.mxu0 0.0
    %5157 = vmatpush1.msra.mxu0 0.0
    %5158 = vmatprep.subr.mxu0 0.0
    %5159 = vmatpush1.msra.mxu0 0.0
    %5160 = vmatprep.subr.mxu0 0.0
    %5161 = vmatpush1.msra.mxu0 0.0
    %5162 = vmatprep.subr.mxu0 0.0
    %5163 = vmatpush1.msra.mxu0 0.0
    %5164 = vmatprep.subr.mxu0 0.0
    %5165 = vmatpush1.msra.mxu0 0.0
    %5166 = vmatprep.subr.mxu0 0.0
    %5167 = vmatpush1.msra.mxu0 0.0
    %5168 = vmatprep.subr.mxu0 0.0
    %5169 = vmatpush1.msra.mxu0 0.0
    %5170 = vmatprep.subr.mxu0 0.0
    %5171 = vmatpush1.msra.mxu0 0.0
    %5172 = vmatprep.subr.mxu0 0.0
    %5173 = vmatpush1.msra.mxu0 0.0
    %5174 = vmatprep.subr.mxu0 0.0
    %5175 = vmatpush1.msra.mxu0 0.0
    %5176 = vmatprep.subr.mxu0 0.0
    %5177 = vmatpush1.msra.mxu0 0.0
    %5178 = vmatprep.subr.mxu0 0.0
    %5179 = vmatpush1.msra.mxu0 0.0
    %5180 = vmatprep.subr.mxu0 0.0
    %5181 = vmatpush1.msra.mxu0 0.0
    %5182 = vmatprep.subr.mxu0 0.0
    %5183 = vmatpush1.msra.mxu0 0.0
    %5184 = vmatprep.subr.mxu0 0.0
    %5185 = vmatpush1.msra.mxu0 0.0
    %5186 = vmatprep.mubr.f32.mxu0 0.0
    %5187 = vmatmul.mubr.f32.gmra.mrb[0].mxu0 %v5111
    %v5188 = vpop.f32.mrb[0].mxu0
    %v5189 = vadd.f32 0.0, %v5188
    %v5190 = vpop.f32.mrb[0].mxu0
    %5191 = vmatprep.mubr.f32.mxu0 0.0
    %5192 = vmatmul.mubr.f32.gmra.mrb[0].mxu0 %v5114
    %v5193 = vpop.f32.mrb[0].mxu0
    %v5194 = vadd.f32 0.0, %v5193
    %v5195 = vpop.f32.mrb[0].mxu0
    %5196 = vmatprep.mubr.f32.mxu0 0.0
    %5197 = vmatmul.mubr.f32.gmra.mrb[0].mxu0 %v5117
    %v5198 = vpop.f32.mrb[0].mxu0
    %v5199 = vadd.f32 0.0, %v5198
    %v5200 = vpop.f32.mrb[0].mxu0
    %5201 = vmatprep.mubr.f32.mxu0 0.0
    %5202 = vmatmul.mubr.f32.gmra.mrb[0].mxu0 %v5120
    %v5203 = vpop.f32.mrb[0].mxu0
    %v5204 = vadd.f32 0.0, %v5203
    %v5205 = vpop.f32.mrb[0].mxu0
    %5206 = vdwg.mxu0
    %5207 = vmatprep.subr.mxu0 0.0
    %5208 = vmatpush1.msra.mxu0 %v5032
    %5209 = vmatprep.subr.mxu0 0.0
    %5210 = vmatpush1.msra.mxu0 %v5037
    %5211 = vmatprep.subr.mxu0 0.0
    %5212 = vmatpush1.msra.mxu0 %v5042
    %5213 = vmatprep.subr.mxu0 0.0
    %5214 = vmatpush1.msra.mxu0 %v5047
    %5215 = vmatprep.subr.mxu0 0.0
    %5216 = vmatpush1.msra.mxu0 %v5052
    %5217 = vmatprep.subr.mxu0 0.0
    %5218 = vmatpush1.msra.mxu0 %v5057
    %5219 = vmatprep.subr.mxu0 0.0
    %5220 = vmatpush1.msra.mxu0 %v5062
    %5221 = vmatprep.subr.mxu0 0.0
    %5222 = vmatpush1.msra.mxu0 %v5067
    %5223 = vmatprep.subr.mxu0 0.0
    %5224 = vmatpush1.msra.mxu0 %v5072
    %5225 = vmatprep.subr.mxu0 0.0
    %5226 = vmatpush1.msra.mxu0 %v5077
    %5227 = vmatprep.subr.mxu0 0.0
    %5228 = vmatpush1.msra.mxu0 %v5082
    %5229 = vmatprep.subr.mxu0 0.0
    %5230 = vmatpush1.msra.mxu0 %v5087
    %5231 = vmatprep.subr.mxu0 0.0
    %5232 = vmatpush1.msra.mxu0 %v5092
    %5233 = vmatprep.subr.mxu0 0.0
    %5234 = vmatpush1.msra.mxu0 %v5097
    %5235 = vmatprep.subr.mxu0 0.0
    %5236 = vmatpush1.msra.mxu0 %v5102
    %5237 = vmatprep.subr.mxu0 0.0
    %5238 = vmatpush1.msra.mxu0 %v5107
    %5239 = vmatprep.subr.mxu0 0.0
    %5240 = vmatpush1.msra.mxu0 0.0
    %5241 = vmatprep.subr.mxu0 0.0
    %5242 = vmatpush1.msra.mxu0 0.0
    %5243 = vmatprep.subr.mxu0 0.0
    %5244 = vmatpush1.msra.mxu0 0.0
    %5245 = vmatprep.subr.mxu0 0.0
    %5246 = vmatpush1.msra.mxu0 0.0
    %5247 = vmatprep.subr.mxu0 0.0
    %5248 = vmatpush1.msra.mxu0 0.0
    %5249 = vmatprep.subr.mxu0 0.0
    %5250 = vmatpush1.msra.mxu0 0.0
    %5251 = vmatprep.subr.mxu0 0.0
    %5252 = vmatpush1.msra.mxu0 0.0
    %5253 = vmatprep.subr.mxu0 0.0
    %5254 = vmatpush1.msra.mxu0 0.0
    %5255 = vmatprep.subr.mxu0 0.0
    %5256 = vmatpush1.msra.mxu0 0.0
    %5257 = vmatprep.subr.mxu0 0.0
    %5258 = vmatpush1.msra.mxu0 0.0
    %5259 = vmatprep.subr.mxu0 0.0
    %5260 = vmatpush1.msra.mxu0 0.0
    %5261 = vmatprep.subr.mxu0 0.0
    %5262 = vmatpush1.msra.mxu0 0.0
    %5263 = vmatprep.subr.mxu0 0.0
    %5264 = vmatpush1.msra.mxu0 0.0
    %5265 = vmatprep.subr.mxu0 0.0
    %5266 = vmatpush1.msra.mxu0 0.0
    %5267 = vmatprep.subr.mxu0 0.0
    %5268 = vmatpush1.msra.mxu0 0.0
    %5269 = vmatprep.subr.mxu0 0.0
    %5270 = vmatpush1.msra.mxu0 0.0
    %5271 = vmatprep.mubr.f32.mxu0 0.0
    %5272 = vmatmul.mubr.f32.gmra.mrb[0].mxu0 %v763
    %v5273 = vpop.f32.mrb[0].mxu0
    %v5274 = vadd.f32 %v5189, %v5273
    %v5275 = vpop.f32.mrb[0].mxu0
    %5276 = vmatprep.mubr.f32.mxu0 0.0
    %5277 = vmatmul.mubr.f32.gmra.mrb[0].mxu0 %v764
    %v5278 = vpop.f32.mrb[0].mxu0
    %v5279 = vadd.f32 %v5194, %v5278
    %v5280 = vpop.f32.mrb[0].mxu0
    %5281 = vmatprep.mubr.f32.mxu0 0.0
    %5282 = vmatmul.mubr.f32.gmra.mrb[0].mxu0 %v765
    %v5283 = vpop.f32.mrb[0].mxu0
    %v5284 = vadd.f32 %v5199, %v5283
    %v5285 = vpop.f32.mrb[0].mxu0
    %5286 = vmatprep.mubr.f32.mxu0 0.0
    %5287 = vmatmul.mubr.f32.gmra.mrb[0].mxu0 %v766
    %v5288 = vpop.f32.mrb[0].mxu0
    %v5289 = vadd.f32 %v5204, %v5288
    %v5290 = vpop.f32.mrb[0].mxu0
    %5291 = vdwg.mxu0
    %v5292 = vadd.f32 %v5274, %v810
    %v5293 = vadd.f32 %v5279, %v810
    %v5294 = vadd.f32 %v5284, %v810
    %v5295 = vadd.f32 %v5289, %v810
    %v5296 = vmax.f32 %v5292, 0.0
    %v5297 = vmax.f32 %v5293, 0.0
    %v5298 = vmax.f32 %v5294, 0.0
    %v5299 = vmax.f32 %v5295, 0.0
    %v5300 = vld [vmem:[%s16] sm:$0xff]
    %v5301 = vld [vmem:[%s16 + $0x8] sm:$0xff]
    %v5302 = vld [vmem:[%s17] sm:$0x1]
    %v5304 = vlaneseq
    %v5305 = vshrl.u32 %v5304, 7
    %v5306 = vsub.s32 0, %v5305
    %v5307 = vrot.slane %v5302, %v5306
    %v5310 = vsel %vm307, %v5296, 0
    %v5313 = vsel %vm307, %v5297, 0
    %v5316 = vsel %vm307, %v5298, 0
    %v5319 = vsel %vm307, %v5299, 0
    %5321 = vmatprep.subr.mxu0 0.0
    %5322 = vmatpush1.msra.mxu0 %v5300
    %5323 = vmatprep.subr.mxu0 0.0
    %5324 = vmatpush1.msra.mxu0 %v5301
    %5325 = vmatprep.subr.mxu0 0.0
    %5326 = vmatpush1.msra.mxu0 0.0
    %5327 = vmatprep.subr.mxu0 0.0
    %5328 = vmatpush1.msra.mxu0 0.0
    %5329 = vmatprep.subr.mxu0 0.0
    %5330 = vmatpush1.msra.mxu0 0.0
    %5331 = vmatprep.subr.mxu0 0.0
    %5332 = vmatpush1.msra.mxu0 0.0
    %5333 = vmatprep.subr.mxu0 0.0
    %5334 = vmatpush1.msra.mxu0 0.0
    %5335 = vmatprep.subr.mxu0 0.0
    %5336 = vmatpush1.msra.mxu0 0.0
    %5337 = vmatprep.subr.mxu0 0.0
    %5338 = vmatpush1.msra.mxu0 0.0
    %5339 = vmatprep.subr.mxu0 0.0
    %5340 = vmatpush1.msra.mxu0 0.0
    %5341 = vmatprep.subr.mxu0 0.0
    %5342 = vmatpush1.msra.mxu0 0.0
    %5343 = vmatprep.subr.mxu0 0.0
    %5344 = vmatpush1.msra.mxu0 0.0
    %5345 = vmatprep.subr.mxu0 0.0
    %5346 = vmatpush1.msra.mxu0 0.0
    %5347 = vmatprep.subr.mxu0 0.0
    %5348 = vmatpush1.msra.mxu0 0.0
    %5349 = vmatprep.subr.mxu0 0.0
    %5350 = vmatpush1.msra.mxu0 0.0
    %5351 = vmatprep.subr.mxu0 0.0
    %5352 = vmatpush1.msra.mxu0 0.0
    %5353 = vmatprep.subr.mxu0 0.0
    %5354 = vmatpush1.msra.mxu0 0.0
    %5355 = vmatprep.subr.mxu0 0.0
    %5356 = vmatpush1.msra.mxu0 0.0
    %5357 = vmatprep.subr.mxu0 0.0
    %5358 = vmatpush1.msra.mxu0 0.0
    %5359 = vmatprep.subr.mxu0 0.0
    %5360 = vmatpush1.msra.mxu0 0.0
    %5361 = vmatprep.subr.mxu0 0.0
    %5362 = vmatpush1.msra.mxu0 0.0
    %5363 = vmatprep.subr.mxu0 0.0
    %5364 = vmatpush1.msra.mxu0 0.0
    %5365 = vmatprep.subr.mxu0 0.0
    %5366 = vmatpush1.msra.mxu0 0.0
    %5367 = vmatprep.subr.mxu0 0.0
    %5368 = vmatpush1.msra.mxu0 0.0
    %5369 = vmatprep.subr.mxu0 0.0
    %5370 = vmatpush1.msra.mxu0 0.0
    %5371 = vmatprep.subr.mxu0 0.0
    %5372 = vmatpush1.msra.mxu0 0.0
    %5373 = vmatprep.subr.mxu0 0.0
    %5374 = vmatpush1.msra.mxu0 0.0
    %5375 = vmatprep.subr.mxu0 0.0
    %5376 = vmatpush1.msra.mxu0 0.0
    %5377 = vmatprep.subr.mxu0 0.0
    %5378 = vmatpush1.msra.mxu0 0.0
    %5379 = vmatprep.subr.mxu0 0.0
    %5380 = vmatpush1.msra.mxu0 0.0
    %5381 = vmatprep.subr.mxu0 0.0
    %5382 = vmatpush1.msra.mxu0 0.0
    %5383 = vmatprep.subr.mxu0 0.0
    %5384 = vmatpush1.msra.mxu0 0.0
    %5385 = vmatprep.mubr.f32.mxu0 0.0
    %5386 = vmatmul.mubr.f32.gmra.mrb[0].mxu0 %v5310
    %v5387 = vpop.f32.mrb[0].mxu0
    %v5388 = vadd.f32 %v5307, %v5387
    %v5389 = vpop.f32.mrb[0].mxu0
    %5390 = vmatprep.mubr.f32.mxu0 0.0
    %5391 = vmatmul.mubr.f32.gmra.mrb[0].mxu0 %v5313
    %v5392 = vpop.f32.mrb[0].mxu0
    %v5393 = vadd.f32 %v5307, %v5392
    %v5394 = vpop.f32.mrb[0].mxu0
    %5395 = vmatprep.mubr.f32.mxu0 0.0
    %5396 = vmatmul.mubr.f32.gmra.mrb[0].mxu0 %v5316
    %v5397 = vpop.f32.mrb[0].mxu0
    %v5398 = vadd.f32 %v5307, %v5397
    %v5399 = vpop.f32.mrb[0].mxu0
    %5400 = vmatprep.mubr.f32.mxu0 0.0
    %5401 = vmatmul.mubr.f32.gmra.mrb[0].mxu0 %v5319
    %v5402 = vpop.f32.mrb[0].mxu0
    %v5403 = vadd.f32 %v5307, %v5402
    %v5404 = vpop.f32.mrb[0].mxu0
    %5405 = vdwg.mxu0
    %5406 = vst [vmem:[#allocation2] sm:$0xff] %v5388
    %5407 = vst [vmem:[#allocation2 + $0x8] sm:$0xff] %v5393
    %5408 = vst [vmem:[#allocation2 + $0x10] sm:$0xff] %v5398
    %5409 = vst [vmem:[#allocation2 + $0x18] sm:$0xff] %v5403
    // Predicated region
    $region74: #{tpu_custom_call.1} parent=1 // pred_check
      _
    $region75: #{tpu_custom_call.1} parent=1 // pred_check_branch
      %5411 = sbr.rel (0) target = $region77
    $region76: #{tpu_custom_call.1} parent=1 // pred_region
      %s5413 = ssub.s32 512, 512
      %5414 = vsyncadd [#allocation3], %s5413
      %s5415 = sshll.u32 [#allocation2], 4
      %s5416 = int_to_ptr.vmem [resolvable:$true] %s5415
      %5421 = dma.vmem_to_hbm [thread:$0]  %s5416, 512, %s18, [#allocation3], 128, 128, 8
    $region77: #{tpu_custom_call.1} parent=1 // pred_fallthru
      _
    // Predicated region
    $region78: #{tpu_custom_call.1} parent=1 // pred_check
      _
    $region79: #{tpu_custom_call.1} parent=1 // pred_check_branch
      %5423 = sbr.rel (0) target = $region81
    $region80: #{tpu_custom_call.1} parent=1 // pred_region
      %5424 = dma.done [#allocation3], 512
    $region81: #{tpu_custom_call.1} parent=1 // pred_fallthru
      _
    %5425 = vsyncpa [#allocation3], 1

</llo_original>
